<compile_context>
chip_gen: v7x
topology: tpu7x:2x2x1
jax: 0.10.0
libtpu: 0.0.40
codegen_flags: <defaults>
</compile_context>

<pallas_src>
import functools
import math

import jax
import jax.numpy as jnp
from jax import lax
from jax.experimental import pallas as pl
from jax.experimental.pallas import tpu as pltpu

# Finite "minus infinity": avoids inf-inf NaNs in the online-softmax updates.
NEG_INF = -1.0e30

# VMEM budget used when choosing the head-group size (fits every chip's
# default/physical limits with headroom).
_HEAD_GROUP_VMEM_BUDGET = 24 << 20


def _flash_window_kernel(q_ref, k_ref, v_ref, o_ref,
                         qs_sc, stats_sc, acc_sc,
                         *, scale, window_left, tq, tk, group_heads, head_dim):
    qi = pl.program_id(2)
    ki = pl.program_id(3)
    bpq = tq // tk                           # kv blocks per q tile
    diag_block = (qi + 1) * bpq - 1          # last kv block this q tile touches

    # ---- per-q-tile init: stats, accumulator, pre-scaled q ------------------
    @pl.when(ki == 0)
    def _init():
        stats_sc[:, :, 0:1] = jnp.full((group_heads, tq, 1), NEG_INF, jnp.float32)
        stats_sc[:, :, 1:2] = jnp.zeros((group_heads, tq, 1), jnp.float32)
        acc_sc[...] = jnp.zeros_like(acc_sc)
        # Hoist the softmax scale out of the KV loop: scale q once per q tile.
        qs_sc[...] = (q_ref[...].astype(jnp.float32) * scale).astype(qs_sc.dtype)

    # ---- absolute KV block this step is *intended* to process (unclamped) ---
    if window_left >= 0:
        cw = -(-window_left // tk)                        # static ceil(w / tk)
        kv_abs = jnp.maximum(qi * bpq - cw, 0) + ki
    else:
        kv_abs = ki

    # Fully-masked edge blocks (intended block above the diagonal) are skipped.
    in_band = kv_abs <= diag_block

    # Block fully inside the causal + window band -> no mask work needed.
    causal_full = kv_abs * tk + (tk - 1) <= qi * tq
    if window_left >= 0:
        window_full = kv_abs * tk >= qi * tq + (tq - 1) - window_left
        no_mask = jnp.logical_and(causal_full, window_full)
    else:
        no_mask = causal_full

    D = head_dim

    def online_softmax_update(mask):
        for h in range(group_heads):                 # static unroll (G is small)
            sl = slice(h * D, (h + 1) * D)
            q = qs_sc[:, sl]                         # pre-scaled, bf16
            k = k_ref[:, sl]
            v = v_ref[:, sl]

            s = lax.dot_general(q, k, (((1,), (1,)), ((), ())),
                                preferred_element_type=jnp.float32)   # (tq, tk)
            if mask is not None:
                s = jnp.where(mask, s, NEG_INF)

            m_prev = stats_sc[h, :, 0:1]             # (tq, 1)
            l_prev = stats_sc[h, :, 1:2]
            m_new = jnp.maximum(m_prev, s.max(axis=-1, keepdims=True))
            alpha = jnp.exp(m_prev - m_new)
            # exp(NEG_INF - m_new) == 0 exactly in f32, so masked entries add
            # nothing; rows that are still fully masked in this block are
            # annihilated later by alpha == 0 once their real keys arrive
            # (every row attends at least k == q inside the visited band).
            p = jnp.exp(s - m_new)                   # (tq, tk)
            stats_sc[h, :, 1:2] = alpha * l_prev + p.sum(axis=-1, keepdims=True)
            acc_sc[h] = alpha * acc_sc[h] + lax.dot_general(
                p.astype(v.dtype), v, (((1,), (0,)), ((), ())),
                preferred_element_type=jnp.float32)
            stats_sc[h, :, 0:1] = m_new

    # Fast path: block entirely inside the band -> no iota / compare / select.
    @pl.when(jnp.logical_and(in_band, no_mask))
    def _unmasked():
        online_softmax_update(None)

    # Slow path: block crosses the causal or window boundary.
    @pl.when(jnp.logical_and(in_band, jnp.logical_not(no_mask)))
    def _masked():
        q_idx = qi * tq + lax.broadcasted_iota(jnp.int32, (tq, 1), 0)
        k_idx = kv_abs * tk + lax.broadcasted_iota(jnp.int32, (1, tk), 1)
        mask = k_idx <= q_idx                        # broadcasts to (tq, tk)
        if window_left >= 0:
            mask = jnp.logical_and(mask, (q_idx - k_idx) <= window_left)
        online_softmax_update(mask)

    # ---- finalize: one lane-dense, full-width store per q tile --------------
    @pl.when(ki == pl.num_programs(3) - 1)
    def _finalize():
        outs = []
        for h in range(group_heads):
            inv_l = pl.reciprocal(stats_sc[h, :, 1:2], approx=True)  # EUP slot
            outs.append((acc_sc[h] * inv_l).astype(o_ref.dtype))
        o_ref[...] = outs[0] if group_heads == 1 else jnp.concatenate(outs, axis=-1)


def _vmem_bytes(tq, tk, gd, g, d, dtype_bytes=2):
    """Rough per-step VMEM footprint (pipeline buffers + scratch)."""
    pipeline = 2 * tq * gd * dtype_bytes            # q  (double-buffered)
    pipeline += 2 * 2 * tk * gd * dtype_bytes       # k, v (double-buffered)
    pipeline += 2 * tq * gd * dtype_bytes           # out (double-buffered)
    scratch = tq * gd * dtype_bytes                 # pre-scaled q
    scratch += g * tq * 128 * 4                     # m/l stats (lane padded)
    scratch += g * tq * max(d, 128) * 4             # f32 accumulator (lane padded)
    return pipeline + scratch


def _pick_head_group(H, D, tq, tk, budget_bytes=_HEAD_GROUP_VMEM_BUDGET):
    """Largest G with G | H and G*D % 128 == 0 whose footprint fits the budget."""
    cands = [g for g in range(1, H + 1) if H % g == 0 and (g * D) % 128 == 0]
    assert cands, f"no head grouping with G*D % 128 == 0 exists for H={H}, D={D}"
    best = cands[0]
    for g in cands:                                  # ascending; keep last that fits
        if _vmem_bytes(tq, tk, g * D, g, D) <= budget_bytes:
            best = g
    return best


def flash_self_attention(qkv, *, window_size=(16, 0), softmax_scale=None,
                         tq=128, tk=128):
    """Pallas equivalent of FlashSelfAttention.forward (padded path).

    qkv: (B, S, 3, H, D). Returns (B, S, H, D) in qkv.dtype.
    tq/tk: query / key tile sizes.  tq = tk = 128 is the right default for
    small sliding windows; only raise tq for large windows / causal-only runs.
    """
    in_dtype = qkv.dtype
    B, S, three, H, D = qkv.shape
    assert three == 3

    if softmax_scale is None:
        softmax_scale = 1.0 / math.sqrt(D)
    window_left = -1 if window_size is None else int(window_size[0])

    # Compute in bf16 (MXU/VPU native); fp16 inputs are converted too.
    if qkv.dtype != jnp.bfloat16:
        qkv = qkv.astype(jnp.bfloat16)

    tq = min(tq, S)
    tk = min(tk, S)
    assert S % tq == 0 and S % tk == 0 and tq % tk == 0
    assert tq % 8 == 0 and tk % 8 == 0

    G = _pick_head_group(H, D, tq, tk)               # heads per grid step
    GD = G * D
    HGn = H // G                                      # number of head groups
    HD = H * D

    # Free reshape (no data movement): last-axis blocks of width GD are
    #   [0, HGn)        -> q head groups
    #   [HGn, 2*HGn)    -> k head groups
    #   [2*HGn, 3*HGn)  -> v head groups
    qkv_flat = qkv.reshape(B, S, 3 * HD)

    bpq = tq // tk
    num_q = S // tq
    num_kv_total = S // tk

    if window_left >= 0:
        cw = -(-window_left // tk)                    # ceil(window / tk)
        nkv = min(bpq + cw, num_kv_total)             # static band width

        def kv_block(qi, ki):
            lo = jnp.maximum(qi * bpq - cw, 0)
            # Clamp to the diagonal block: gated-out edge steps keep the same
            # block index, so Pallas elides their k/v re-DMA entirely.
            return jnp.minimum(lo + ki, (qi + 1) * bpq - 1)
    else:
        nkv = num_kv_total

        def kv_block(qi, ki):
            return jnp.minimum(ki, (qi + 1) * bpq - 1)

    kernel = functools.partial(_flash_window_kernel,
                               scale=softmax_scale, window_left=window_left,
                               tq=tq, tk=tk, group_heads=G, head_dim=D)

    est = _vmem_bytes(tq, tk, GD, G, D)
    vmem_limit = int(min(max(est * 3 // 2 + (2 << 20), 32 << 20), 64 << 20))

    out = pl.pallas_call(
        kernel,
        out_shape=jax.ShapeDtypeStruct((B, S, HD), qkv.dtype),
        grid_spec=pltpu.PrefetchScalarGridSpec(
            num_scalar_prefetch=0,
            grid=(B, HGn, num_q, nkv),
            in_specs=[
                # q: one head group of the query tile (resident across ki)
                pl.BlockSpec((None, tq, GD),
                             lambda b, hg, qi, ki: (b, qi, hg)),
                # k / v: band-restricted KV tile for the same head group
                pl.BlockSpec((None, tk, GD),
                             lambda b, hg, qi, ki: (b, kv_block(qi, ki), HGn + hg)),
                pl.BlockSpec((None, tk, GD),
                             lambda b, hg, qi, ki: (b, kv_block(qi, ki), 2 * HGn + hg)),
                # TODO(synk): pipeline_mode=pl.Buffered(3) on k/v could hide DMA
                # jitter at q-tile transitions once validated on this jax build.
            ],
            out_specs=pl.BlockSpec((None, tq, GD),
                                   lambda b, hg, qi, ki: (b, qi, hg)),
            scratch_shapes=[
                pltpu.VMEM((tq, GD), qkv.dtype),       # pre-scaled q (bf16)
                pltpu.VMEM((G, tq, 2), jnp.float32),   # m (lane 0) / l (lane 1)
                pltpu.VMEM((G, tq, D), jnp.float32),   # f32 accumulator
            ],
        ),
        compiler_params=pltpu.CompilerParams(
            dimension_semantics=("parallel", "parallel", "parallel", "arbitrary"),
            vmem_limit_bytes=vmem_limit),
    )(qkv_flat, qkv_flat, qkv_flat)

    # (B, S, H*D) -> (B, S, H, D) is a free reshape (no transpose).
    return out.reshape(B, S, H, D).astype(in_dtype)
    # TODO(synk): varlen (cu_seqlens) path and training-time dropout are not
    # implemented (module is used here with attention_dropout=0.0, padded path).


def _reference(qkv, *, window_size=(16, 0), softmax_scale=None):
    """Plain-JAX reference for correctness checking (bf16 inputs, f32 math)."""
    in_dtype = qkv.dtype
    B, S, _, H, D = qkv.shape
    if softmax_scale is None:
        softmax_scale = 1.0 / math.sqrt(D)
    window_left = -1 if window_size is None else int(window_size[0])

    qkv_b = qkv.astype(jnp.bfloat16)
    q = qkv_b[:, :, 0].astype(jnp.float32)  # (B, S, H, D)
    k = qkv_b[:, :, 1].astype(jnp.float32)
    v = qkv_b[:, :, 2].astype(jnp.float32)

    s = jnp.einsum('bqhd,bkhd->bhqk', q, k) * softmax_scale
    q_idx = jnp.arange(S)[:, None]
    k_idx = jnp.arange(S)[None, :]
    mask = k_idx <= q_idx
    if window_left >= 0:
        mask = mask & ((q_idx - k_idx) <= window_left)
    s = jnp.where(mask[None, None], s, -jnp.inf)
    p = jax.nn.softmax(s, axis=-1)
    out = jnp.einsum('bhqk,bkhd->bqhd', p, v)
    return out.astype(jnp.bfloat16).astype(in_dtype)


if __name__ == "__main__":
    key = jax.random.PRNGKey(0)
    B, S, H, D = 2, 256, 2, 64
    qkv = jax.random.normal(key, (B, S, 3, H, D), dtype=jnp.float32)

    # (16, 0): small window (masked path + clamped edge-block gating)
    # (130, 0): window spanning > one kv tile (cw = 2)
    # None: causal-only (band-restricted diag clamp + unmasked fast path)
    for window_size in [(16, 0), (130, 0), None]:
        out = flash_self_attention(qkv, window_size=window_size)
        out = jax.block_until_ready(out)
        ref = _reference(qkv, window_size=window_size)
        assert out.shape == (B, S, H, D), out.shape
        assert out.dtype == qkv.dtype, out.dtype
        err = jnp.max(jnp.abs(out - ref))
        if not bool(err < 5e-2):
            raise AssertionError(
                f"mismatch vs reference (window={window_size}), max abs err = {err}")

    print("KERNEL_OK")
</pallas_src>

<mosaic_0001>
module attributes {stable_mosaic.version = 11 : i64} {
  func.func @_flash_window_kernel(%arg0: i32, %arg1: i32, %arg2: i32, %arg3: i32, %arg4: memref<1x128x128xbf16, #tpu.memory_space<vmem>>, %arg5: memref<1x128x128xbf16, #tpu.memory_space<vmem>>, %arg6: memref<1x128x128xbf16, #tpu.memory_space<vmem>>, %arg7: memref<1x128x128xbf16, #tpu.memory_space<vmem>>, %arg8: memref<128x128xbf16, #tpu.memory_space<vmem>>, %arg9: memref<2x128x2xf32, #tpu.memory_space<vmem>>, %arg10: memref<2x128x64xf32, #tpu.memory_space<vmem>>) attributes {dimension_semantics = [#tpu.dimension_semantics<parallel>, #tpu.dimension_semantics<parallel>, #tpu.dimension_semantics<parallel>, #tpu.dimension_semantics<arbitrary>], iteration_bounds = array<i64: 2, 1, 2, 2>, scalar_prefetch = 0 : i64, scratch_operands = 3 : i64, tpu.core_type = #tpu.core_type<tc>, window_params = [{transform_indices = @transform_0, window_bounds = array<i64: 1, 128, 128>}, {transform_indices = @transform_1, window_bounds = array<i64: 1, 128, 128>}, {transform_indices = @transform_2, window_bounds = array<i64: 1, 128, 128>}, {transform_indices = @transform_3, window_bounds = array<i64: 1, 128, 128>}]} {
    %c1_i32 = arith.constant 1 : i32
    %0 = arith.addi %arg2, %c1_i32 : i32
    %c1_i32_0 = arith.constant 1 : i32
    %1 = arith.muli %0, %c1_i32_0 : i32
    %c1_i32_1 = arith.constant 1 : i32
    %2 = arith.subi %1, %c1_i32_1 : i32
    %c0_i32 = arith.constant 0 : i32
    %3 = arith.cmpi eq, %arg3, %c0_i32 : i32
    %4 = arith.extui %3 : i1 to i32
    %c0_i32_2 = arith.constant 0 : i32
    %5 = arith.cmpi ne, %4, %c0_i32_2 : i32
    scf.if %5 {
      %cst = arith.constant -1.000000e+30 : f32
      %31 = vector.broadcast %cst : f32 to vector<2x128x1xf32>
      %c0 = arith.constant 0 : index
      %c0_14 = arith.constant 0 : index
      %c0_15 = arith.constant 0 : index
      %32 = vector.load %arg9[%c0, %c0_14, %c0_15] : memref<2x128x2xf32, #tpu.memory_space<vmem>>, vector<2x128x1xf32>
      tpu.vector_store %arg9[%c0, %c0_14, %c0_15], %31 {strides = array<i32>} : memref<2x128x2xf32, #tpu.memory_space<vmem>>, vector<2x128x1xf32>,
      %cst_16 = arith.constant 0.000000e+00 : f32
      %33 = vector.broadcast %cst_16 : f32 to vector<2x128x1xf32>
      %c0_17 = arith.constant 0 : index
      %c0_18 = arith.constant 0 : index
      %c1 = arith.constant 1 : index
      %34 = vector.load %arg9[%c0_17, %c0_18, %c1] : memref<2x128x2xf32, #tpu.memory_space<vmem>>, vector<2x128x1xf32>
      tpu.vector_store %arg9[%c0_17, %c0_18, %c1], %33 {strides = array<i32>} : memref<2x128x2xf32, #tpu.memory_space<vmem>>, vector<2x128x1xf32>,
      %cst_19 = arith.constant 0.000000e+00 : f32
      %35 = vector.broadcast %cst_19 : f32 to vector<2x128x64xf32>
      %c0_20 = arith.constant 0 : index
      %c0_21 = arith.constant 0 : index
      %c0_22 = arith.constant 0 : index
      %36 = vector.load %arg10[%c0_20, %c0_21, %c0_22] : memref<2x128x64xf32, #tpu.memory_space<vmem>>, vector<2x128x64xf32>
      tpu.vector_store %arg10[%c0_20, %c0_21, %c0_22], %35 {strides = array<i32>} : memref<2x128x64xf32, #tpu.memory_space<vmem>>, vector<2x128x64xf32>,
      %c0_23 = arith.constant 0 : index
      %c0_24 = arith.constant 0 : index
      %c0_25 = arith.constant 0 : index
      %37 = vector.load %arg4[%c0_23, %c0_24, %c0_25] : memref<1x128x128xbf16, #tpu.memory_space<vmem>>, vector<1x128x128xbf16>
      %38 = vector.shape_cast %37 : vector<1x128x128xbf16> to vector<128x128xbf16>
      %39 = arith.extf %38 : vector<128x128xbf16> to vector<128x128xf32>
      %cst_26 = arith.constant 1.250000e-01 : f32
      %40 = vector.broadcast %cst_26 : f32 to vector<128x128xf32>
      %41 = arith.mulf %39, %40 : vector<128x128xf32>
      %42 = arith.truncf %41 : vector<128x128xf32> to vector<128x128xbf16>
      %c0_27 = arith.constant 0 : index
      %c0_28 = arith.constant 0 : index
      %43 = vector.load %arg8[%c0_27, %c0_28] : memref<128x128xbf16, #tpu.memory_space<vmem>>, vector<128x128xbf16>
      tpu.vector_store %arg8[%c0_27, %c0_28], %42 {strides = array<i32>} : memref<128x128xbf16, #tpu.memory_space<vmem>>, vector<128x128xbf16>,
    } else {
    }
    %c1_i32_3 = arith.constant 1 : i32
    %6 = arith.muli %arg2, %c1_i32_3 : i32
    %c1_i32_4 = arith.constant 1 : i32
    %7 = arith.subi %6, %c1_i32_4 : i32
    %c0_i32_5 = arith.constant 0 : i32
    %8 = arith.maxsi %7, %c0_i32_5 : i32
    %9 = arith.addi %8, %arg3 : i32
    %10 = arith.cmpi sle, %9, %2 : i32
    %c128_i32 = arith.constant 128 : i32
    %11 = arith.muli %9, %c128_i32 : i32
    %c127_i32 = arith.constant 127 : i32
    %12 = arith.addi %11, %c127_i32 : i32
    %c128_i32_6 = arith.constant 128 : i32
    %13 = arith.muli %arg2, %c128_i32_6 : i32
    %14 = arith.cmpi sle, %12, %13 : i32
    %c128_i32_7 = arith.constant 128 : i32
    %15 = arith.muli %9, %c128_i32_7 : i32
    %c128_i32_8 = arith.constant 128 : i32
    %16 = arith.muli %arg2, %c128_i32_8 : i32
    %c127_i32_9 = arith.constant 127 : i32
    %17 = arith.addi %16, %c127_i32_9 : i32
    %c16_i32 = arith.constant 16 : i32
    %18 = arith.subi %17, %c16_i32 : i32
    %19 = arith.cmpi sge, %15, %18 : i32
    %20 = arith.andi %14, %19 : i1
    %21 = arith.andi %10, %20 : i1
    %22 = arith.extui %21 : i1 to i32
    %c0_i32_10 = arith.constant 0 : i32
    %23 = arith.cmpi ne, %22, %c0_i32_10 : i32
    scf.if %23 {
      %c0 = arith.constant 0 : index
      %c0_14 = arith.constant 0 : index
      %31 = vector.load %arg8[%c0, %c0_14] : memref<128x128xbf16, #tpu.memory_space<vmem>>, vector<128x64xbf16>
      %c0_15 = arith.constant 0 : index
      %c0_16 = arith.constant 0 : index
      %c0_17 = arith.constant 0 : index
      %32 = vector.load %arg5[%c0_15, %c0_16, %c0_17] : memref<1x128x128xbf16, #tpu.memory_space<vmem>>, vector<1x128x64xbf16>
      %33 = vector.shape_cast %32 : vector<1x128x64xbf16> to vector<128x64xbf16>
      %c0_18 = arith.constant 0 : index
      %c0_19 = arith.constant 0 : index
      %c0_20 = arith.constant 0 : index
      %34 = vector.load %arg6[%c0_18, %c0_19, %c0_20] : memref<1x128x128xbf16, #tpu.memory_space<vmem>>, vector<1x128x64xbf16>
      %35 = vector.shape_cast %34 : vector<1x128x64xbf16> to vector<128x64xbf16>
      %cst = arith.constant dense<0.000000e+00> : vector<128x128xf32>
      %36 = tpu.matmul %31, %33, %cst {dimension_numbers = #tpu.dot_dimension_numbers<[1], [1], [0], [0], [0, 0, 1, 0], [], []>} : vector<128x64xbf16>, vector<128x64xbf16>, vector<128x128xf32> -> vector<128x128xf32>
      %c0_21 = arith.constant 0 : index
      %c0_22 = arith.constant 0 : index
      %c0_23 = arith.constant 0 : index
      %37 = vector.load %arg9[%c0_21, %c0_22, %c0_23] : memref<2x128x2xf32, #tpu.memory_space<vmem>>, vector<1x128x1xf32>
      %38 = vector.shape_cast %37 : vector<1x128x1xf32> to vector<128x1xf32>
      %c0_24 = arith.constant 0 : index
      %c0_25 = arith.constant 0 : index
      %c1 = arith.constant 1 : index
      %39 = vector.load %arg9[%c0_24, %c0_25, %c1] : memref<2x128x2xf32, #tpu.memory_space<vmem>>, vector<1x128x1xf32>
      %40 = vector.shape_cast %39 : vector<1x128x1xf32> to vector<128x1xf32>
      %cst_26 = arith.constant dense<0xFF800000> : vector<128xf32>
      %41 = vector.multi_reduction <maximumf>, %36, %cst_26 [1] : vector<128x128xf32> to vector<128xf32>
      %42 = vector.shape_cast %41 : vector<128xf32> to vector<128x1xf32>
      %43 = arith.maximumf %38, %42 : vector<128x1xf32>
      %44 = arith.subf %38, %43 : vector<128x1xf32>
      %45 = math.exp %44 : vector<128x1xf32>
      %46 = vector.broadcast %43 : vector<128x1xf32> to vector<128x128xf32>
      %47 = arith.subf %36, %46 : vector<128x128xf32>
      %48 = math.exp %47 : vector<128x128xf32>
      %49 = arith.mulf %45, %40 : vector<128x1xf32>
      %cst_27 = arith.constant dense<0.000000e+00> : vector<128xf32>
      %50 = vector.multi_reduction <add>, %48, %cst_27 [1] : vector<128x128xf32> to vector<128xf32>
      %51 = vector.shape_cast %50 : vector<128xf32> to vector<128x1xf32>
      %52 = arith.addf %49, %51 : vector<128x1xf32>
      %c0_28 = arith.constant 0 : index
      %c0_29 = arith.constant 0 : index
      %c1_30 = arith.constant 1 : index
      %53 = vector.load %arg9[%c0_28, %c0_29, %c1_30] : memref<2x128x2xf32, #tpu.memory_space<vmem>>, vector<1x128x1xf32>
      %54 = vector.shape_cast %53 : vector<1x128x1xf32> to vector<128x1xf32>
      %55 = vector.shape_cast %52 : vector<128x1xf32> to vector<1x128x1xf32>
      tpu.vector_store %arg9[%c0_28, %c0_29, %c1_30], %55 {strides = array<i32>} : memref<2x128x2xf32, #tpu.memory_space<vmem>>, vector<1x128x1xf32>,
      %c0_31 = arith.constant 0 : index
      %c0_32 = arith.constant 0 : index
      %c0_33 = arith.constant 0 : index
      %56 = vector.load %arg10[%c0_31, %c0_32, %c0_33] : memref<2x128x64xf32, #tpu.memory_space<vmem>>, vector<1x128x64xf32>
      %57 = vector.shape_cast %56 : vector<1x128x64xf32> to vector<128x64xf32>
      %58 = vector.broadcast %45 : vector<128x1xf32> to vector<128x64xf32>
      %59 = arith.mulf %58, %57 : vector<128x64xf32>
      %60 = arith.truncf %48 : vector<128x128xf32> to vector<128x128xbf16>
      %cst_34 = arith.constant dense<0.000000e+00> : vector<128x64xf32>
      %61 = tpu.matmul %60, %35, %cst_34 {dimension_numbers = #tpu.dot_dimension_numbers<[1], [0], [0], [1], [0, 0, 1, 1], [], []>} : vector<128x128xbf16>, vector<128x64xbf16>, vector<128x64xf32> -> vector<128x64xf32>
      %62 = arith.addf %59, %61 : vector<128x64xf32>
      %c0_35 = arith.constant 0 : index
      %c0_36 = arith.constant 0 : index
      %c0_37 = arith.constant 0 : index
      %63 = vector.load %arg10[%c0_35, %c0_36, %c0_37] : memref<2x128x64xf32, #tpu.memory_space<vmem>>, vector<1x128x64xf32>
      %64 = vector.shape_cast %63 : vector<1x128x64xf32> to vector<128x64xf32>
      %65 = vector.shape_cast %62 : vector<128x64xf32> to vector<1x128x64xf32>
      tpu.vector_store %arg10[%c0_35, %c0_36, %c0_37], %65 {strides = array<i32>} : memref<2x128x64xf32, #tpu.memory_space<vmem>>, vector<1x128x64xf32>,
      %c0_38 = arith.constant 0 : index
      %c0_39 = arith.constant 0 : index
      %c0_40 = arith.constant 0 : index
      %66 = vector.load %arg9[%c0_38, %c0_39, %c0_40] : memref<2x128x2xf32, #tpu.memory_space<vmem>>, vector<1x128x1xf32>
      %67 = vector.shape_cast %66 : vector<1x128x1xf32> to vector<128x1xf32>
      %68 = vector.shape_cast %43 : vector<128x1xf32> to vector<1x128x1xf32>
      tpu.vector_store %arg9[%c0_38, %c0_39, %c0_40], %68 {strides = array<i32>} : memref<2x128x2xf32, #tpu.memory_space<vmem>>, vector<1x128x1xf32>,
      %c0_41 = arith.constant 0 : index
      %c64 = arith.constant 64 : index
      %69 = vector.load %arg8[%c0_41, %c64] : memref<128x128xbf16, #tpu.memory_space<vmem>>, vector<128x64xbf16>
      %c0_42 = arith.constant 0 : index
      %c0_43 = arith.constant 0 : index
      %c64_44 = arith.constant 64 : index
      %70 = vector.load %arg5[%c0_42, %c0_43, %c64_44] : memref<1x128x128xbf16, #tpu.memory_space<vmem>>, vector<1x128x64xbf16>
      %71 = vector.shape_cast %70 : vector<1x128x64xbf16> to vector<128x64xbf16>
      %c0_45 = arith.constant 0 : index
      %c0_46 = arith.constant 0 : index
      %c64_47 = arith.constant 64 : index
      %72 = vector.load %arg6[%c0_45, %c0_46, %c64_47] : memref<1x128x128xbf16, #tpu.memory_space<vmem>>, vector<1x128x64xbf16>
      %73 = vector.shape_cast %72 : vector<1x128x64xbf16> to vector<128x64xbf16>
      %cst_48 = arith.constant dense<0.000000e+00> : vector<128x128xf32>
      %74 = tpu.matmul %69, %71, %cst_48 {dimension_numbers = #tpu.dot_dimension_numbers<[1], [1], [0], [0], [0, 0, 1, 0], [], []>} : vector<128x64xbf16>, vector<128x64xbf16>, vector<128x128xf32> -> vector<128x128xf32>
      %c1_49 = arith.constant 1 : index
      %c0_50 = arith.constant 0 : index
      %c0_51 = arith.constant 0 : index
      %75 = vector.load %arg9[%c1_49, %c0_50, %c0_51] : memref<2x128x2xf32, #tpu.memory_space<vmem>>, vector<1x128x1xf32>
      %76 = vector.shape_cast %75 : vector<1x128x1xf32> to vector<128x1xf32>
      %c1_52 = arith.constant 1 : index
      %c0_53 = arith.constant 0 : index
      %c1_54 = arith.constant 1 : index
      %77 = vector.load %arg9[%c1_52, %c0_53, %c1_54] : memref<2x128x2xf32, #tpu.memory_space<vmem>>, vector<1x128x1xf32>
      %78 = vector.shape_cast %77 : vector<1x128x1xf32> to vector<128x1xf32>
      %cst_55 = arith.constant dense<0xFF800000> : vector<128xf32>
      %79 = vector.multi_reduction <maximumf>, %74, %cst_55 [1] : vector<128x128xf32> to vector<128xf32>
      %80 = vector.shape_cast %79 : vector<128xf32> to vector<128x1xf32>
      %81 = arith.maximumf %76, %80 : vector<128x1xf32>
      %82 = arith.subf %76, %81 : vector<128x1xf32>
      %83 = math.exp %82 : vector<128x1xf32>
      %84 = vector.broadcast %81 : vector<128x1xf32> to vector<128x128xf32>
      %85 = arith.subf %74, %84 : vector<128x128xf32>
      %86 = math.exp %85 : vector<128x128xf32>
      %87 = arith.mulf %83, %78 : vector<128x1xf32>
      %cst_56 = arith.constant dense<0.000000e+00> : vector<128xf32>
      %88 = vector.multi_reduction <add>, %86, %cst_56 [1] : vector<128x128xf32> to vector<128xf32>
      %89 = vector.shape_cast %88 : vector<128xf32> to vector<128x1xf32>
      %90 = arith.addf %87, %89 : vector<128x1xf32>
      %c1_57 = arith.constant 1 : index
      %c0_58 = arith.constant 0 : index
      %c1_59 = arith.constant 1 : index
      %91 = vector.load %arg9[%c1_57, %c0_58, %c1_59] : memref<2x128x2xf32, #tpu.memory_space<vmem>>, vector<1x128x1xf32>
      %92 = vector.shape_cast %91 : vector<1x128x1xf32> to vector<128x1xf32>
      %93 = vector.shape_cast %90 : vector<128x1xf32> to vector<1x128x1xf32>
      tpu.vector_store %arg9[%c1_57, %c0_58, %c1_59], %93 {strides = array<i32>} : memref<2x128x2xf32, #tpu.memory_space<vmem>>, vector<1x128x1xf32>,
      %c1_60 = arith.constant 1 : index
      %c0_61 = arith.constant 0 : index
      %c0_62 = arith.constant 0 : index
      %94 = vector.load %arg10[%c1_60, %c0_61, %c0_62] : memref<2x128x64xf32, #tpu.memory_space<vmem>>, vector<1x128x64xf32>
      %95 = vector.shape_cast %94 : vector<1x128x64xf32> to vector<128x64xf32>
      %96 = vector.broadcast %83 : vector<128x1xf32> to vector<128x64xf32>
      %97 = arith.mulf %96, %95 : vector<128x64xf32>
      %98 = arith.truncf %86 : vector<128x128xf32> to vector<128x128xbf16>
      %cst_63 = arith.constant dense<0.000000e+00> : vector<128x64xf32>
      %99 = tpu.matmul %98, %73, %cst_63 {dimension_numbers = #tpu.dot_dimension_numbers<[1], [0], [0], [1], [0, 0, 1, 1], [], []>} : vector<128x128xbf16>, vector<128x64xbf16>, vector<128x64xf32> -> vector<128x64xf32>
      %100 = arith.addf %97, %99 : vector<128x64xf32>
      %c1_64 = arith.constant 1 : index
      %c0_65 = arith.constant 0 : index
      %c0_66 = arith.constant 0 : index
      %101 = vector.load %arg10[%c1_64, %c0_65, %c0_66] : memref<2x128x64xf32, #tpu.memory_space<vmem>>, vector<1x128x64xf32>
      %102 = vector.shape_cast %101 : vector<1x128x64xf32> to vector<128x64xf32>
      %103 = vector.shape_cast %100 : vector<128x64xf32> to vector<1x128x64xf32>
      tpu.vector_store %arg10[%c1_64, %c0_65, %c0_66], %103 {strides = array<i32>} : memref<2x128x64xf32, #tpu.memory_space<vmem>>, vector<1x128x64xf32>,
      %c1_67 = arith.constant 1 : index
      %c0_68 = arith.constant 0 : index
      %c0_69 = arith.constant 0 : index
      %104 = vector.load %arg9[%c1_67, %c0_68, %c0_69] : memref<2x128x2xf32, #tpu.memory_space<vmem>>, vector<1x128x1xf32>
      %105 = vector.shape_cast %104 : vector<1x128x1xf32> to vector<128x1xf32>
      %106 = vector.shape_cast %81 : vector<128x1xf32> to vector<1x128x1xf32>
      tpu.vector_store %arg9[%c1_67, %c0_68, %c0_69], %106 {strides = array<i32>} : memref<2x128x2xf32, #tpu.memory_space<vmem>>, vector<1x128x1xf32>,
    } else {
    }
    %true = arith.constant true
    %24 = arith.xori %20, %true : i1
    %25 = arith.andi %10, %24 : i1
    %26 = arith.extui %25 : i1 to i32
    %c0_i32_11 = arith.constant 0 : i32
    %27 = arith.cmpi ne, %26, %c0_i32_11 : i32
    scf.if %27 {
      %c128_i32_14 = arith.constant 128 : i32
      %31 = arith.muli %arg2, %c128_i32_14 : i32
      %32 = tpu.iota {dimensions = array<i32: 0>} : vector<128x1xi32>
      %33 = vector.broadcast %31 : i32 to vector<128x1xi32>
      %34 = arith.addi %33, %32 : vector<128x1xi32>
      %c128_i32_15 = arith.constant 128 : i32
      %35 = arith.muli %9, %c128_i32_15 : i32
      %36 = tpu.iota {dimensions = array<i32: 1>} : vector<1x128xi32>
      %37 = vector.broadcast %35 : i32 to vector<1x128xi32>
      %38 = arith.addi %37, %36 : vector<1x128xi32>
      %39 = vector.broadcast %38 : vector<1x128xi32> to vector<128x128xi32>
      %40 = vector.broadcast %34 : vector<128x1xi32> to vector<128x128xi32>
      %41 = arith.cmpi sle, %39, %40 : vector<128x128xi32>
      %42 = vector.broadcast %34 : vector<128x1xi32> to vector<128x128xi32>
      %43 = vector.broadcast %38 : vector<1x128xi32> to vector<128x128xi32>
      %44 = arith.subi %42, %43 : vector<128x128xi32>
      %c16_i32_16 = arith.constant 16 : i32
      %45 = vector.broadcast %c16_i32_16 : i32 to vector<128x128xi32>
      %46 = arith.cmpi sle, %44, %45 : vector<128x128xi32>
      %47 = arith.andi %41, %46 : vector<128x128xi1>
      %c0 = arith.constant 0 : index
      %c0_17 = arith.constant 0 : index
      %48 = vector.load %arg8[%c0, %c0_17] : memref<128x128xbf16, #tpu.memory_space<vmem>>, vector<128x64xbf16>
      %c0_18 = arith.constant 0 : index
      %c0_19 = arith.constant 0 : index
      %c0_20 = arith.constant 0 : index
      %49 = vector.load %arg5[%c0_18, %c0_19, %c0_20] : memref<1x128x128xbf16, #tpu.memory_space<vmem>>, vector<1x128x64xbf16>
      %50 = vector.shape_cast %49 : vector<1x128x64xbf16> to vector<128x64xbf16>
      %c0_21 = arith.constant 0 : index
      %c0_22 = arith.constant 0 : index
      %c0_23 = arith.constant 0 : index
      %51 = vector.load %arg6[%c0_21, %c0_22, %c0_23] : memref<1x128x128xbf16, #tpu.memory_space<vmem>>, vector<1x128x64xbf16>
      %52 = vector.shape_cast %51 : vector<1x128x64xbf16> to vector<128x64xbf16>
      %cst = arith.constant dense<0.000000e+00> : vector<128x128xf32>
      %53 = tpu.matmul %48, %50, %cst {dimension_numbers = #tpu.dot_dimension_numbers<[1], [1], [0], [0], [0, 0, 1, 0], [], []>} : vector<128x64xbf16>, vector<128x64xbf16>, vector<128x128xf32> -> vector<128x128xf32>
      %cst_24 = arith.constant -1.000000e+30 : f32
      %54 = vector.broadcast %cst_24 : f32 to vector<128x128xf32>
      %55 = arith.select %47, %53, %54 : vector<128x128xi1>, vector<128x128xf32>
      %c0_25 = arith.constant 0 : index
      %c0_26 = arith.constant 0 : index
      %c0_27 = arith.constant 0 : index
      %56 = vector.load %arg9[%c0_25, %c0_26, %c0_27] : memref<2x128x2xf32, #tpu.memory_space<vmem>>, vector<1x128x1xf32>
      %57 = vector.shape_cast %56 : vector<1x128x1xf32> to vector<128x1xf32>
      %c0_28 = arith.constant 0 : index
      %c0_29 = arith.constant 0 : index
      %c1 = arith.constant 1 : index
      %58 = vector.load %arg9[%c0_28, %c0_29, %c1] : memref<2x128x2xf32, #tpu.memory_space<vmem>>, vector<1x128x1xf32>
      %59 = vector.shape_cast %58 : vector<1x128x1xf32> to vector<128x1xf32>
      %cst_30 = arith.constant dense<0xFF800000> : vector<128xf32>
      %60 = vector.multi_reduction <maximumf>, %55, %cst_30 [1] : vector<128x128xf32> to vector<128xf32>
      %61 = vector.shape_cast %60 : vector<128xf32> to vector<128x1xf32>
      %62 = arith.maximumf %57, %61 : vector<128x1xf32>
      %63 = arith.subf %57, %62 : vector<128x1xf32>
      %64 = math.exp %63 : vector<128x1xf32>
      %65 = vector.broadcast %62 : vector<128x1xf32> to vector<128x128xf32>
      %66 = arith.subf %55, %65 : vector<128x128xf32>
      %67 = math.exp %66 : vector<128x128xf32>
      %68 = arith.mulf %64, %59 : vector<128x1xf32>
      %cst_31 = arith.constant dense<0.000000e+00> : vector<128xf32>
      %69 = vector.multi_reduction <add>, %67, %cst_31 [1] : vector<128x128xf32> to vector<128xf32>
      %70 = vector.shape_cast %69 : vector<128xf32> to vector<128x1xf32>
      %71 = arith.addf %68, %70 : vector<128x1xf32>
      %c0_32 = arith.constant 0 : index
      %c0_33 = arith.constant 0 : index
      %c1_34 = arith.constant 1 : index
      %72 = vector.load %arg9[%c0_32, %c0_33, %c1_34] : memref<2x128x2xf32, #tpu.memory_space<vmem>>, vector<1x128x1xf32>
      %73 = vector.shape_cast %72 : vector<1x128x1xf32> to vector<128x1xf32>
      %74 = vector.shape_cast %71 : vector<128x1xf32> to vector<1x128x1xf32>
      tpu.vector_store %arg9[%c0_32, %c0_33, %c1_34], %74 {strides = array<i32>} : memref<2x128x2xf32, #tpu.memory_space<vmem>>, vector<1x128x1xf32>,
      %c0_35 = arith.constant 0 : index
      %c0_36 = arith.constant 0 : index
      %c0_37 = arith.constant 0 : index
      %75 = vector.load %arg10[%c0_35, %c0_36, %c0_37] : memref<2x128x64xf32, #tpu.memory_space<vmem>>, vector<1x128x64xf32>
      %76 = vector.shape_cast %75 : vector<1x128x64xf32> to vector<128x64xf32>
      %77 = vector.broadcast %64 : vector<128x1xf32> to vector<128x64xf32>
      %78 = arith.mulf %77, %76 : vector<128x64xf32>
      %79 = arith.truncf %67 : vector<128x128xf32> to vector<128x128xbf16>
      %cst_38 = arith.constant dense<0.000000e+00> : vector<128x64xf32>
      %80 = tpu.matmul %79, %52, %cst_38 {dimension_numbers = #tpu.dot_dimension_numbers<[1], [0], [0], [1], [0, 0, 1, 1], [], []>} : vector<128x128xbf16>, vector<128x64xbf16>, vector<128x64xf32> -> vector<128x64xf32>
      %81 = arith.addf %78, %80 : vector<128x64xf32>
      %c0_39 = arith.constant 0 : index
      %c0_40 = arith.constant 0 : index
      %c0_41 = arith.constant 0 : index
      %82 = vector.load %arg10[%c0_39, %c0_40, %c0_41] : memref<2x128x64xf32, #tpu.memory_space<vmem>>, vector<1x128x64xf32>
      %83 = vector.shape_cast %82 : vector<1x128x64xf32> to vector<128x64xf32>
      %84 = vector.shape_cast %81 : vector<128x64xf32> to vector<1x128x64xf32>
      tpu.vector_store %arg10[%c0_39, %c0_40, %c0_41], %84 {strides = array<i32>} : memref<2x128x64xf32, #tpu.memory_space<vmem>>, vector<1x128x64xf32>,
      %c0_42 = arith.constant 0 : index
      %c0_43 = arith.constant 0 : index
      %c0_44 = arith.constant 0 : index
      %85 = vector.load %arg9[%c0_42, %c0_43, %c0_44] : memref<2x128x2xf32, #tpu.memory_space<vmem>>, vector<1x128x1xf32>
      %86 = vector.shape_cast %85 : vector<1x128x1xf32> to vector<128x1xf32>
      %87 = vector.shape_cast %62 : vector<128x1xf32> to vector<1x128x1xf32>
      tpu.vector_store %arg9[%c0_42, %c0_43, %c0_44], %87 {strides = array<i32>} : memref<2x128x2xf32, #tpu.memory_space<vmem>>, vector<1x128x1xf32>,
      %c0_45 = arith.constant 0 : index
      %c64 = arith.constant 64 : index
      %88 = vector.load %arg8[%c0_45, %c64] : memref<128x128xbf16, #tpu.memory_space<vmem>>, vector<128x64xbf16>
      %c0_46 = arith.constant 0 : index
      %c0_47 = arith.constant 0 : index
      %c64_48 = arith.constant 64 : index
      %89 = vector.load %arg5[%c0_46, %c0_47, %c64_48] : memref<1x128x128xbf16, #tpu.memory_space<vmem>>, vector<1x128x64xbf16>
      %90 = vector.shape_cast %89 : vector<1x128x64xbf16> to vector<128x64xbf16>
      %c0_49 = arith.constant 0 : index
      %c0_50 = arith.constant 0 : index
      %c64_51 = arith.constant 64 : index
      %91 = vector.load %arg6[%c0_49, %c0_50, %c64_51] : memref<1x128x128xbf16, #tpu.memory_space<vmem>>, vector<1x128x64xbf16>
      %92 = vector.shape_cast %91 : vector<1x128x64xbf16> to vector<128x64xbf16>
      %cst_52 = arith.constant dense<0.000000e+00> : vector<128x128xf32>
      %93 = tpu.matmul %88, %90, %cst_52 {dimension_numbers = #tpu.dot_dimension_numbers<[1], [1], [0], [0], [0, 0, 1, 0], [], []>} : vector<128x64xbf16>, vector<128x64xbf16>, vector<128x128xf32> -> vector<128x128xf32>
      %cst_53 = arith.constant -1.000000e+30 : f32
      %94 = vector.broadcast %cst_53 : f32 to vector<128x128xf32>
      %95 = arith.select %47, %93, %94 : vector<128x128xi1>, vector<128x128xf32>
      %c1_54 = arith.constant 1 : index
      %c0_55 = arith.constant 0 : index
      %c0_56 = arith.constant 0 : index
      %96 = vector.load %arg9[%c1_54, %c0_55, %c0_56] : memref<2x128x2xf32, #tpu.memory_space<vmem>>, vector<1x128x1xf32>
      %97 = vector.shape_cast %96 : vector<1x128x1xf32> to vector<128x1xf32>
      %c1_57 = arith.constant 1 : index
      %c0_58 = arith.constant 0 : index
      %c1_59 = arith.constant 1 : index
      %98 = vector.load %arg9[%c1_57, %c0_58, %c1_59] : memref<2x128x2xf32, #tpu.memory_space<vmem>>, vector<1x128x1xf32>
      %99 = vector.shape_cast %98 : vector<1x128x1xf32> to vector<128x1xf32>
      %cst_60 = arith.constant dense<0xFF800000> : vector<128xf32>
      %100 = vector.multi_reduction <maximumf>, %95, %cst_60 [1] : vector<128x128xf32> to vector<128xf32>
      %101 = vector.shape_cast %100 : vector<128xf32> to vector<128x1xf32>
      %102 = arith.maximumf %97, %101 : vector<128x1xf32>
      %103 = arith.subf %97, %102 : vector<128x1xf32>
      %104 = math.exp %103 : vector<128x1xf32>
      %105 = vector.broadcast %102 : vector<128x1xf32> to vector<128x128xf32>
      %106 = arith.subf %95, %105 : vector<128x128xf32>
      %107 = math.exp %106 : vector<128x128xf32>
      %108 = arith.mulf %104, %99 : vector<128x1xf32>
      %cst_61 = arith.constant dense<0.000000e+00> : vector<128xf32>
      %109 = vector.multi_reduction <add>, %107, %cst_61 [1] : vector<128x128xf32> to vector<128xf32>
      %110 = vector.shape_cast %109 : vector<128xf32> to vector<128x1xf32>
      %111 = arith.addf %108, %110 : vector<128x1xf32>
      %c1_62 = arith.constant 1 : index
      %c0_63 = arith.constant 0 : index
      %c1_64 = arith.constant 1 : index
      %112 = vector.load %arg9[%c1_62, %c0_63, %c1_64] : memref<2x128x2xf32, #tpu.memory_space<vmem>>, vector<1x128x1xf32>
      %113 = vector.shape_cast %112 : vector<1x128x1xf32> to vector<128x1xf32>
      %114 = vector.shape_cast %111 : vector<128x1xf32> to vector<1x128x1xf32>
      tpu.vector_store %arg9[%c1_62, %c0_63, %c1_64], %114 {strides = array<i32>} : memref<2x128x2xf32, #tpu.memory_space<vmem>>, vector<1x128x1xf32>,
      %c1_65 = arith.constant 1 : index
      %c0_66 = arith.constant 0 : index
      %c0_67 = arith.constant 0 : index
      %115 = vector.load %arg10[%c1_65, %c0_66, %c0_67] : memref<2x128x64xf32, #tpu.memory_space<vmem>>, vector<1x128x64xf32>
      %116 = vector.shape_cast %115 : vector<1x128x64xf32> to vector<128x64xf32>
      %117 = vector.broadcast %104 : vector<128x1xf32> to vector<128x64xf32>
      %118 = arith.mulf %117, %116 : vector<128x64xf32>
      %119 = arith.truncf %107 : vector<128x128xf32> to vector<128x128xbf16>
      %cst_68 = arith.constant dense<0.000000e+00> : vector<128x64xf32>
      %120 = tpu.matmul %119, %92, %cst_68 {dimension_numbers = #tpu.dot_dimension_numbers<[1], [0], [0], [1], [0, 0, 1, 1], [], []>} : vector<128x128xbf16>, vector<128x64xbf16>, vector<128x64xf32> -> vector<128x64xf32>
      %121 = arith.addf %118, %120 : vector<128x64xf32>
      %c1_69 = arith.constant 1 : index
      %c0_70 = arith.constant 0 : index
      %c0_71 = arith.constant 0 : index
      %122 = vector.load %arg10[%c1_69, %c0_70, %c0_71] : memref<2x128x64xf32, #tpu.memory_space<vmem>>, vector<1x128x64xf32>
      %123 = vector.shape_cast %122 : vector<1x128x64xf32> to vector<128x64xf32>
      %124 = vector.shape_cast %121 : vector<128x64xf32> to vector<1x128x64xf32>
      tpu.vector_store %arg10[%c1_69, %c0_70, %c0_71], %124 {strides = array<i32>} : memref<2x128x64xf32, #tpu.memory_space<vmem>>, vector<1x128x64xf32>,
      %c1_72 = arith.constant 1 : index
      %c0_73 = arith.constant 0 : index
      %c0_74 = arith.constant 0 : index
      %125 = vector.load %arg9[%c1_72, %c0_73, %c0_74] : memref<2x128x2xf32, #tpu.memory_space<vmem>>, vector<1x128x1xf32>
      %126 = vector.shape_cast %125 : vector<1x128x1xf32> to vector<128x1xf32>
      %127 = vector.shape_cast %102 : vector<128x1xf32> to vector<1x128x1xf32>
      tpu.vector_store %arg9[%c1_72, %c0_73, %c0_74], %127 {strides = array<i32>} : memref<2x128x2xf32, #tpu.memory_space<vmem>>, vector<1x128x1xf32>,
    } else {
    }
    %c1_i32_12 = arith.constant 1 : i32
    %28 = arith.cmpi eq, %arg3, %c1_i32_12 : i32
    %29 = arith.extui %28 : i1 to i32
    %c0_i32_13 = arith.constant 0 : i32
    %30 = arith.cmpi ne, %29, %c0_i32_13 : i32
    scf.if %30 {
      %c0 = arith.constant 0 : index
      %c0_14 = arith.constant 0 : index
      %c1 = arith.constant 1 : index
      %31 = vector.load %arg9[%c0, %c0_14, %c1] : memref<2x128x2xf32, #tpu.memory_space<vmem>>, vector<1x128x1xf32>
      %32 = vector.shape_cast %31 : vector<1x128x1xf32> to vector<128x1xf32>
      %33 = tpu.reciprocal %32 {approx = true} : vector<128x1xf32> -> vector<128x1xf32>
      %c0_15 = arith.constant 0 : index
      %c0_16 = arith.constant 0 : index
      %c0_17 = arith.constant 0 : index
      %34 = vector.load %arg10[%c0_15, %c0_16, %c0_17] : memref<2x128x64xf32, #tpu.memory_space<vmem>>, vector<1x128x64xf32>
      %35 = vector.shape_cast %34 : vector<1x128x64xf32> to vector<128x64xf32>
      %36 = vector.broadcast %33 : vector<128x1xf32> to vector<128x64xf32>
      %37 = arith.mulf %35, %36 : vector<128x64xf32>
      %38 = arith.truncf %37 : vector<128x64xf32> to vector<128x64xbf16>
      %c1_18 = arith.constant 1 : index
      %c0_19 = arith.constant 0 : index
      %c1_20 = arith.constant 1 : index
      %39 = vector.load %arg9[%c1_18, %c0_19, %c1_20] : memref<2x128x2xf32, #tpu.memory_space<vmem>>, vector<1x128x1xf32>
      %40 = vector.shape_cast %39 : vector<1x128x1xf32> to vector<128x1xf32>
      %41 = tpu.reciprocal %40 {approx = true} : vector<128x1xf32> -> vector<128x1xf32>
      %c1_21 = arith.constant 1 : index
      %c0_22 = arith.constant 0 : index
      %c0_23 = arith.constant 0 : index
      %42 = vector.load %arg10[%c1_21, %c0_22, %c0_23] : memref<2x128x64xf32, #tpu.memory_space<vmem>>, vector<1x128x64xf32>
      %43 = vector.shape_cast %42 : vector<1x128x64xf32> to vector<128x64xf32>
      %44 = vector.broadcast %41 : vector<128x1xf32> to vector<128x64xf32>
      %45 = arith.mulf %43, %44 : vector<128x64xf32>
      %46 = arith.truncf %45 : vector<128x64xf32> to vector<128x64xbf16>
      %47 = tpu.concatenate %38, %46 in 1 : vector<128x64xbf16>, vector<128x64xbf16> -> vector<128x128xbf16>
      %c0_24 = arith.constant 0 : index
      %c0_25 = arith.constant 0 : index
      %c0_26 = arith.constant 0 : index
      %48 = vector.load %arg7[%c0_24, %c0_25, %c0_26] : memref<1x128x128xbf16, #tpu.memory_space<vmem>>, vector<1x128x128xbf16>
      %49 = vector.shape_cast %48 : vector<1x128x128xbf16> to vector<128x128xbf16>
      %50 = vector.shape_cast %47 : vector<128x128xbf16> to vector<1x128x128xbf16>
      tpu.vector_store %arg7[%c0_24, %c0_25, %c0_26], %50 {strides = array<i32>} : memref<1x128x128xbf16, #tpu.memory_space<vmem>>, vector<1x128x128xbf16>,
    } else {
    }
    return
  }
  func.func @transform_0(%arg0: i32, %arg1: i32, %arg2: i32, %arg3: i32) -> (i32, i32, i32) {
    %c0_i32 = arith.constant 0 : i32
    return %arg0, %arg2, %arg1 : i32, i32, i32
  }
  func.func @transform_1(%arg0: i32, %arg1: i32, %arg2: i32, %arg3: i32) -> (i32, i32, i32) {
    %c1_i32 = arith.constant 1 : i32
    %0 = arith.muli %arg2, %c1_i32 : i32
    %c1_i32_0 = arith.constant 1 : i32
    %1 = arith.subi %0, %c1_i32_0 : i32
    %c0_i32 = arith.constant 0 : i32
    %2 = arith.maxsi %1, %c0_i32 : i32
    %3 = arith.addi %2, %arg3 : i32
    %c1_i32_1 = arith.constant 1 : i32
    %4 = arith.addi %arg2, %c1_i32_1 : i32
    %c1_i32_2 = arith.constant 1 : i32
    %5 = arith.muli %4, %c1_i32_2 : i32
    %c1_i32_3 = arith.constant 1 : i32
    %6 = arith.subi %5, %c1_i32_3 : i32
    %7 = arith.minsi %3, %6 : i32
    %c1_i32_4 = arith.constant 1 : i32
    %8 = arith.addi %c1_i32_4, %arg1 : i32
    %c0_i32_5 = arith.constant 0 : i32
    return %arg0, %7, %8 : i32, i32, i32
  }
  func.func @transform_2(%arg0: i32, %arg1: i32, %arg2: i32, %arg3: i32) -> (i32, i32, i32) {
    %c1_i32 = arith.constant 1 : i32
    %0 = arith.muli %arg2, %c1_i32 : i32
    %c1_i32_0 = arith.constant 1 : i32
    %1 = arith.subi %0, %c1_i32_0 : i32
    %c0_i32 = arith.constant 0 : i32
    %2 = arith.maxsi %1, %c0_i32 : i32
    %3 = arith.addi %2, %arg3 : i32
    %c1_i32_1 = arith.constant 1 : i32
    %4 = arith.addi %arg2, %c1_i32_1 : i32
    %c1_i32_2 = arith.constant 1 : i32
    %5 = arith.muli %4, %c1_i32_2 : i32
    %c1_i32_3 = arith.constant 1 : i32
    %6 = arith.subi %5, %c1_i32_3 : i32
    %7 = arith.minsi %3, %6 : i32
    %c2_i32 = arith.constant 2 : i32
    %8 = arith.addi %c2_i32, %arg1 : i32
    %c0_i32_4 = arith.constant 0 : i32
    return %arg0, %7, %8 : i32, i32, i32
  }
  func.func @transform_3(%arg0: i32, %arg1: i32, %arg2: i32, %arg3: i32) -> (i32, i32, i32) {
    %c0_i32 = arith.constant 0 : i32
    return %arg0, %arg2, %arg1 : i32, i32, i32
  }
}

</mosaic_0001>

<llo_original>
// kernel: tpu_custom_call.1
$region0: #{tpu_custom_call.1}
  #allocation0 [shape = 'u32[]', space=smem, size = 0x4, offset = 0x4, fixed_abs, tag = 'smem constant byte address 0x4 - core index']
  #allocation1 [shape = 'u32[144,128]{1,0:T(1,128)}', space=vmem, size = 0x12000, scoped, tag = 'internal scratch']
  #allocation2 [shape = 'bf16[128,128]{1,0:T(16,128)(2,1)}', space=vmem, size = 0x8000, scoped, tag = 'scratch operand']
  #allocation3 [shape = 'f32[2,128,2]{2,1,0:T(8,128)}', space=vmem, size = 0x20000, scoped, tag = 'scratch operand']
  #allocation4 [shape = 'f32[2,128,64]{2,1,0:T(8,128)}', space=vmem, size = 0x20000, scoped, tag = 'scratch operand']
  %s0 = inlined_call_operand.hbm [shape: bf16[2,256,384], index: 0, kind: input, shape index: {}]
  %s1 = inlined_call_operand.hbm [shape: bf16[2,256,384], index: 1, kind: input, shape index: {}]
  %s2 = inlined_call_operand.hbm [shape: bf16[2,256,384], index: 2, kind: input, shape index: {}]
  %s3 = inlined_call_operand.hbm [shape: bf16[2,256,128], index: 3, kind: output, shape index: {}]
  %s4 = sld [smem:[#allocation0]]
  $region73: #{tpu_custom_call.1} parent=0
    _
  %s6 = ssub.s32 1, %s4
  %s7 = scalar_select 0, %s6, %s4
  $region1: #{tpu_custom_call.1} parent=0
    #allocation5 [shape = 'u8[65536]{0}', space=vmem, size = 0x10000, scoped, tag = 'input window, operand 0']
    #allocation6 [shape = 's32[2]{0}', space=sflag, size = 0x8, scoped, tag = 'scoped memory for tpu_custom_call.1']
    #allocation7 [shape = 's32[2]{0}', space=sflag, size = 0x8, scoped, tag = 'scoped memory for tpu_custom_call.1']
    #allocation8 [shape = 'u8[65536]{0}', space=vmem, size = 0x10000, scoped, tag = 'input window, operand 1']
    #allocation9 [shape = 's32[2]{0}', space=sflag, size = 0x8, scoped, tag = 'scoped memory for tpu_custom_call.1']
    #allocation10 [shape = 'u8[65536]{0}', space=vmem, size = 0x10000, scoped, tag = 'input window, operand 2']
    #allocation11 [shape = 'u8[65536]{0}', space=vmem, size = 0x10000, scoped, tag = 'output window, operand 0']
    %8 = vsyncpa [#allocation6], 0
    %s9 = scalar_lea.sflag [#allocation6], 1
    %10 = vsyncpa %s9, 0
    %11 = vsyncpa [#allocation9], 0
    %s12 = scalar_lea.sflag [#allocation9], 1
    %13 = vsyncpa %s12, 0
    %14 = vsyncpa [#allocation7], 0
    %s15 = scalar_lea.sflag [#allocation7], 1
    %16 = vsyncpa %s15, 0
    loop: start=0, step=1, limit=10
    $region2: #{tpu_custom_call.1} parent=1 // loop_pre_header
      _
    $region3: #{tpu_custom_call.1} parent=1 // loop_header
      %s18 = sphi 0, %s22
      %p19 = scmp.ge.s32.totalorder %s18, 10
      %s25 = sphi 0, %s51
      %s26 = sphi 0, %s47
      %s27 = sphi 0, %s43
      %s28 = sphi 0, %s39
      %s29 = sphi 0, %s25
      %s30 = sphi 0, %s26
      %s31 = sphi 0, %s27
      %s32 = sphi 0, %s28
      %s33 = sphi 0, %s29
      %s34 = sphi 0, %s30
      %s35 = sphi 0, %s31
      %s36 = sphi 0, %s32
      %s58 = sphi 0, %s60
      %s61 = sphi 0, %s58
      %s62 = sphi 0, %s61
      %s78 = sphi 0, %s62
      %s102 = sphi 0, %s104
      %s105 = sphi 0, %s102
      %s106 = sphi 0, %s105
      %s122 = sphi 0, %s106
      %s146 = sphi 0, %s148
      %s149 = sphi 0, %s146
      %s150 = sphi 0, %s149
      %s166 = sphi 0, %s150
      %s176 = sphi 0, %s178
      %s179 = sphi 0, %s176
      %s180 = sphi 0, %s179
      %s196 = sphi 0, %s180
    $region4: #{tpu_custom_call.1} parent=1 // loop_header_branch
      %21 = sbr.rel (%p19) target = $region8
    $region5: #{tpu_custom_call.1} parent=1 // loop_body
      %s23 = ssub.s32 %s18, 1
      %s24 = ssub.s32 %s18, 2
      %s37 = sadd.s32 1, %s28
      %p38 = scmp.ge.s32.totalorder %s37, 2
      %s39 = scalar_select %p38, 0, %s37
      %s40 = sadd.s32 1, %s27
      %s41 = scalar_select %p38, %s40, %s27
      %p42 = scmp.ge.s32.totalorder %s41, 2
      %s43 = scalar_select %p42, 0, %s41
      %s44 = sadd.s32 1, %s26
      %s45 = scalar_select %p42, %s44, %s26
      %p46 = scmp.ge.s32.totalorder %s45, 1
      %s47 = scalar_select %p46, 0, %s45
      %s48 = sadd.s32 1, %s25
      %s49 = scalar_select %p46, %s48, %s25
      %p50 = scmp.ge.s32.totalorder %s49, 2
      %s51 = scalar_select %p50, 0, %s49
      %s52 = ssub.s32 %s25, %s51
      %s53 = ssub.s32 %s27, %s43
      %s54 = sor.u32 %s52, %s53
      %s55 = ssub.s32 %s26, %s47
      %s56 = sor.u32 %s54, %s55
      %p57 = scmp.eq.s32.totalorder %s56, 0
      %s59 = sadd.s32 %s58, 1
      %s60 = scalar_select %p57, %s58, %s59
      %p63 = pneg %p57
      %p64 = scmp.eq.s32.totalorder %s18, 7
      %p65 = por %p63, %p64
      %p66 = scmp.ne.s32.totalorder %s58, %s61
      %p67 = scmp.eq.s32.totalorder %s18, 0
      %p68 = por %p66, %p67
      %p69 = scmp.ne.s32.totalorder %s58, %s61
      %p70 = scmp.eq.s32.totalorder %s23, 7
      %p71 = por %p69, %p70
      %p72 = scmp.ne.s32.totalorder %s61, %s62
      %p73 = scmp.eq.s32.totalorder %s23, 0
      %p74 = por %p72, %p73
      %p75 = scmp.ne.s32.totalorder %s61, %s62
      %p76 = scmp.eq.s32.totalorder %s24, 7
      %p77 = por %p75, %p76
      %p79 = scmp.ne.s32.totalorder %s62, %s78
      %p80 = scmp.eq.s32.totalorder %s24, 0
      %p81 = por %p79, %p80
      %s82 = ssub.s32 %s27, 1
      %p83 = scmp.gt.s32.totalorder %s82, 0
      %s84 = scalar_select %p83, %s82, 0
      %s85 = sadd.s32 %s84, %s28
      %p86 = scmp.lt.s32.totalorder %s85, %s27
      %s87 = scalar_select %p86, %s85, %s27
      %s88 = sadd.s32 %s26, 1
      %s89 = ssub.s32 %s43, 1
      %p90 = scmp.gt.s32.totalorder %s89, 0
      %s91 = scalar_select %p90, %s89, 0
      %s92 = sadd.s32 %s91, %s39
      %p93 = scmp.lt.s32.totalorder %s92, %s43
      %s94 = scalar_select %p93, %s92, %s43
      %s95 = sadd.s32 %s47, 1
      %s96 = ssub.s32 %s25, %s51
      %s97 = ssub.s32 %s87, %s94
      %s98 = sor.u32 %s96, %s97
      %s99 = ssub.s32 %s88, %s95
      %s100 = sor.u32 %s98, %s99
      %p101 = scmp.eq.s32.totalorder %s100, 0
      %s103 = sadd.s32 %s102, 1
      %s104 = scalar_select %p101, %s102, %s103
      %p107 = pneg %p101
      %p108 = scmp.eq.s32.totalorder %s18, 7
      %p109 = por %p107, %p108
      %p110 = scmp.ne.s32.totalorder %s102, %s105
      %p111 = scmp.eq.s32.totalorder %s18, 0
      %p112 = por %p110, %p111
      %p113 = scmp.ne.s32.totalorder %s102, %s105
      %p114 = scmp.eq.s32.totalorder %s23, 7
      %p115 = por %p113, %p114
      %p116 = scmp.ne.s32.totalorder %s105, %s106
      %p117 = scmp.eq.s32.totalorder %s23, 0
      %p118 = por %p116, %p117
      %p119 = scmp.ne.s32.totalorder %s105, %s106
      %p120 = scmp.eq.s32.totalorder %s24, 7
      %p121 = por %p119, %p120
      %p123 = scmp.ne.s32.totalorder %s106, %s122
      %p124 = scmp.eq.s32.totalorder %s24, 0
      %p125 = por %p123, %p124
      %s126 = ssub.s32 %s27, 1
      %p127 = scmp.gt.s32.totalorder %s126, 0
      %s128 = scalar_select %p127, %s126, 0
      %s129 = sadd.s32 %s128, %s28
      %p130 = scmp.lt.s32.totalorder %s129, %s27
      %s131 = scalar_select %p130, %s129, %s27
      %s132 = sadd.s32 %s26, 2
      %s133 = ssub.s32 %s43, 1
      %p134 = scmp.gt.s32.totalorder %s133, 0
      %s135 = scalar_select %p134, %s133, 0
      %s136 = sadd.s32 %s135, %s39
      %p137 = scmp.lt.s32.totalorder %s136, %s43
      %s138 = scalar_select %p137, %s136, %s43
      %s139 = sadd.s32 %s47, 2
      %s140 = ssub.s32 %s25, %s51
      %s141 = ssub.s32 %s131, %s138
      %s142 = sor.u32 %s140, %s141
      %s143 = ssub.s32 %s132, %s139
      %s144 = sor.u32 %s142, %s143
      %p145 = scmp.eq.s32.totalorder %s144, 0
      %s147 = sadd.s32 %s146, 1
      %s148 = scalar_select %p145, %s146, %s147
      %p151 = pneg %p145
      %p152 = scmp.eq.s32.totalorder %s18, 7
      %p153 = por %p151, %p152
      %p154 = scmp.ne.s32.totalorder %s146, %s149
      %p155 = scmp.eq.s32.totalorder %s18, 0
      %p156 = por %p154, %p155
      %p157 = scmp.ne.s32.totalorder %s146, %s149
      %p158 = scmp.eq.s32.totalorder %s23, 7
      %p159 = por %p157, %p158
      %p160 = scmp.ne.s32.totalorder %s149, %s150
      %p161 = scmp.eq.s32.totalorder %s23, 0
      %p162 = por %p160, %p161
      %p163 = scmp.ne.s32.totalorder %s149, %s150
      %p164 = scmp.eq.s32.totalorder %s24, 7
      %p165 = por %p163, %p164
      %p167 = scmp.ne.s32.totalorder %s150, %s166
      %p168 = scmp.eq.s32.totalorder %s24, 0
      %p169 = por %p167, %p168
      %s170 = ssub.s32 %s25, %s51
      %s171 = ssub.s32 %s27, %s43
      %s172 = sor.u32 %s170, %s171
      %s173 = ssub.s32 %s26, %s47
      %s174 = sor.u32 %s172, %s173
      %p175 = scmp.eq.s32.totalorder %s174, 0
      %s177 = sadd.s32 %s176, 1
      %s178 = scalar_select %p175, %s176, %s177
      %p181 = pneg %p175
      %p182 = scmp.eq.s32.totalorder %s18, 7
      %p183 = por %p181, %p182
      %p184 = scmp.ne.s32.totalorder %s176, %s179
      %p185 = scmp.eq.s32.totalorder %s18, 0
      %p186 = por %p184, %p185
      %p187 = scmp.ne.s32.totalorder %s176, %s179
      %p188 = scmp.eq.s32.totalorder %s23, 7
      %p189 = por %p187, %p188
      %p190 = scmp.ne.s32.totalorder %s179, %s180
      %p191 = scmp.eq.s32.totalorder %s23, 0
      %p192 = por %p190, %p191
      %p193 = scmp.ne.s32.totalorder %s179, %s180
      %p194 = scmp.eq.s32.totalorder %s24, 7
      %p195 = por %p193, %p194
      %p197 = scmp.ne.s32.totalorder %s180, %s196
      %p198 = scmp.eq.s32.totalorder %s24, 0
      %p199 = por %p197, %p198
      %p200 = scmp.le.s32.totalorder 1, %s18
      %p201 = scmp.lt.s32.totalorder %s18, 9
      %p202 = pnand %p200, %p201
      %p203 = pneg %p202
      // Predicated region
      $region9: #{tpu_custom_call.1} parent=5 // pred_check
        _
      $region10: #{tpu_custom_call.1} parent=5 // pred_check_branch
        %205 = sbr.rel (%p202) target = $region12
      $region11: #{tpu_custom_call.1} parent=5 // pred_region
        %s206 = ssub.s32 %s18, 1
      $region12: #{tpu_custom_call.1} parent=5 // pred_fallthru
        _
      %p207 = scmp.lt.s32.totalorder %s18, 8
      // Predicated region
      $region13: #{tpu_custom_call.1} parent=5 // pred_check
        %p208 = pneg %p207
      $region14: #{tpu_custom_call.1} parent=5 // pred_check_branch
        %210 = sbr.rel (%p208) target = $region16
      $region15: #{tpu_custom_call.1} parent=5 // pred_region
        // Predicated region
        $region17: #{tpu_custom_call.1} parent=15 // pred_check
          %p211 = pneg %p68
        $region18: #{tpu_custom_call.1} parent=15 // pred_check_branch
          %213 = sbr.rel (%p211) target = $region20
        $region19: #{tpu_custom_call.1} parent=15 // pred_region
          %s214 = sand.u32 %s58, 1
          %s215 = scalar_lea.sflag [#allocation6], %s214
          %s216 = sand.u32 %s58, 1
          %s217 = smul.addr %s216, 64
          %s218 = scalar_lea.vmem [#allocation5], %s217
          %s219 = smul.u32 16, %s27
          %s221 = ssub.s32 1024, 1024
          %222 = vsyncadd %s215, %s221
          %s223 = smul.addr %s219, 3
          %s224 = sadd.s32 %s26, %s223
          %s225 = smul.addr %s25, 96
          %s226 = sadd.s32 %s224, %s225
          %s227 = smul.addr %s226, 64
          %s228 = scalar_lea.hbm %s0, %s227
          %s229 = sshll.u32 %s218, 4
          %s230 = int_to_ptr.vmem [resolvable:$true] %s229
          %235 = dma.hbm_to_vmem [thread:$0]  %s228, 1024, %s230, %s215, 192, 64, 4
        $region20: #{tpu_custom_call.1} parent=15 // pred_fallthru
          _
        // Predicated region
        $region21: #{tpu_custom_call.1} parent=15 // pred_check
          %p236 = pneg %p112
        $region22: #{tpu_custom_call.1} parent=15 // pred_check_branch
          %238 = sbr.rel (%p236) target = $region24
        $region23: #{tpu_custom_call.1} parent=15 // pred_region
          %s239 = sand.u32 %s18, 1
          %s240 = scalar_lea.sflag [#allocation9], %s239
          %s241 = sand.u32 %s102, 1
          %s242 = smul.addr %s241, 64
          %s243 = scalar_lea.vmem [#allocation8], %s242
          %s244 = ssub.s32 %s27, 1
          %p245 = scmp.gt.s32.totalorder %s244, 0
          %s246 = scalar_select %p245, %s244, 0
          %s247 = sadd.s32 %s246, %s28
          %p248 = scmp.lt.s32.totalorder %s247, %s27
          %s249 = scalar_select %p248, %s247, %s27
          %s250 = sadd.s32 %s26, 1
          %s251 = smul.u32 16, %s249
          %s253 = ssub.s32 1024, 1024
          %254 = vsyncadd %s240, %s253
          %s255 = smul.addr %s251, 3
          %s256 = sadd.s32 %s250, %s255
          %s257 = smul.addr %s25, 96
          %s258 = sadd.s32 %s256, %s257
          %s259 = smul.addr %s258, 64
          %s260 = scalar_lea.hbm %s1, %s259
          %s261 = sshll.u32 %s243, 4
          %s262 = int_to_ptr.vmem [resolvable:$true] %s261
          %267 = dma.hbm_to_vmem [thread:$0]  %s260, 1024, %s262, %s240, 192, 64, 4
        $region24: #{tpu_custom_call.1} parent=15 // pred_fallthru
          _
        // Predicated region
        $region25: #{tpu_custom_call.1} parent=15 // pred_check
          %p268 = pneg %p156
        $region26: #{tpu_custom_call.1} parent=15 // pred_check_branch
          %270 = sbr.rel (%p268) target = $region28
        $region27: #{tpu_custom_call.1} parent=15 // pred_region
          %s271 = sand.u32 %s18, 1
          %s272 = scalar_lea.sflag [#allocation9], %s271
          %s273 = sand.u32 %s146, 1
          %s274 = smul.addr %s273, 64
          %s275 = scalar_lea.vmem [#allocation10], %s274
          %s276 = ssub.s32 %s27, 1
          %p277 = scmp.gt.s32.totalorder %s276, 0
          %s278 = scalar_select %p277, %s276, 0
          %s279 = sadd.s32 %s278, %s28
          %p280 = scmp.lt.s32.totalorder %s279, %s27
          %s281 = scalar_select %p280, %s279, %s27
          %s282 = sadd.s32 %s26, 2
          %s283 = smul.u32 16, %s281
          %s285 = ssub.s32 1024, 1024
          %286 = vsyncadd %s272, %s285
          %s287 = smul.addr %s283, 3
          %s288 = sadd.s32 %s282, %s287
          %s289 = smul.addr %s25, 96
          %s290 = sadd.s32 %s288, %s289
          %s291 = smul.addr %s290, 64
          %s292 = scalar_lea.hbm %s2, %s291
          %s293 = sshll.u32 %s275, 4
          %s294 = int_to_ptr.vmem [resolvable:$true] %s293
          %299 = dma.hbm_to_vmem [thread:$0]  %s292, 1024, %s294, %s272, 192, 64, 4
        $region28: #{tpu_custom_call.1} parent=15 // pred_fallthru
          _
      $region16: #{tpu_custom_call.1} parent=5 // pred_fallthru
        _
      %p300 = scmp.le.s32.totalorder 1, %s18
      %p301 = scmp.lt.s32.totalorder %s18, 9
      %p302 = pnand %p300, %p301
      %p303 = pneg %p302
      // Predicated region
      $region29: #{tpu_custom_call.1} parent=5 // pred_check
        _
      $region30: #{tpu_custom_call.1} parent=5 // pred_check_branch
        %305 = sbr.rel (%p302) target = $region32
      $region31: #{tpu_custom_call.1} parent=5 // pred_region
        %s306 = ssub.s32 %s18, 1
        %s307 = sand.u32 %s61, 1
        %s308 = scalar_lea.sflag [#allocation6], %s307
        %s309 = sand.u32 %s61, 1
        %s310 = smul.addr %s309, 64
        %s311 = scalar_lea.vmem [#allocation5], %s310
        // Predicated region
        $region33: #{tpu_custom_call.1} parent=31 // pred_check
          %p312 = pneg %p74
        $region34: #{tpu_custom_call.1} parent=31 // pred_check_branch
          %314 = sbr.rel (%p312) target = $region36
        $region35: #{tpu_custom_call.1} parent=31 // pred_region
          %315 = dma.done %s308, 1024
        $region36: #{tpu_custom_call.1} parent=31 // pred_fallthru
          _
        %s316 = sand.u32 %s23, 1
        %s317 = scalar_lea.sflag [#allocation9], %s316
        %s318 = sand.u32 %s105, 1
        %s319 = smul.addr %s318, 64
        %s320 = scalar_lea.vmem [#allocation8], %s319
        // Predicated region
        $region37: #{tpu_custom_call.1} parent=31 // pred_check
          %p321 = pneg %p118
        $region38: #{tpu_custom_call.1} parent=31 // pred_check_branch
          %323 = sbr.rel (%p321) target = $region40
        $region39: #{tpu_custom_call.1} parent=31 // pred_region
          %324 = dma.done %s317, 1024
        $region40: #{tpu_custom_call.1} parent=31 // pred_fallthru
          _
        %s325 = sand.u32 %s23, 1
        %s326 = scalar_lea.sflag [#allocation9], %s325
        %s327 = sand.u32 %s149, 1
        %s328 = smul.addr %s327, 64
        %s329 = scalar_lea.vmem [#allocation10], %s328
        // Predicated region
        $region41: #{tpu_custom_call.1} parent=31 // pred_check
          %p330 = pneg %p162
        $region42: #{tpu_custom_call.1} parent=31 // pred_check_branch
          %332 = sbr.rel (%p330) target = $region44
        $region43: #{tpu_custom_call.1} parent=31 // pred_region
          %333 = dma.done %s326, 1024
        $region44: #{tpu_custom_call.1} parent=31 // pred_fallthru
          _
        %s334 = sand.u32 %s61, 1
        %s335 = scalar_lea.sflag [#allocation6], %s334
        %s336 = sand.u32 %s61, 1
        %s337 = smul.addr %s336, 64
        %s338 = scalar_lea.vmem [#allocation5], %s337
        %p339 = pneg %p74
        %p340 = pneg %p71
        %s341 = sand.u32 %s23, 1
        %s342 = scalar_lea.sflag [#allocation9], %s341
        %s343 = sand.u32 %s105, 1
        %s344 = smul.addr %s343, 64
        %s345 = scalar_lea.vmem [#allocation8], %s344
        %p346 = pneg %p118
        %p347 = pneg %p115
        %s348 = sand.u32 %s23, 1
        %s349 = scalar_lea.sflag [#allocation9], %s348
        %s350 = sand.u32 %s149, 1
        %s351 = smul.addr %s350, 64
        %s352 = scalar_lea.vmem [#allocation10], %s351
        %p353 = pneg %p162
        %p354 = pneg %p159
        %p355 = pneg %p192
        %p356 = pneg %p189
        %s357 = sand.u32 %s179, 1
        %s358 = scalar_lea.sflag [#allocation7], %s357
        %s359 = sand.u32 %s179, 1
        %s360 = smul.addr %s359, 64
        %s361 = scalar_lea.vmem [#allocation11], %s360
        %s362 = smul.u32 16, %s31
        %s363 = ssub.s32 %s31, 1
        %p364 = scmp.gt.s32.totalorder %s363, 0
        %s365 = scalar_select %p364, %s363, 0
        %s366 = sadd.s32 %s365, %s32
        %p367 = scmp.lt.s32.totalorder %s366, %s31
        %s368 = scalar_select %p367, %s366, %s31
        %s369 = sadd.s32 %s30, 1
        %s370 = smul.u32 16, %s368
        %s371 = ssub.s32 %s31, 1
        %p372 = scmp.gt.s32.totalorder %s371, 0
        %s373 = scalar_select %p372, %s371, 0
        %s374 = sadd.s32 %s373, %s32
        %p375 = scmp.lt.s32.totalorder %s374, %s31
        %s376 = scalar_select %p375, %s374, %s31
        %s377 = sadd.s32 %s30, 2
        %s378 = smul.u32 16, %s376
        %s379 = smul.u32 16, %s31
        %p381 = scmp.eq.s32.totalorder %s32, 0
        // Predicated region
        $region45: #{tpu_custom_call.1} parent=31 // pred_check
          %p382 = pneg %p381
        $region46: #{tpu_custom_call.1} parent=31 // pred_check_branch
          %384 = sbr.rel (%p382) target = $region48
        $region47: #{tpu_custom_call.1} parent=31 // pred_region
          %vm385 = vcmask 7168
          %386 = vst.msk [vmem:[#allocation3] sm:$0xff] %vm385, -1e+30
          %387 = vst.msk [vmem:[#allocation3 + $0x8] sm:$0xff] %vm385, -1e+30
          %388 = vst.msk [vmem:[#allocation3 + $0x10] sm:$0xff] %vm385, -1e+30
          %389 = vst.msk [vmem:[#allocation3 + $0x18] sm:$0xff] %vm385, -1e+30
          %390 = vst.msk [vmem:[#allocation3 + $0x20] sm:$0xff] %vm385, -1e+30
          %391 = vst.msk [vmem:[#allocation3 + $0x28] sm:$0xff] %vm385, -1e+30
          %392 = vst.msk [vmem:[#allocation3 + $0x30] sm:$0xff] %vm385, -1e+30
          %393 = vst.msk [vmem:[#allocation3 + $0x38] sm:$0xff] %vm385, -1e+30
          %394 = vst.msk [vmem:[#allocation3 + $0x40] sm:$0xff] %vm385, -1e+30
          %395 = vst.msk [vmem:[#allocation3 + $0x48] sm:$0xff] %vm385, -1e+30
          %396 = vst.msk [vmem:[#allocation3 + $0x50] sm:$0xff] %vm385, -1e+30
          %397 = vst.msk [vmem:[#allocation3 + $0x58] sm:$0xff] %vm385, -1e+30
          %398 = vst.msk [vmem:[#allocation3 + $0x60] sm:$0xff] %vm385, -1e+30
          %399 = vst.msk [vmem:[#allocation3 + $0x68] sm:$0xff] %vm385, -1e+30
          %400 = vst.msk [vmem:[#allocation3 + $0x70] sm:$0xff] %vm385, -1e+30
          %401 = vst.msk [vmem:[#allocation3 + $0x78] sm:$0xff] %vm385, -1e+30
          %402 = vst.msk [vmem:[#allocation3 + $0x80] sm:$0xff] %vm385, -1e+30
          %403 = vst.msk [vmem:[#allocation3 + $0x88] sm:$0xff] %vm385, -1e+30
          %404 = vst.msk [vmem:[#allocation3 + $0x90] sm:$0xff] %vm385, -1e+30
          %405 = vst.msk [vmem:[#allocation3 + $0x98] sm:$0xff] %vm385, -1e+30
          %406 = vst.msk [vmem:[#allocation3 + $0xa0] sm:$0xff] %vm385, -1e+30
          %407 = vst.msk [vmem:[#allocation3 + $0xa8] sm:$0xff] %vm385, -1e+30
          %408 = vst.msk [vmem:[#allocation3 + $0xb0] sm:$0xff] %vm385, -1e+30
          %409 = vst.msk [vmem:[#allocation3 + $0xb8] sm:$0xff] %vm385, -1e+30
          %410 = vst.msk [vmem:[#allocation3 + $0xc0] sm:$0xff] %vm385, -1e+30
          %411 = vst.msk [vmem:[#allocation3 + $0xc8] sm:$0xff] %vm385, -1e+30
          %412 = vst.msk [vmem:[#allocation3 + $0xd0] sm:$0xff] %vm385, -1e+30
          %413 = vst.msk [vmem:[#allocation3 + $0xd8] sm:$0xff] %vm385, -1e+30
          %414 = vst.msk [vmem:[#allocation3 + $0xe0] sm:$0xff] %vm385, -1e+30
          %415 = vst.msk [vmem:[#allocation3 + $0xe8] sm:$0xff] %vm385, -1e+30
          %416 = vst.msk [vmem:[#allocation3 + $0xf0] sm:$0xff] %vm385, -1e+30
          %417 = vst.msk [vmem:[#allocation3 + $0xf8] sm:$0xff] %vm385, -1e+30
          %vm418 = vcmask 15368
          %419 = vst.msk [vmem:[#allocation3] sm:$0xff] %vm418, 0.0
          %420 = vst.msk [vmem:[#allocation3 + $0x8] sm:$0xff] %vm418, 0.0
          %421 = vst.msk [vmem:[#allocation3 + $0x10] sm:$0xff] %vm418, 0.0
          %422 = vst.msk [vmem:[#allocation3 + $0x18] sm:$0xff] %vm418, 0.0
          %423 = vst.msk [vmem:[#allocation3 + $0x20] sm:$0xff] %vm418, 0.0
          %424 = vst.msk [vmem:[#allocation3 + $0x28] sm:$0xff] %vm418, 0.0
          %425 = vst.msk [vmem:[#allocation3 + $0x30] sm:$0xff] %vm418, 0.0
          %426 = vst.msk [vmem:[#allocation3 + $0x38] sm:$0xff] %vm418, 0.0
          %427 = vst.msk [vmem:[#allocation3 + $0x40] sm:$0xff] %vm418, 0.0
          %428 = vst.msk [vmem:[#allocation3 + $0x48] sm:$0xff] %vm418, 0.0
          %429 = vst.msk [vmem:[#allocation3 + $0x50] sm:$0xff] %vm418, 0.0
          %430 = vst.msk [vmem:[#allocation3 + $0x58] sm:$0xff] %vm418, 0.0
          %431 = vst.msk [vmem:[#allocation3 + $0x60] sm:$0xff] %vm418, 0.0
          %432 = vst.msk [vmem:[#allocation3 + $0x68] sm:$0xff] %vm418, 0.0
          %433 = vst.msk [vmem:[#allocation3 + $0x70] sm:$0xff] %vm418, 0.0
          %434 = vst.msk [vmem:[#allocation3 + $0x78] sm:$0xff] %vm418, 0.0
          %435 = vst.msk [vmem:[#allocation3 + $0x80] sm:$0xff] %vm418, 0.0
          %436 = vst.msk [vmem:[#allocation3 + $0x88] sm:$0xff] %vm418, 0.0
          %437 = vst.msk [vmem:[#allocation3 + $0x90] sm:$0xff] %vm418, 0.0
          %438 = vst.msk [vmem:[#allocation3 + $0x98] sm:$0xff] %vm418, 0.0
          %439 = vst.msk [vmem:[#allocation3 + $0xa0] sm:$0xff] %vm418, 0.0
          %440 = vst.msk [vmem:[#allocation3 + $0xa8] sm:$0xff] %vm418, 0.0
          %441 = vst.msk [vmem:[#allocation3 + $0xb0] sm:$0xff] %vm418, 0.0
          %442 = vst.msk [vmem:[#allocation3 + $0xb8] sm:$0xff] %vm418, 0.0
          %443 = vst.msk [vmem:[#allocation3 + $0xc0] sm:$0xff] %vm418, 0.0
          %444 = vst.msk [vmem:[#allocation3 + $0xc8] sm:$0xff] %vm418, 0.0
          %445 = vst.msk [vmem:[#allocation3 + $0xd0] sm:$0xff] %vm418, 0.0
          %446 = vst.msk [vmem:[#allocation3 + $0xd8] sm:$0xff] %vm418, 0.0
          %447 = vst.msk [vmem:[#allocation3 + $0xe0] sm:$0xff] %vm418, 0.0
          %448 = vst.msk [vmem:[#allocation3 + $0xe8] sm:$0xff] %vm418, 0.0
          %449 = vst.msk [vmem:[#allocation3 + $0xf0] sm:$0xff] %vm418, 0.0
          %450 = vst.msk [vmem:[#allocation3 + $0xf8] sm:$0xff] %vm418, 0.0
          %vm451 = vcmask 523264
          %452 = vst.msk [vmem:[#allocation4] sm:$0xff] %vm451, 0.0
          %453 = vst.msk [vmem:[#allocation4 + $0x8] sm:$0xff] %vm451, 0.0
          %454 = vst.msk [vmem:[#allocation4 + $0x10] sm:$0xff] %vm451, 0.0
          %455 = vst.msk [vmem:[#allocation4 + $0x18] sm:$0xff] %vm451, 0.0
          %456 = vst.msk [vmem:[#allocation4 + $0x20] sm:$0xff] %vm451, 0.0
          %457 = vst.msk [vmem:[#allocation4 + $0x28] sm:$0xff] %vm451, 0.0
          %458 = vst.msk [vmem:[#allocation4 + $0x30] sm:$0xff] %vm451, 0.0
          %459 = vst.msk [vmem:[#allocation4 + $0x38] sm:$0xff] %vm451, 0.0
          %460 = vst.msk [vmem:[#allocation4 + $0x40] sm:$0xff] %vm451, 0.0
          %461 = vst.msk [vmem:[#allocation4 + $0x48] sm:$0xff] %vm451, 0.0
          %462 = vst.msk [vmem:[#allocation4 + $0x50] sm:$0xff] %vm451, 0.0
          %463 = vst.msk [vmem:[#allocation4 + $0x58] sm:$0xff] %vm451, 0.0
          %464 = vst.msk [vmem:[#allocation4 + $0x60] sm:$0xff] %vm451, 0.0
          %465 = vst.msk [vmem:[#allocation4 + $0x68] sm:$0xff] %vm451, 0.0
          %466 = vst.msk [vmem:[#allocation4 + $0x70] sm:$0xff] %vm451, 0.0
          %467 = vst.msk [vmem:[#allocation4 + $0x78] sm:$0xff] %vm451, 0.0
          %468 = vst.msk [vmem:[#allocation4 + $0x80] sm:$0xff] %vm451, 0.0
          %469 = vst.msk [vmem:[#allocation4 + $0x88] sm:$0xff] %vm451, 0.0
          %470 = vst.msk [vmem:[#allocation4 + $0x90] sm:$0xff] %vm451, 0.0
          %471 = vst.msk [vmem:[#allocation4 + $0x98] sm:$0xff] %vm451, 0.0
          %472 = vst.msk [vmem:[#allocation4 + $0xa0] sm:$0xff] %vm451, 0.0
          %473 = vst.msk [vmem:[#allocation4 + $0xa8] sm:$0xff] %vm451, 0.0
          %474 = vst.msk [vmem:[#allocation4 + $0xb0] sm:$0xff] %vm451, 0.0
          %475 = vst.msk [vmem:[#allocation4 + $0xb8] sm:$0xff] %vm451, 0.0
          %476 = vst.msk [vmem:[#allocation4 + $0xc0] sm:$0xff] %vm451, 0.0
          %477 = vst.msk [vmem:[#allocation4 + $0xc8] sm:$0xff] %vm451, 0.0
          %478 = vst.msk [vmem:[#allocation4 + $0xd0] sm:$0xff] %vm451, 0.0
          %479 = vst.msk [vmem:[#allocation4 + $0xd8] sm:$0xff] %vm451, 0.0
          %480 = vst.msk [vmem:[#allocation4 + $0xe0] sm:$0xff] %vm451, 0.0
          %481 = vst.msk [vmem:[#allocation4 + $0xe8] sm:$0xff] %vm451, 0.0
          %482 = vst.msk [vmem:[#allocation4 + $0xf0] sm:$0xff] %vm451, 0.0
          %483 = vst.msk [vmem:[#allocation4 + $0xf8] sm:$0xff] %vm451, 0.0
          %v484 = vld [vmem:[%s311] sm:$0xf]
          %v485 = vld [vmem:[%s311 + $0x4] sm:$0xf]
          %v486 = vld [vmem:[%s311 + $0x8] sm:$0xf]
          %v487 = vld [vmem:[%s311 + $0xc] sm:$0xf]
          %v488 = vld [vmem:[%s311 + $0x10] sm:$0xf]
          %v489 = vld [vmem:[%s311 + $0x14] sm:$0xf]
          %v490 = vld [vmem:[%s311 + $0x18] sm:$0xf]
          %v491 = vld [vmem:[%s311 + $0x1c] sm:$0xf]
          %v492 = vld [vmem:[%s311 + $0x20] sm:$0xf]
          %v493 = vld [vmem:[%s311 + $0x24] sm:$0xf]
          %v494 = vld [vmem:[%s311 + $0x28] sm:$0xf]
          %v495 = vld [vmem:[%s311 + $0x2c] sm:$0xf]
          %v496 = vld [vmem:[%s311 + $0x30] sm:$0xf]
          %v497 = vld [vmem:[%s311 + $0x34] sm:$0xf]
          %v498 = vld [vmem:[%s311 + $0x38] sm:$0xf]
          %v499 = vld [vmem:[%s311 + $0x3c] sm:$0xf]
          %v500 = vunpack.c.l.bf16 %v484
          %v501 = vunpack.c.l.bf16 %v485
          %v502 = vunpack.c.l.bf16 %v486
          %v503 = vunpack.c.l.bf16 %v487
          %v504 = vunpack.c.l.bf16 %v488
          %v505 = vunpack.c.l.bf16 %v489
          %v506 = vunpack.c.l.bf16 %v490
          %v507 = vunpack.c.l.bf16 %v491
          %v508 = vunpack.c.l.bf16 %v492
          %v509 = vunpack.c.l.bf16 %v493
          %v510 = vunpack.c.l.bf16 %v494
          %v511 = vunpack.c.l.bf16 %v495
          %v512 = vunpack.c.l.bf16 %v496
          %v513 = vunpack.c.l.bf16 %v497
          %v514 = vunpack.c.l.bf16 %v498
          %v515 = vunpack.c.l.bf16 %v499
          %v516 = vmul.f32 %v500, 0.125
          %v517 = vmul.f32 %v501, 0.125
          %v518 = vmul.f32 %v502, 0.125
          %v519 = vmul.f32 %v503, 0.125
          %v520 = vmul.f32 %v504, 0.125
          %v521 = vmul.f32 %v505, 0.125
          %v522 = vmul.f32 %v506, 0.125
          %v523 = vmul.f32 %v507, 0.125
          %v524 = vmul.f32 %v508, 0.125
          %v525 = vmul.f32 %v509, 0.125
          %v526 = vmul.f32 %v510, 0.125
          %v527 = vmul.f32 %v511, 0.125
          %v528 = vmul.f32 %v512, 0.125
          %v529 = vmul.f32 %v513, 0.125
          %v530 = vmul.f32 %v514, 0.125
          %v531 = vmul.f32 %v515, 0.125
          %v532 = vpack.c.bf16 %v517, %v516
          %v533 = vpack.c.bf16 %v519, %v518
          %v534 = vpack.c.bf16 %v521, %v520
          %v535 = vpack.c.bf16 %v523, %v522
          %v536 = vpack.c.bf16 %v525, %v524
          %v537 = vpack.c.bf16 %v527, %v526
          %v538 = vpack.c.bf16 %v529, %v528
          %v539 = vpack.c.bf16 %v531, %v530
          %540 = vst [vmem:[#allocation2] sm:$0xff] %v532
          %541 = vst [vmem:[#allocation2 + $0x8] sm:$0xff] %v533
          %542 = vst [vmem:[#allocation2 + $0x10] sm:$0xff] %v534
          %543 = vst [vmem:[#allocation2 + $0x18] sm:$0xff] %v535
          %544 = vst [vmem:[#allocation2 + $0x20] sm:$0xff] %v536
          %545 = vst [vmem:[#allocation2 + $0x28] sm:$0xff] %v537
          %546 = vst [vmem:[#allocation2 + $0x30] sm:$0xff] %v538
          %547 = vst [vmem:[#allocation2 + $0x38] sm:$0xff] %v539
        $region48: #{tpu_custom_call.1} parent=31 // pred_fallthru
          _
        %s548 = ssub.s32 %s31, 1
        %p549 = scmp.gt.s32.totalorder %s548, 0
        %s550 = scalar_select %p549, %s548, 0
        %s551 = sadd.s32 %s550, %s32
        %p552 = scmp.le.s32.totalorder %s551, %s31
        %s553 = smul.u32 %s551, 128
        %s554 = sadd.s32 %s553, 127
        %s555 = smul.u32 %s31, 128
        %p556 = scmp.le.s32.totalorder %s554, %s555
        %s557 = sadd.s32 %s555, 111
        %p558 = scmp.ge.s32.totalorder %s553, %s557
        %p559 = pnand %p556, %p558
        %p560 = pneg %p559
        %p561 = pnand %p552, %p560
        %p562 = pneg %p561
        // Predicated region
        $region49: #{tpu_custom_call.1} parent=31 // pred_check
          _
        $region50: #{tpu_custom_call.1} parent=31 // pred_check_branch
          %564 = sbr.rel (%p561) target = $region52
        $region51: #{tpu_custom_call.1} parent=31 // pred_region
          %v565 = vld [vmem:[#allocation2] sm:$0xff]
          %v566 = vld [vmem:[#allocation2 + $0x8] sm:$0xff]
          %v567 = vld [vmem:[#allocation2 + $0x10] sm:$0xff]
          %v568 = vld [vmem:[#allocation2 + $0x18] sm:$0xff]
          %v569 = vld [vmem:[#allocation2 + $0x20] sm:$0xff]
          %v570 = vld [vmem:[#allocation2 + $0x28] sm:$0xff]
          %v571 = vld [vmem:[#allocation2 + $0x30] sm:$0xff]
          %v572 = vld [vmem:[#allocation2 + $0x38] sm:$0xff]
          %v573 = vld [vmem:[%s320] sm:$0xf]
          %v574 = vld [vmem:[%s320 + $0x4] sm:$0xf]
          %v575 = vld [vmem:[%s320 + $0x8] sm:$0xf]
          %v576 = vld [vmem:[%s320 + $0xc] sm:$0xf]
          %v577 = vld [vmem:[%s320 + $0x10] sm:$0xf]
          %v578 = vld [vmem:[%s320 + $0x14] sm:$0xf]
          %v579 = vld [vmem:[%s320 + $0x18] sm:$0xf]
          %v580 = vld [vmem:[%s320 + $0x1c] sm:$0xf]
          %v581 = vld [vmem:[%s320 + $0x20] sm:$0xf]
          %v582 = vld [vmem:[%s320 + $0x24] sm:$0xf]
          %v583 = vld [vmem:[%s320 + $0x28] sm:$0xf]
          %v584 = vld [vmem:[%s320 + $0x2c] sm:$0xf]
          %v585 = vld [vmem:[%s320 + $0x30] sm:$0xf]
          %v586 = vld [vmem:[%s320 + $0x34] sm:$0xf]
          %v587 = vld [vmem:[%s320 + $0x38] sm:$0xf]
          %v588 = vld [vmem:[%s320 + $0x3c] sm:$0xf]
          %v589 = vld [vmem:[%s329] sm:$0xf]
          %v590 = vld [vmem:[%s329 + $0x4] sm:$0xf]
          %v591 = vld [vmem:[%s329 + $0x8] sm:$0xf]
          %v592 = vld [vmem:[%s329 + $0xc] sm:$0xf]
          %v593 = vld [vmem:[%s329 + $0x10] sm:$0xf]
          %v594 = vld [vmem:[%s329 + $0x14] sm:$0xf]
          %v595 = vld [vmem:[%s329 + $0x18] sm:$0xf]
          %v596 = vld [vmem:[%s329 + $0x1c] sm:$0xf]
          %v597 = vld [vmem:[%s329 + $0x20] sm:$0xf]
          %v598 = vld [vmem:[%s329 + $0x24] sm:$0xf]
          %v599 = vld [vmem:[%s329 + $0x28] sm:$0xf]
          %v600 = vld [vmem:[%s329 + $0x2c] sm:$0xf]
          %v601 = vld [vmem:[%s329 + $0x30] sm:$0xf]
          %v602 = vld [vmem:[%s329 + $0x34] sm:$0xf]
          %v603 = vld [vmem:[%s329 + $0x38] sm:$0xf]
          %v604 = vld [vmem:[%s329 + $0x3c] sm:$0xf]
          %v621 = vunpack.c.l.b16 %v573
          %v622 = vunpack.c.l.b16 %v574
          %v623 = vunpack.c.l.b16 %v575
          %v624 = vunpack.c.l.b16 %v576
          %v625 = vunpack.c.l.b16 %v577
          %v626 = vunpack.c.l.b16 %v578
          %v627 = vunpack.c.l.b16 %v579
          %v628 = vunpack.c.l.b16 %v580
          %v629 = vunpack.c.l.b16 %v581
          %v630 = vunpack.c.l.b16 %v582
          %v631 = vunpack.c.l.b16 %v583
          %v632 = vunpack.c.l.b16 %v584
          %v633 = vunpack.c.l.b16 %v585
          %v634 = vunpack.c.l.b16 %v586
          %v635 = vunpack.c.l.b16 %v587
          %v636 = vunpack.c.l.b16 %v588
          %v637 = vpack.c.b16 %v622, %v621
          %v638 = vpack.c.b16 %v624, %v623
          %v639 = vpack.c.b16 %v626, %v625
          %v640 = vpack.c.b16 %v628, %v627
          %v641 = vpack.c.b16 %v630, %v629
          %v642 = vpack.c.b16 %v632, %v631
          %v643 = vpack.c.b16 %v634, %v633
          %v644 = vpack.c.b16 %v636, %v635
          %vm645 = vcmask 523264
          %v647 = vsel %vm645, %v565, 0
          %v650 = vsel %vm645, %v566, 0
          %v653 = vsel %vm645, %v567, 0
          %v656 = vsel %vm645, %v568, 0
          %v659 = vsel %vm645, %v569, 0
          %v662 = vsel %vm645, %v570, 0
          %v665 = vsel %vm645, %v571, 0
          %v668 = vsel %vm645, %v572, 0
          %v671 = vsel %vm645, %v637, 0
          %v674 = vsel %vm645, %v638, 0
          %v677 = vsel %vm645, %v639, 0
          %v680 = vsel %vm645, %v640, 0
          %v683 = vsel %vm645, %v641, 0
          %v686 = vsel %vm645, %v642, 0
          %v689 = vsel %vm645, %v643, 0
          %v692 = vsel %vm645, %v644, 0
          %694 = vmatprep.subr.bf16.mxu0 0
          %695 = vmatpush1.bf16.xpose.msra.mxu0 %v671
          %696 = vmatprep.subr.bf16.mxu0 0
          %697 = vmatpush1.bf16.xpose.msra.mxu0 %v674
          %698 = vmatprep.subr.bf16.mxu0 0
          %699 = vmatpush1.bf16.xpose.msra.mxu0 %v677
          %700 = vmatprep.subr.bf16.mxu0 0
          %701 = vmatpush1.bf16.xpose.msra.mxu0 %v680
          %702 = vmatprep.subr.bf16.mxu0 0
          %703 = vmatpush1.bf16.xpose.msra.mxu0 %v683
          %704 = vmatprep.subr.bf16.mxu0 0
          %705 = vmatpush1.bf16.xpose.msra.mxu0 %v686
          %706 = vmatprep.subr.bf16.mxu0 0
          %707 = vmatpush1.bf16.xpose.msra.mxu0 %v689
          %708 = vmatprep.subr.bf16.mxu0 0
          %709 = vmatpush1.bf16.xpose.msra.mxu0 %v692
          %710 = vmatprep.subr.bf16.mxu0 0
          %711 = vmatpush1.bf16.xpose.msra.mxu0 0
          %712 = vmatprep.subr.bf16.mxu0 0
          %713 = vmatpush1.bf16.xpose.msra.mxu0 0
          %714 = vmatprep.subr.bf16.mxu0 0
          %715 = vmatpush1.bf16.xpose.msra.mxu0 0
          %716 = vmatprep.subr.bf16.mxu0 0
          %717 = vmatpush1.bf16.xpose.msra.mxu0 0
          %718 = vmatprep.subr.bf16.mxu0 0
          %719 = vmatpush1.bf16.xpose.msra.mxu0 0
          %720 = vmatprep.subr.bf16.mxu0 0
          %721 = vmatpush1.bf16.xpose.msra.mxu0 0
          %722 = vmatprep.subr.bf16.mxu0 0
          %723 = vmatpush1.bf16.xpose.msra.mxu0 0
          %724 = vmatprep.subr.bf16.mxu0 0
          %725 = vmatpush1.bf16.xpose.msra.mxu0 0
          %726 = vmatprep.mubr.bf16.mxu0 0
          %727 = vmatmul.mubr.bf16.gmra.mrb[0].mxu0 %v647
          %v728 = vpop.f32.mrb[0].mxu0
          %v729 = vadd.f32 0.0, %v728
          %v730 = vpop.f32.mrb[0].mxu0
          %v731 = vpop.f32.mrb[0].mxu0
          %v732 = vadd.f32 0.0, %v731
          %v733 = vpop.f32.mrb[0].mxu0
          %734 = vmatprep.mubr.bf16.mxu0 0
          %735 = vmatmul.mubr.bf16.gmra.mrb[0].mxu0 %v650
          %v736 = vpop.f32.mrb[0].mxu0
          %v737 = vadd.f32 0.0, %v736
          %v738 = vpop.f32.mrb[0].mxu0
          %v739 = vpop.f32.mrb[0].mxu0
          %v740 = vadd.f32 0.0, %v739
          %v741 = vpop.f32.mrb[0].mxu0
          %742 = vmatprep.mubr.bf16.mxu0 0
          %743 = vmatmul.mubr.bf16.gmra.mrb[0].mxu0 %v653
          %v744 = vpop.f32.mrb[0].mxu0
          %v745 = vadd.f32 0.0, %v744
          %v746 = vpop.f32.mrb[0].mxu0
          %v747 = vpop.f32.mrb[0].mxu0
          %v748 = vadd.f32 0.0, %v747
          %v749 = vpop.f32.mrb[0].mxu0
          %750 = vmatprep.mubr.bf16.mxu0 0
          %751 = vmatmul.mubr.bf16.gmra.mrb[0].mxu0 %v656
          %v752 = vpop.f32.mrb[0].mxu0
          %v753 = vadd.f32 0.0, %v752
          %v754 = vpop.f32.mrb[0].mxu0
          %v755 = vpop.f32.mrb[0].mxu0
          %v756 = vadd.f32 0.0, %v755
          %v757 = vpop.f32.mrb[0].mxu0
          %758 = vmatprep.mubr.bf16.mxu0 0
          %759 = vmatmul.mubr.bf16.gmra.mrb[0].mxu0 %v659
          %v760 = vpop.f32.mrb[0].mxu0
          %v761 = vadd.f32 0.0, %v760
          %v762 = vpop.f32.mrb[0].mxu0
          %v763 = vpop.f32.mrb[0].mxu0
          %v764 = vadd.f32 0.0, %v763
          %v765 = vpop.f32.mrb[0].mxu0
          %766 = vmatprep.mubr.bf16.mxu0 0
          %767 = vmatmul.mubr.bf16.gmra.mrb[0].mxu0 %v662
          %v768 = vpop.f32.mrb[0].mxu0
          %v769 = vadd.f32 0.0, %v768
          %v770 = vpop.f32.mrb[0].mxu0
          %v771 = vpop.f32.mrb[0].mxu0
          %v772 = vadd.f32 0.0, %v771
          %v773 = vpop.f32.mrb[0].mxu0
          %774 = vmatprep.mubr.bf16.mxu0 0
          %775 = vmatmul.mubr.bf16.gmra.mrb[0].mxu0 %v665
          %v776 = vpop.f32.mrb[0].mxu0
          %v777 = vadd.f32 0.0, %v776
          %v778 = vpop.f32.mrb[0].mxu0
          %v779 = vpop.f32.mrb[0].mxu0
          %v780 = vadd.f32 0.0, %v779
          %v781 = vpop.f32.mrb[0].mxu0
          %782 = vmatprep.mubr.bf16.mxu0 0
          %783 = vmatmul.mubr.bf16.gmra.mrb[0].mxu0 %v668
          %v784 = vpop.f32.mrb[0].mxu0
          %v785 = vadd.f32 0.0, %v784
          %v786 = vpop.f32.mrb[0].mxu0
          %v787 = vpop.f32.mrb[0].mxu0
          %v788 = vadd.f32 0.0, %v787
          %v789 = vpop.f32.mrb[0].mxu0
          %790 = vdwg.mxu0
          %v791 = vld [vmem:[#allocation3] sm:$0xff]
          %v792 = vld [vmem:[#allocation3 + $0x8] sm:$0xff]
          %v793 = vld [vmem:[#allocation3 + $0x10] sm:$0xff]
          %v794 = vld [vmem:[#allocation3 + $0x18] sm:$0xff]
          %v795 = vld [vmem:[#allocation3 + $0x20] sm:$0xff]
          %v796 = vld [vmem:[#allocation3 + $0x28] sm:$0xff]
          %v797 = vld [vmem:[#allocation3 + $0x30] sm:$0xff]
          %v798 = vld [vmem:[#allocation3 + $0x38] sm:$0xff]
          %v799 = vld [vmem:[#allocation3 + $0x40] sm:$0xff]
          %v800 = vld [vmem:[#allocation3 + $0x48] sm:$0xff]
          %v801 = vld [vmem:[#allocation3 + $0x50] sm:$0xff]
          %v802 = vld [vmem:[#allocation3 + $0x58] sm:$0xff]
          %v803 = vld [vmem:[#allocation3 + $0x60] sm:$0xff]
          %v804 = vld [vmem:[#allocation3 + $0x68] sm:$0xff]
          %v805 = vld [vmem:[#allocation3 + $0x70] sm:$0xff]
          %v806 = vld [vmem:[#allocation3 + $0x78] sm:$0xff]
          %807 = vmax.xlane.f32.xlu0 %v729
          %v808 = vpop.xlane.xlu0 %807
          %809 = vmax.xlane.f32.xlu0 %v732
          %v810 = vpop.xlane.xlu0 %809
          %811 = vmax.xlane.f32.xlu0 %v737
          %v812 = vpop.xlane.xlu0 %811
          %813 = vmax.xlane.f32.xlu0 %v740
          %v814 = vpop.xlane.xlu0 %813
          %815 = vmax.xlane.f32.xlu0 %v745
          %v816 = vpop.xlane.xlu0 %815
          %817 = vmax.xlane.f32.xlu0 %v748
          %v818 = vpop.xlane.xlu0 %817
          %819 = vmax.xlane.f32.xlu0 %v753
          %v820 = vpop.xlane.xlu0 %819
          %821 = vmax.xlane.f32.xlu0 %v756
          %v822 = vpop.xlane.xlu0 %821
          %823 = vmax.xlane.f32.xlu0 %v761
          %v824 = vpop.xlane.xlu0 %823
          %825 = vmax.xlane.f32.xlu0 %v764
          %v826 = vpop.xlane.xlu0 %825
          %827 = vmax.xlane.f32.xlu0 %v769
          %v828 = vpop.xlane.xlu0 %827
          %829 = vmax.xlane.f32.xlu0 %v772
          %v830 = vpop.xlane.xlu0 %829
          %831 = vmax.xlane.f32.xlu0 %v777
          %v832 = vpop.xlane.xlu0 %831
          %833 = vmax.xlane.f32.xlu0 %v780
          %v834 = vpop.xlane.xlu0 %833
          %835 = vmax.xlane.f32.xlu0 %v785
          %v836 = vpop.xlane.xlu0 %835
          %837 = vmax.xlane.f32.xlu0 %v788
          %v838 = vpop.xlane.xlu0 %837
          %v839 = vmax.f32 %v791, %v808
          %v840 = vmax.f32 %v792, %v810
          %v841 = vmax.f32 %v793, %v812
          %v842 = vmax.f32 %v794, %v814
          %v843 = vmax.f32 %v795, %v816
          %v844 = vmax.f32 %v796, %v818
          %v845 = vmax.f32 %v797, %v820
          %v846 = vmax.f32 %v798, %v822
          %v847 = vmax.f32 %v799, %v824
          %v848 = vmax.f32 %v800, %v826
          %v849 = vmax.f32 %v801, %v828
          %v850 = vmax.f32 %v802, %v830
          %v851 = vmax.f32 %v803, %v832
          %v852 = vmax.f32 %v804, %v834
          %v853 = vmax.f32 %v805, %v836
          %v854 = vmax.f32 %v806, %v838
          %v855 = vsub.f32 %v791, %v839
          %v856 = vsub.f32 %v792, %v840
          %v857 = vsub.f32 %v793, %v841
          %v858 = vsub.f32 %v794, %v842
          %v859 = vsub.f32 %v795, %v843
          %v860 = vsub.f32 %v796, %v844
          %v861 = vsub.f32 %v797, %v845
          %v862 = vsub.f32 %v798, %v846
          %v863 = vsub.f32 %v799, %v847
          %v864 = vsub.f32 %v800, %v848
          %v865 = vsub.f32 %v801, %v849
          %v866 = vsub.f32 %v802, %v850
          %v867 = vsub.f32 %v803, %v851
          %v868 = vsub.f32 %v804, %v852
          %v869 = vsub.f32 %v805, %v853
          %v870 = vsub.f32 %v806, %v854
          %v871 = vmul.f32 %v855, 1.442695
          %v872 = vpow.pop %v871
          %v873 = vmul.f32 %v856, 1.442695
          %v874 = vpow.pop %v873
          %v875 = vmul.f32 %v857, 1.442695
          %v876 = vpow.pop %v875
          %v877 = vmul.f32 %v858, 1.442695
          %v878 = vpow.pop %v877
          %v879 = vmul.f32 %v859, 1.442695
          %v880 = vpow.pop %v879
          %v881 = vmul.f32 %v860, 1.442695
          %v882 = vpow.pop %v881
          %v883 = vmul.f32 %v861, 1.442695
          %v884 = vpow.pop %v883
          %v885 = vmul.f32 %v862, 1.442695
          %v886 = vpow.pop %v885
          %v887 = vmul.f32 %v863, 1.442695
          %v888 = vpow.pop %v887
          %v889 = vmul.f32 %v864, 1.442695
          %v890 = vpow.pop %v889
          %v891 = vmul.f32 %v865, 1.442695
          %v892 = vpow.pop %v891
          %v893 = vmul.f32 %v866, 1.442695
          %v894 = vpow.pop %v893
          %v895 = vmul.f32 %v867, 1.442695
          %v896 = vpow.pop %v895
          %v897 = vmul.f32 %v868, 1.442695
          %v898 = vpow.pop %v897
          %v899 = vmul.f32 %v869, 1.442695
          %v900 = vpow.pop %v899
          %v901 = vmul.f32 %v870, 1.442695
          %v902 = vpow.pop %v901
          %904 = vset.pattern.permute.xlu0 0
          %905 = vperm.xlu0 %904, %v839
          %v906 = vpop.permute.xlu0 %905
          %909 = vset.pattern.permute.xlu0 0
          %910 = vperm.xlu0 %909, %v840
          %v911 = vpop.permute.xlu0 %910
          %914 = vset.pattern.permute.xlu0 0
          %915 = vperm.xlu0 %914, %v841
          %v916 = vpop.permute.xlu0 %915
          %919 = vset.pattern.permute.xlu0 0
          %920 = vperm.xlu0 %919, %v842
          %v921 = vpop.permute.xlu0 %920
          %924 = vset.pattern.permute.xlu0 0
          %925 = vperm.xlu0 %924, %v843
          %v926 = vpop.permute.xlu0 %925
          %929 = vset.pattern.permute.xlu0 0
          %930 = vperm.xlu0 %929, %v844
          %v931 = vpop.permute.xlu0 %930
          %934 = vset.pattern.permute.xlu0 0
          %935 = vperm.xlu0 %934, %v845
          %v936 = vpop.permute.xlu0 %935
          %939 = vset.pattern.permute.xlu0 0
          %940 = vperm.xlu0 %939, %v846
          %v941 = vpop.permute.xlu0 %940
          %944 = vset.pattern.permute.xlu0 0
          %945 = vperm.xlu0 %944, %v847
          %v946 = vpop.permute.xlu0 %945
          %949 = vset.pattern.permute.xlu0 0
          %950 = vperm.xlu0 %949, %v848
          %v951 = vpop.permute.xlu0 %950
          %954 = vset.pattern.permute.xlu0 0
          %955 = vperm.xlu0 %954, %v849
          %v956 = vpop.permute.xlu0 %955
          %959 = vset.pattern.permute.xlu0 0
          %960 = vperm.xlu0 %959, %v850
          %v961 = vpop.permute.xlu0 %960
          %964 = vset.pattern.permute.xlu0 0
          %965 = vperm.xlu0 %964, %v851
          %v966 = vpop.permute.xlu0 %965
          %969 = vset.pattern.permute.xlu0 0
          %970 = vperm.xlu0 %969, %v852
          %v971 = vpop.permute.xlu0 %970
          %974 = vset.pattern.permute.xlu0 0
          %975 = vperm.xlu0 %974, %v853
          %v976 = vpop.permute.xlu0 %975
          %979 = vset.pattern.permute.xlu0 0
          %980 = vperm.xlu0 %979, %v854
          %v981 = vpop.permute.xlu0 %980
          %v983 = vsub.f32 %v729, %v906
          %v984 = vsub.f32 %v732, %v911
          %v985 = vsub.f32 %v737, %v916
          %v986 = vsub.f32 %v740, %v921
          %v987 = vsub.f32 %v745, %v926
          %v988 = vsub.f32 %v748, %v931
          %v989 = vsub.f32 %v753, %v936
          %v990 = vsub.f32 %v756, %v941
          %v991 = vsub.f32 %v761, %v946
          %v992 = vsub.f32 %v764, %v951
          %v993 = vsub.f32 %v769, %v956
          %v994 = vsub.f32 %v772, %v961
          %v995 = vsub.f32 %v777, %v966
          %v996 = vsub.f32 %v780, %v971
          %v997 = vsub.f32 %v785, %v976
          %v998 = vsub.f32 %v788, %v981
          %v999 = vmul.f32 %v983, 1.442695
          %v1000 = vpow.pop %v999
          %v1001 = vmul.f32 %v984, 1.442695
          %v1002 = vpow.pop %v1001
          %v1003 = vmul.f32 %v985, 1.442695
          %v1004 = vpow.pop %v1003
          %v1005 = vmul.f32 %v986, 1.442695
          %v1006 = vpow.pop %v1005
          %v1007 = vmul.f32 %v987, 1.442695
          %v1008 = vpow.pop %v1007
          %v1009 = vmul.f32 %v988, 1.442695
          %v1010 = vpow.pop %v1009
          %v1011 = vmul.f32 %v989, 1.442695
          %v1012 = vpow.pop %v1011
          %v1013 = vmul.f32 %v990, 1.442695
          %v1014 = vpow.pop %v1013
          %v1015 = vmul.f32 %v991, 1.442695
          %v1016 = vpow.pop %v1015
          %v1017 = vmul.f32 %v992, 1.442695
          %v1018 = vpow.pop %v1017
          %v1019 = vmul.f32 %v993, 1.442695
          %v1020 = vpow.pop %v1019
          %v1021 = vmul.f32 %v994, 1.442695
          %v1022 = vpow.pop %v1021
          %v1023 = vmul.f32 %v995, 1.442695
          %v1024 = vpow.pop %v1023
          %v1025 = vmul.f32 %v996, 1.442695
          %v1026 = vpow.pop %v1025
          %v1027 = vmul.f32 %v997, 1.442695
          %v1028 = vpow.pop %v1027
          %v1029 = vmul.f32 %v998, 1.442695
          %v1030 = vpow.pop %v1029
          %1047 = vrot.lane.b32.xlu0 %v791, 127
          %v1048 = vpop.permute.xlu0 %1047
          %1049 = vrot.lane.b32.xlu0 %v792, 127
          %v1050 = vpop.permute.xlu0 %1049
          %1051 = vrot.lane.b32.xlu0 %v793, 127
          %v1052 = vpop.permute.xlu0 %1051
          %1053 = vrot.lane.b32.xlu0 %v794, 127
          %v1054 = vpop.permute.xlu0 %1053
          %1055 = vrot.lane.b32.xlu0 %v795, 127
          %v1056 = vpop.permute.xlu0 %1055
          %1057 = vrot.lane.b32.xlu0 %v796, 127
          %v1058 = vpop.permute.xlu0 %1057
          %1059 = vrot.lane.b32.xlu0 %v797, 127
          %v1060 = vpop.permute.xlu0 %1059
          %1061 = vrot.lane.b32.xlu0 %v798, 127
          %v1062 = vpop.permute.xlu0 %1061
          %1063 = vrot.lane.b32.xlu0 %v799, 127
          %v1064 = vpop.permute.xlu0 %1063
          %1065 = vrot.lane.b32.xlu0 %v800, 127
          %v1066 = vpop.permute.xlu0 %1065
          %1067 = vrot.lane.b32.xlu0 %v801, 127
          %v1068 = vpop.permute.xlu0 %1067
          %1069 = vrot.lane.b32.xlu0 %v802, 127
          %v1070 = vpop.permute.xlu0 %1069
          %1071 = vrot.lane.b32.xlu0 %v803, 127
          %v1072 = vpop.permute.xlu0 %1071
          %1073 = vrot.lane.b32.xlu0 %v804, 127
          %v1074 = vpop.permute.xlu0 %1073
          %1075 = vrot.lane.b32.xlu0 %v805, 127
          %v1076 = vpop.permute.xlu0 %1075
          %1077 = vrot.lane.b32.xlu0 %v806, 127
          %v1078 = vpop.permute.xlu0 %1077
          %v1095 = vmul.f32 %v872, %v1048
          %v1096 = vmul.f32 %v874, %v1050
          %v1097 = vmul.f32 %v876, %v1052
          %v1098 = vmul.f32 %v878, %v1054
          %v1099 = vmul.f32 %v880, %v1056
          %v1100 = vmul.f32 %v882, %v1058
          %v1101 = vmul.f32 %v884, %v1060
          %v1102 = vmul.f32 %v886, %v1062
          %v1103 = vmul.f32 %v888, %v1064
          %v1104 = vmul.f32 %v890, %v1066
          %v1105 = vmul.f32 %v892, %v1068
          %v1106 = vmul.f32 %v894, %v1070
          %v1107 = vmul.f32 %v896, %v1072
          %v1108 = vmul.f32 %v898, %v1074
          %v1109 = vmul.f32 %v900, %v1076
          %v1110 = vmul.f32 %v902, %v1078
          %1111 = vadd.xlane.f32.xlu0 %v1000
          %v1112 = vpop.xlane.xlu0 %1111
          %1113 = vadd.xlane.f32.xlu0 %v1002
          %v1114 = vpop.xlane.xlu0 %1113
          %1115 = vadd.xlane.f32.xlu0 %v1004
          %v1116 = vpop.xlane.xlu0 %1115
          %1117 = vadd.xlane.f32.xlu0 %v1006
          %v1118 = vpop.xlane.xlu0 %1117
          %1119 = vadd.xlane.f32.xlu0 %v1008
          %v1120 = vpop.xlane.xlu0 %1119
          %1121 = vadd.xlane.f32.xlu0 %v1010
          %v1122 = vpop.xlane.xlu0 %1121
          %1123 = vadd.xlane.f32.xlu0 %v1012
          %v1124 = vpop.xlane.xlu0 %1123
          %1125 = vadd.xlane.f32.xlu0 %v1014
          %v1126 = vpop.xlane.xlu0 %1125
          %1127 = vadd.xlane.f32.xlu0 %v1016
          %v1128 = vpop.xlane.xlu0 %1127
          %1129 = vadd.xlane.f32.xlu0 %v1018
          %v1130 = vpop.xlane.xlu0 %1129
          %1131 = vadd.xlane.f32.xlu0 %v1020
          %v1132 = vpop.xlane.xlu0 %1131
          %1133 = vadd.xlane.f32.xlu0 %v1022
          %v1134 = vpop.xlane.xlu0 %1133
          %1135 = vadd.xlane.f32.xlu0 %v1024
          %v1136 = vpop.xlane.xlu0 %1135
          %1137 = vadd.xlane.f32.xlu0 %v1026
          %v1138 = vpop.xlane.xlu0 %1137
          %1139 = vadd.xlane.f32.xlu0 %v1028
          %v1140 = vpop.xlane.xlu0 %1139
          %1141 = vadd.xlane.f32.xlu0 %v1030
          %v1142 = vpop.xlane.xlu0 %1141
          %v1143 = vadd.f32 %v1095, %v1112
          %v1144 = vadd.f32 %v1096, %v1114
          %v1145 = vadd.f32 %v1097, %v1116
          %v1146 = vadd.f32 %v1098, %v1118
          %v1147 = vadd.f32 %v1099, %v1120
          %v1148 = vadd.f32 %v1100, %v1122
          %v1149 = vadd.f32 %v1101, %v1124
          %v1150 = vadd.f32 %v1102, %v1126
          %v1151 = vadd.f32 %v1103, %v1128
          %v1152 = vadd.f32 %v1104, %v1130
          %v1153 = vadd.f32 %v1105, %v1132
          %v1154 = vadd.f32 %v1106, %v1134
          %v1155 = vadd.f32 %v1107, %v1136
          %v1156 = vadd.f32 %v1108, %v1138
          %v1157 = vadd.f32 %v1109, %v1140
          %v1158 = vadd.f32 %v1110, %v1142
          %1175 = vrot.lane.b32.xlu0 %v1143, 1
          %v1176 = vpop.permute.xlu0 %1175
          %1177 = vrot.lane.b32.xlu0 %v1144, 1
          %v1178 = vpop.permute.xlu0 %1177
          %1179 = vrot.lane.b32.xlu0 %v1145, 1
          %v1180 = vpop.permute.xlu0 %1179
          %1181 = vrot.lane.b32.xlu0 %v1146, 1
          %v1182 = vpop.permute.xlu0 %1181
          %1183 = vrot.lane.b32.xlu0 %v1147, 1
          %v1184 = vpop.permute.xlu0 %1183
          %1185 = vrot.lane.b32.xlu0 %v1148, 1
          %v1186 = vpop.permute.xlu0 %1185
          %1187 = vrot.lane.b32.xlu0 %v1149, 1
          %v1188 = vpop.permute.xlu0 %1187
          %1189 = vrot.lane.b32.xlu0 %v1150, 1
          %v1190 = vpop.permute.xlu0 %1189
          %1191 = vrot.lane.b32.xlu0 %v1151, 1
          %v1192 = vpop.permute.xlu0 %1191
          %1193 = vrot.lane.b32.xlu0 %v1152, 1
          %v1194 = vpop.permute.xlu0 %1193
          %1195 = vrot.lane.b32.xlu0 %v1153, 1
          %v1196 = vpop.permute.xlu0 %1195
          %1197 = vrot.lane.b32.xlu0 %v1154, 1
          %v1198 = vpop.permute.xlu0 %1197
          %1199 = vrot.lane.b32.xlu0 %v1155, 1
          %v1200 = vpop.permute.xlu0 %1199
          %1201 = vrot.lane.b32.xlu0 %v1156, 1
          %v1202 = vpop.permute.xlu0 %1201
          %1203 = vrot.lane.b32.xlu0 %v1157, 1
          %v1204 = vpop.permute.xlu0 %1203
          %1205 = vrot.lane.b32.xlu0 %v1158, 1
          %v1206 = vpop.permute.xlu0 %1205
          %vm1223 = vcmask 15368
          %1224 = vst.msk [vmem:[#allocation3] sm:$0xff] %vm1223, %v1176
          %1225 = vst.msk [vmem:[#allocation3 + $0x8] sm:$0xff] %vm1223, %v1178
          %1226 = vst.msk [vmem:[#allocation3 + $0x10] sm:$0xff] %vm1223, %v1180
          %1227 = vst.msk [vmem:[#allocation3 + $0x18] sm:$0xff] %vm1223, %v1182
          %1228 = vst.msk [vmem:[#allocation3 + $0x20] sm:$0xff] %vm1223, %v1184
          %1229 = vst.msk [vmem:[#allocation3 + $0x28] sm:$0xff] %vm1223, %v1186
          %1230 = vst.msk [vmem:[#allocation3 + $0x30] sm:$0xff] %vm1223, %v1188
          %1231 = vst.msk [vmem:[#allocation3 + $0x38] sm:$0xff] %vm1223, %v1190
          %1232 = vst.msk [vmem:[#allocation3 + $0x40] sm:$0xff] %vm1223, %v1192
          %1233 = vst.msk [vmem:[#allocation3 + $0x48] sm:$0xff] %vm1223, %v1194
          %1234 = vst.msk [vmem:[#allocation3 + $0x50] sm:$0xff] %vm1223, %v1196
          %1235 = vst.msk [vmem:[#allocation3 + $0x58] sm:$0xff] %vm1223, %v1198
          %1236 = vst.msk [vmem:[#allocation3 + $0x60] sm:$0xff] %vm1223, %v1200
          %1237 = vst.msk [vmem:[#allocation3 + $0x68] sm:$0xff] %vm1223, %v1202
          %1238 = vst.msk [vmem:[#allocation3 + $0x70] sm:$0xff] %vm1223, %v1204
          %1239 = vst.msk [vmem:[#allocation3 + $0x78] sm:$0xff] %vm1223, %v1206
          %v1240 = vld [vmem:[#allocation4] sm:$0xff]
          %v1241 = vld [vmem:[#allocation4 + $0x8] sm:$0xff]
          %v1242 = vld [vmem:[#allocation4 + $0x10] sm:$0xff]
          %v1243 = vld [vmem:[#allocation4 + $0x18] sm:$0xff]
          %v1244 = vld [vmem:[#allocation4 + $0x20] sm:$0xff]
          %v1245 = vld [vmem:[#allocation4 + $0x28] sm:$0xff]
          %v1246 = vld [vmem:[#allocation4 + $0x30] sm:$0xff]
          %v1247 = vld [vmem:[#allocation4 + $0x38] sm:$0xff]
          %v1248 = vld [vmem:[#allocation4 + $0x40] sm:$0xff]
          %v1249 = vld [vmem:[#allocation4 + $0x48] sm:$0xff]
          %v1250 = vld [vmem:[#allocation4 + $0x50] sm:$0xff]
          %v1251 = vld [vmem:[#allocation4 + $0x58] sm:$0xff]
          %v1252 = vld [vmem:[#allocation4 + $0x60] sm:$0xff]
          %v1253 = vld [vmem:[#allocation4 + $0x68] sm:$0xff]
          %v1254 = vld [vmem:[#allocation4 + $0x70] sm:$0xff]
          %v1255 = vld [vmem:[#allocation4 + $0x78] sm:$0xff]
          %1257 = vset.pattern.permute.xlu0 0
          %1258 = vperm.xlu0 %1257, %v872
          %v1259 = vpop.permute.xlu0 %1258
          %1262 = vset.pattern.permute.xlu0 0
          %1263 = vperm.xlu0 %1262, %v874
          %v1264 = vpop.permute.xlu0 %1263
          %1267 = vset.pattern.permute.xlu0 0
          %1268 = vperm.xlu0 %1267, %v876
          %v1269 = vpop.permute.xlu0 %1268
          %1272 = vset.pattern.permute.xlu0 0
          %1273 = vperm.xlu0 %1272, %v878
          %v1274 = vpop.permute.xlu0 %1273
          %1277 = vset.pattern.permute.xlu0 0
          %1278 = vperm.xlu0 %1277, %v880
          %v1279 = vpop.permute.xlu0 %1278
          %1282 = vset.pattern.permute.xlu0 0
          %1283 = vperm.xlu0 %1282, %v882
          %v1284 = vpop.permute.xlu0 %1283
          %1287 = vset.pattern.permute.xlu0 0
          %1288 = vperm.xlu0 %1287, %v884
          %v1289 = vpop.permute.xlu0 %1288
          %1292 = vset.pattern.permute.xlu0 0
          %1293 = vperm.xlu0 %1292, %v886
          %v1294 = vpop.permute.xlu0 %1293
          %1297 = vset.pattern.permute.xlu0 0
          %1298 = vperm.xlu0 %1297, %v888
          %v1299 = vpop.permute.xlu0 %1298
          %1302 = vset.pattern.permute.xlu0 0
          %1303 = vperm.xlu0 %1302, %v890
          %v1304 = vpop.permute.xlu0 %1303
          %1307 = vset.pattern.permute.xlu0 0
          %1308 = vperm.xlu0 %1307, %v892
          %v1309 = vpop.permute.xlu0 %1308
          %1312 = vset.pattern.permute.xlu0 0
          %1313 = vperm.xlu0 %1312, %v894
          %v1314 = vpop.permute.xlu0 %1313
          %1317 = vset.pattern.permute.xlu0 0
          %1318 = vperm.xlu0 %1317, %v896
          %v1319 = vpop.permute.xlu0 %1318
          %1322 = vset.pattern.permute.xlu0 0
          %1323 = vperm.xlu0 %1322, %v898
          %v1324 = vpop.permute.xlu0 %1323
          %1327 = vset.pattern.permute.xlu0 0
          %1328 = vperm.xlu0 %1327, %v900
          %v1329 = vpop.permute.xlu0 %1328
          %1332 = vset.pattern.permute.xlu0 0
          %1333 = vperm.xlu0 %1332, %v902
          %v1334 = vpop.permute.xlu0 %1333
          %v1336 = vmul.f32 %v1259, %v1240
          %v1337 = vmul.f32 %v1264, %v1241
          %v1338 = vmul.f32 %v1269, %v1242
          %v1339 = vmul.f32 %v1274, %v1243
          %v1340 = vmul.f32 %v1279, %v1244
          %v1341 = vmul.f32 %v1284, %v1245
          %v1342 = vmul.f32 %v1289, %v1246
          %v1343 = vmul.f32 %v1294, %v1247
          %v1344 = vmul.f32 %v1299, %v1248
          %v1345 = vmul.f32 %v1304, %v1249
          %v1346 = vmul.f32 %v1309, %v1250
          %v1347 = vmul.f32 %v1314, %v1251
          %v1348 = vmul.f32 %v1319, %v1252
          %v1349 = vmul.f32 %v1324, %v1253
          %v1350 = vmul.f32 %v1329, %v1254
          %v1351 = vmul.f32 %v1334, %v1255
          %v1352 = vpack.c.bf16 %v1002, %v1000
          %v1353 = vpack.c.bf16 %v1006, %v1004
          %v1354 = vpack.c.bf16 %v1010, %v1008
          %v1355 = vpack.c.bf16 %v1014, %v1012
          %v1356 = vpack.c.bf16 %v1018, %v1016
          %v1357 = vpack.c.bf16 %v1022, %v1020
          %v1358 = vpack.c.bf16 %v1026, %v1024
          %v1359 = vpack.c.bf16 %v1030, %v1028
          %v1376 = vunpack.c.l.b16 %v589
          %v1377 = vunpack.c.l.b16 %v590
          %v1378 = vunpack.c.l.b16 %v591
          %v1379 = vunpack.c.l.b16 %v592
          %v1380 = vunpack.c.l.b16 %v593
          %v1381 = vunpack.c.l.b16 %v594
          %v1382 = vunpack.c.l.b16 %v595
          %v1383 = vunpack.c.l.b16 %v596
          %v1384 = vunpack.c.l.b16 %v597
          %v1385 = vunpack.c.l.b16 %v598
          %v1386 = vunpack.c.l.b16 %v599
          %v1387 = vunpack.c.l.b16 %v600
          %v1388 = vunpack.c.l.b16 %v601
          %v1389 = vunpack.c.l.b16 %v602
          %v1390 = vunpack.c.l.b16 %v603
          %v1391 = vunpack.c.l.b16 %v604
          %v1392 = vpack.c.b16 %v1377, %v1376
          %v1393 = vpack.c.b16 %v1379, %v1378
          %v1394 = vpack.c.b16 %v1381, %v1380
          %v1395 = vpack.c.b16 %v1383, %v1382
          %v1396 = vpack.c.b16 %v1385, %v1384
          %v1397 = vpack.c.b16 %v1387, %v1386
          %v1398 = vpack.c.b16 %v1389, %v1388
          %v1399 = vpack.c.b16 %v1391, %v1390
          %1408 = vmatprep.subr.bf16.mxu0 0
          %1409 = vmatpush1.bf16.msra.mxu0 %v1392
          %1410 = vmatprep.subr.bf16.mxu0 0
          %1411 = vmatpush1.bf16.msra.mxu0 %v1393
          %1412 = vmatprep.subr.bf16.mxu0 0
          %1413 = vmatpush1.bf16.msra.mxu0 %v1394
          %1414 = vmatprep.subr.bf16.mxu0 0
          %1415 = vmatpush1.bf16.msra.mxu0 %v1395
          %1416 = vmatprep.subr.bf16.mxu0 0
          %1417 = vmatpush1.bf16.msra.mxu0 %v1396
          %1418 = vmatprep.subr.bf16.mxu0 0
          %1419 = vmatpush1.bf16.msra.mxu0 %v1397
          %1420 = vmatprep.subr.bf16.mxu0 0
          %1421 = vmatpush1.bf16.msra.mxu0 %v1398
          %1422 = vmatprep.subr.bf16.mxu0 0
          %1423 = vmatpush1.bf16.msra.mxu0 %v1399
          %1424 = vmatprep.subr.bf16.mxu0 0
          %1425 = vmatpush1.bf16.msra.mxu0 0
          %1426 = vmatprep.subr.bf16.mxu0 0
          %1427 = vmatpush1.bf16.msra.mxu0 0
          %1428 = vmatprep.subr.bf16.mxu0 0
          %1429 = vmatpush1.bf16.msra.mxu0 0
          %1430 = vmatprep.subr.bf16.mxu0 0
          %1431 = vmatpush1.bf16.msra.mxu0 0
          %1432 = vmatprep.subr.bf16.mxu0 0
          %1433 = vmatpush1.bf16.msra.mxu0 0
          %1434 = vmatprep.subr.bf16.mxu0 0
          %1435 = vmatpush1.bf16.msra.mxu0 0
          %1436 = vmatprep.subr.bf16.mxu0 0
          %1437 = vmatpush1.bf16.msra.mxu0 0
          %1438 = vmatprep.subr.bf16.mxu0 0
          %1439 = vmatpush1.bf16.msra.mxu0 0
          %1440 = vmatprep.mubr.bf16.mxu0 0
          %1441 = vmatmul.mubr.bf16.gmra.mrb[0].mxu0 %v1352
          %v1442 = vpop.f32.mrb[0].mxu0
          %v1443 = vadd.f32 0.0, %v1442
          %v1444 = vpop.f32.mrb[0].mxu0
          %v1445 = vpop.f32.mrb[0].mxu0
          %v1446 = vadd.f32 0.0, %v1445
          %v1447 = vpop.f32.mrb[0].mxu0
          %1448 = vmatprep.mubr.bf16.mxu0 0
          %1449 = vmatmul.mubr.bf16.gmra.mrb[0].mxu0 %v1353
          %v1450 = vpop.f32.mrb[0].mxu0
          %v1451 = vadd.f32 0.0, %v1450
          %v1452 = vpop.f32.mrb[0].mxu0
          %v1453 = vpop.f32.mrb[0].mxu0
          %v1454 = vadd.f32 0.0, %v1453
          %v1455 = vpop.f32.mrb[0].mxu0
          %1456 = vmatprep.mubr.bf16.mxu0 0
          %1457 = vmatmul.mubr.bf16.gmra.mrb[0].mxu0 %v1354
          %v1458 = vpop.f32.mrb[0].mxu0
          %v1459 = vadd.f32 0.0, %v1458
          %v1460 = vpop.f32.mrb[0].mxu0
          %v1461 = vpop.f32.mrb[0].mxu0
          %v1462 = vadd.f32 0.0, %v1461
          %v1463 = vpop.f32.mrb[0].mxu0
          %1464 = vmatprep.mubr.bf16.mxu0 0
          %1465 = vmatmul.mubr.bf16.gmra.mrb[0].mxu0 %v1355
          %v1466 = vpop.f32.mrb[0].mxu0
          %v1467 = vadd.f32 0.0, %v1466
          %v1468 = vpop.f32.mrb[0].mxu0
          %v1469 = vpop.f32.mrb[0].mxu0
          %v1470 = vadd.f32 0.0, %v1469
          %v1471 = vpop.f32.mrb[0].mxu0
          %1472 = vmatprep.mubr.bf16.mxu0 0
          %1473 = vmatmul.mubr.bf16.gmra.mrb[0].mxu0 %v1356
          %v1474 = vpop.f32.mrb[0].mxu0
          %v1475 = vadd.f32 0.0, %v1474
          %v1476 = vpop.f32.mrb[0].mxu0
          %v1477 = vpop.f32.mrb[0].mxu0
          %v1478 = vadd.f32 0.0, %v1477
          %v1479 = vpop.f32.mrb[0].mxu0
          %1480 = vmatprep.mubr.bf16.mxu0 0
          %1481 = vmatmul.mubr.bf16.gmra.mrb[0].mxu0 %v1357
          %v1482 = vpop.f32.mrb[0].mxu0
          %v1483 = vadd.f32 0.0, %v1482
          %v1484 = vpop.f32.mrb[0].mxu0
          %v1485 = vpop.f32.mrb[0].mxu0
          %v1486 = vadd.f32 0.0, %v1485
          %v1487 = vpop.f32.mrb[0].mxu0
          %1488 = vmatprep.mubr.bf16.mxu0 0
          %1489 = vmatmul.mubr.bf16.gmra.mrb[0].mxu0 %v1358
          %v1490 = vpop.f32.mrb[0].mxu0
          %v1491 = vadd.f32 0.0, %v1490
          %v1492 = vpop.f32.mrb[0].mxu0
          %v1493 = vpop.f32.mrb[0].mxu0
          %v1494 = vadd.f32 0.0, %v1493
          %v1495 = vpop.f32.mrb[0].mxu0
          %1496 = vmatprep.mubr.bf16.mxu0 0
          %1497 = vmatmul.mubr.bf16.gmra.mrb[0].mxu0 %v1359
          %v1498 = vpop.f32.mrb[0].mxu0
          %v1499 = vadd.f32 0.0, %v1498
          %v1500 = vpop.f32.mrb[0].mxu0
          %v1501 = vpop.f32.mrb[0].mxu0
          %v1502 = vadd.f32 0.0, %v1501
          %v1503 = vpop.f32.mrb[0].mxu0
          %1504 = vdwg.mxu0
          %v1505 = vadd.f32 %v1336, %v1443
          %v1506 = vadd.f32 %v1337, %v1446
          %v1507 = vadd.f32 %v1338, %v1451
          %v1508 = vadd.f32 %v1339, %v1454
          %v1509 = vadd.f32 %v1340, %v1459
          %v1510 = vadd.f32 %v1341, %v1462
          %v1511 = vadd.f32 %v1342, %v1467
          %v1512 = vadd.f32 %v1343, %v1470
          %v1513 = vadd.f32 %v1344, %v1475
          %v1514 = vadd.f32 %v1345, %v1478
          %v1515 = vadd.f32 %v1346, %v1483
          %v1516 = vadd.f32 %v1347, %v1486
          %v1517 = vadd.f32 %v1348, %v1491
          %v1518 = vadd.f32 %v1349, %v1494
          %v1519 = vadd.f32 %v1350, %v1499
          %v1520 = vadd.f32 %v1351, %v1502
          %1521 = vst.msk [vmem:[#allocation4] sm:$0xff] %vm645, %v1505
          %1522 = vst.msk [vmem:[#allocation4 + $0x8] sm:$0xff] %vm645, %v1506
          %1523 = vst.msk [vmem:[#allocation4 + $0x10] sm:$0xff] %vm645, %v1507
          %1524 = vst.msk [vmem:[#allocation4 + $0x18] sm:$0xff] %vm645, %v1508
          %1525 = vst.msk [vmem:[#allocation4 + $0x20] sm:$0xff] %vm645, %v1509
          %1526 = vst.msk [vmem:[#allocation4 + $0x28] sm:$0xff] %vm645, %v1510
          %1527 = vst.msk [vmem:[#allocation4 + $0x30] sm:$0xff] %vm645, %v1511
          %1528 = vst.msk [vmem:[#allocation4 + $0x38] sm:$0xff] %vm645, %v1512
          %1529 = vst.msk [vmem:[#allocation4 + $0x40] sm:$0xff] %vm645, %v1513
          %1530 = vst.msk [vmem:[#allocation4 + $0x48] sm:$0xff] %vm645, %v1514
          %1531 = vst.msk [vmem:[#allocation4 + $0x50] sm:$0xff] %vm645, %v1515
          %1532 = vst.msk [vmem:[#allocation4 + $0x58] sm:$0xff] %vm645, %v1516
          %1533 = vst.msk [vmem:[#allocation4 + $0x60] sm:$0xff] %vm645, %v1517
          %1534 = vst.msk [vmem:[#allocation4 + $0x68] sm:$0xff] %vm645, %v1518
          %1535 = vst.msk [vmem:[#allocation4 + $0x70] sm:$0xff] %vm645, %v1519
          %1536 = vst.msk [vmem:[#allocation4 + $0x78] sm:$0xff] %vm645, %v1520
          %vm1537 = vcmask 7168
          %1538 = vst.msk [vmem:[#allocation3] sm:$0xff] %vm1537, %v839
          %1539 = vst.msk [vmem:[#allocation3 + $0x8] sm:$0xff] %vm1537, %v840
          %1540 = vst.msk [vmem:[#allocation3 + $0x10] sm:$0xff] %vm1537, %v841
          %1541 = vst.msk [vmem:[#allocation3 + $0x18] sm:$0xff] %vm1537, %v842
          %1542 = vst.msk [vmem:[#allocation3 + $0x20] sm:$0xff] %vm1537, %v843
          %1543 = vst.msk [vmem:[#allocation3 + $0x28] sm:$0xff] %vm1537, %v844
          %1544 = vst.msk [vmem:[#allocation3 + $0x30] sm:$0xff] %vm1537, %v845
          %1545 = vst.msk [vmem:[#allocation3 + $0x38] sm:$0xff] %vm1537, %v846
          %1546 = vst.msk [vmem:[#allocation3 + $0x40] sm:$0xff] %vm1537, %v847
          %1547 = vst.msk [vmem:[#allocation3 + $0x48] sm:$0xff] %vm1537, %v848
          %1548 = vst.msk [vmem:[#allocation3 + $0x50] sm:$0xff] %vm1537, %v849
          %1549 = vst.msk [vmem:[#allocation3 + $0x58] sm:$0xff] %vm1537, %v850
          %1550 = vst.msk [vmem:[#allocation3 + $0x60] sm:$0xff] %vm1537, %v851
          %1551 = vst.msk [vmem:[#allocation3 + $0x68] sm:$0xff] %vm1537, %v852
          %1552 = vst.msk [vmem:[#allocation3 + $0x70] sm:$0xff] %vm1537, %v853
          %1553 = vst.msk [vmem:[#allocation3 + $0x78] sm:$0xff] %vm1537, %v854
          %v1554 = vld [vmem:[#allocation2] sm:$0xff]
          %v1555 = vld [vmem:[#allocation2 + $0x8] sm:$0xff]
          %v1556 = vld [vmem:[#allocation2 + $0x10] sm:$0xff]
          %v1557 = vld [vmem:[#allocation2 + $0x18] sm:$0xff]
          %v1558 = vld [vmem:[#allocation2 + $0x20] sm:$0xff]
          %v1559 = vld [vmem:[#allocation2 + $0x28] sm:$0xff]
          %v1560 = vld [vmem:[#allocation2 + $0x30] sm:$0xff]
          %v1561 = vld [vmem:[#allocation2 + $0x38] sm:$0xff]
          %v1562 = vld [vmem:[%s320] sm:$0xf]
          %v1563 = vld [vmem:[%s320 + $0x4] sm:$0xf]
          %v1564 = vld [vmem:[%s320 + $0x8] sm:$0xf]
          %v1565 = vld [vmem:[%s320 + $0xc] sm:$0xf]
          %v1566 = vld [vmem:[%s320 + $0x10] sm:$0xf]
          %v1567 = vld [vmem:[%s320 + $0x14] sm:$0xf]
          %v1568 = vld [vmem:[%s320 + $0x18] sm:$0xf]
          %v1569 = vld [vmem:[%s320 + $0x1c] sm:$0xf]
          %v1570 = vld [vmem:[%s320 + $0x20] sm:$0xf]
          %v1571 = vld [vmem:[%s320 + $0x24] sm:$0xf]
          %v1572 = vld [vmem:[%s320 + $0x28] sm:$0xf]
          %v1573 = vld [vmem:[%s320 + $0x2c] sm:$0xf]
          %v1574 = vld [vmem:[%s320 + $0x30] sm:$0xf]
          %v1575 = vld [vmem:[%s320 + $0x34] sm:$0xf]
          %v1576 = vld [vmem:[%s320 + $0x38] sm:$0xf]
          %v1577 = vld [vmem:[%s320 + $0x3c] sm:$0xf]
          %v1578 = vld [vmem:[%s329] sm:$0xf]
          %v1579 = vld [vmem:[%s329 + $0x4] sm:$0xf]
          %v1580 = vld [vmem:[%s329 + $0x8] sm:$0xf]
          %v1581 = vld [vmem:[%s329 + $0xc] sm:$0xf]
          %v1582 = vld [vmem:[%s329 + $0x10] sm:$0xf]
          %v1583 = vld [vmem:[%s329 + $0x14] sm:$0xf]
          %v1584 = vld [vmem:[%s329 + $0x18] sm:$0xf]
          %v1585 = vld [vmem:[%s329 + $0x1c] sm:$0xf]
          %v1586 = vld [vmem:[%s329 + $0x20] sm:$0xf]
          %v1587 = vld [vmem:[%s329 + $0x24] sm:$0xf]
          %v1588 = vld [vmem:[%s329 + $0x28] sm:$0xf]
          %v1589 = vld [vmem:[%s329 + $0x2c] sm:$0xf]
          %v1590 = vld [vmem:[%s329 + $0x30] sm:$0xf]
          %v1591 = vld [vmem:[%s329 + $0x34] sm:$0xf]
          %v1592 = vld [vmem:[%s329 + $0x38] sm:$0xf]
          %v1593 = vld [vmem:[%s329 + $0x3c] sm:$0xf]
          %1602 = vrot.lane.b32.xlu0 %v1554, 64
          %v1603 = vpop.permute.xlu0 %1602
          %1604 = vrot.lane.b32.xlu0 %v1555, 64
          %v1605 = vpop.permute.xlu0 %1604
          %1606 = vrot.lane.b32.xlu0 %v1556, 64
          %v1607 = vpop.permute.xlu0 %1606
          %1608 = vrot.lane.b32.xlu0 %v1557, 64
          %v1609 = vpop.permute.xlu0 %1608
          %1610 = vrot.lane.b32.xlu0 %v1558, 64
          %v1611 = vpop.permute.xlu0 %1610
          %1612 = vrot.lane.b32.xlu0 %v1559, 64
          %v1613 = vpop.permute.xlu0 %1612
          %1614 = vrot.lane.b32.xlu0 %v1560, 64
          %v1615 = vpop.permute.xlu0 %1614
          %1616 = vrot.lane.b32.xlu0 %v1561, 64
          %v1617 = vpop.permute.xlu0 %1616
          %v1634 = vunpack.c.l.b16 %v1562
          %v1635 = vunpack.c.l.b16 %v1563
          %v1636 = vunpack.c.l.b16 %v1564
          %v1637 = vunpack.c.l.b16 %v1565
          %v1638 = vunpack.c.l.b16 %v1566
          %v1639 = vunpack.c.l.b16 %v1567
          %v1640 = vunpack.c.l.b16 %v1568
          %v1641 = vunpack.c.l.b16 %v1569
          %v1642 = vunpack.c.l.b16 %v1570
          %v1643 = vunpack.c.l.b16 %v1571
          %v1644 = vunpack.c.l.b16 %v1572
          %v1645 = vunpack.c.l.b16 %v1573
          %v1646 = vunpack.c.l.b16 %v1574
          %v1647 = vunpack.c.l.b16 %v1575
          %v1648 = vunpack.c.l.b16 %v1576
          %v1649 = vunpack.c.l.b16 %v1577
          %v1650 = vpack.c.b16 %v1635, %v1634
          %v1651 = vpack.c.b16 %v1637, %v1636
          %v1652 = vpack.c.b16 %v1639, %v1638
          %v1653 = vpack.c.b16 %v1641, %v1640
          %v1654 = vpack.c.b16 %v1643, %v1642
          %v1655 = vpack.c.b16 %v1645, %v1644
          %v1656 = vpack.c.b16 %v1647, %v1646
          %v1657 = vpack.c.b16 %v1649, %v1648
          %1658 = vrot.lane.b32.xlu0 %v1650, 64
          %v1659 = vpop.permute.xlu0 %1658
          %1660 = vrot.lane.b32.xlu0 %v1651, 64
          %v1661 = vpop.permute.xlu0 %1660
          %1662 = vrot.lane.b32.xlu0 %v1652, 64
          %v1663 = vpop.permute.xlu0 %1662
          %1664 = vrot.lane.b32.xlu0 %v1653, 64
          %v1665 = vpop.permute.xlu0 %1664
          %1666 = vrot.lane.b32.xlu0 %v1654, 64
          %v1667 = vpop.permute.xlu0 %1666
          %1668 = vrot.lane.b32.xlu0 %v1655, 64
          %v1669 = vpop.permute.xlu0 %1668
          %1670 = vrot.lane.b32.xlu0 %v1656, 64
          %v1671 = vpop.permute.xlu0 %1670
          %1672 = vrot.lane.b32.xlu0 %v1657, 64
          %v1673 = vpop.permute.xlu0 %1672
          %v1675 = vsel %vm645, %v1603, 0
          %v1678 = vsel %vm645, %v1605, 0
          %v1681 = vsel %vm645, %v1607, 0
          %v1684 = vsel %vm645, %v1609, 0
          %v1687 = vsel %vm645, %v1611, 0
          %v1690 = vsel %vm645, %v1613, 0
          %v1693 = vsel %vm645, %v1615, 0
          %v1696 = vsel %vm645, %v1617, 0
          %v1699 = vsel %vm645, %v1659, 0
          %v1702 = vsel %vm645, %v1661, 0
          %v1705 = vsel %vm645, %v1663, 0
          %v1708 = vsel %vm645, %v1665, 0
          %v1711 = vsel %vm645, %v1667, 0
          %v1714 = vsel %vm645, %v1669, 0
          %v1717 = vsel %vm645, %v1671, 0
          %v1720 = vsel %vm645, %v1673, 0
          %1722 = vmatprep.subr.bf16.mxu0 0
          %1723 = vmatpush1.bf16.xpose.msra.mxu0 %v1699
          %1724 = vmatprep.subr.bf16.mxu0 0
          %1725 = vmatpush1.bf16.xpose.msra.mxu0 %v1702
          %1726 = vmatprep.subr.bf16.mxu0 0
          %1727 = vmatpush1.bf16.xpose.msra.mxu0 %v1705
          %1728 = vmatprep.subr.bf16.mxu0 0
          %1729 = vmatpush1.bf16.xpose.msra.mxu0 %v1708
          %1730 = vmatprep.subr.bf16.mxu0 0
          %1731 = vmatpush1.bf16.xpose.msra.mxu0 %v1711
          %1732 = vmatprep.subr.bf16.mxu0 0
          %1733 = vmatpush1.bf16.xpose.msra.mxu0 %v1714
          %1734 = vmatprep.subr.bf16.mxu0 0
          %1735 = vmatpush1.bf16.xpose.msra.mxu0 %v1717
          %1736 = vmatprep.subr.bf16.mxu0 0
          %1737 = vmatpush1.bf16.xpose.msra.mxu0 %v1720
          %1738 = vmatprep.subr.bf16.mxu0 0
          %1739 = vmatpush1.bf16.xpose.msra.mxu0 0
          %1740 = vmatprep.subr.bf16.mxu0 0
          %1741 = vmatpush1.bf16.xpose.msra.mxu0 0
          %1742 = vmatprep.subr.bf16.mxu0 0
          %1743 = vmatpush1.bf16.xpose.msra.mxu0 0
          %1744 = vmatprep.subr.bf16.mxu0 0
          %1745 = vmatpush1.bf16.xpose.msra.mxu0 0
          %1746 = vmatprep.subr.bf16.mxu0 0
          %1747 = vmatpush1.bf16.xpose.msra.mxu0 0
          %1748 = vmatprep.subr.bf16.mxu0 0
          %1749 = vmatpush1.bf16.xpose.msra.mxu0 0
          %1750 = vmatprep.subr.bf16.mxu0 0
          %1751 = vmatpush1.bf16.xpose.msra.mxu0 0
          %1752 = vmatprep.subr.bf16.mxu0 0
          %1753 = vmatpush1.bf16.xpose.msra.mxu0 0
          %1754 = vmatprep.mubr.bf16.mxu0 0
          %1755 = vmatmul.mubr.bf16.gmra.mrb[0].mxu0 %v1675
          %v1756 = vpop.f32.mrb[0].mxu0
          %v1757 = vadd.f32 0.0, %v1756
          %v1758 = vpop.f32.mrb[0].mxu0
          %v1759 = vpop.f32.mrb[0].mxu0
          %v1760 = vadd.f32 0.0, %v1759
          %v1761 = vpop.f32.mrb[0].mxu0
          %1762 = vmatprep.mubr.bf16.mxu0 0
          %1763 = vmatmul.mubr.bf16.gmra.mrb[0].mxu0 %v1678
          %v1764 = vpop.f32.mrb[0].mxu0
          %v1765 = vadd.f32 0.0, %v1764
          %v1766 = vpop.f32.mrb[0].mxu0
          %v1767 = vpop.f32.mrb[0].mxu0
          %v1768 = vadd.f32 0.0, %v1767
          %v1769 = vpop.f32.mrb[0].mxu0
          %1770 = vmatprep.mubr.bf16.mxu0 0
          %1771 = vmatmul.mubr.bf16.gmra.mrb[0].mxu0 %v1681
          %v1772 = vpop.f32.mrb[0].mxu0
          %v1773 = vadd.f32 0.0, %v1772
          %v1774 = vpop.f32.mrb[0].mxu0
          %v1775 = vpop.f32.mrb[0].mxu0
          %v1776 = vadd.f32 0.0, %v1775
          %v1777 = vpop.f32.mrb[0].mxu0
          %1778 = vmatprep.mubr.bf16.mxu0 0
          %1779 = vmatmul.mubr.bf16.gmra.mrb[0].mxu0 %v1684
          %v1780 = vpop.f32.mrb[0].mxu0
          %v1781 = vadd.f32 0.0, %v1780
          %v1782 = vpop.f32.mrb[0].mxu0
          %v1783 = vpop.f32.mrb[0].mxu0
          %v1784 = vadd.f32 0.0, %v1783
          %v1785 = vpop.f32.mrb[0].mxu0
          %1786 = vmatprep.mubr.bf16.mxu0 0
          %1787 = vmatmul.mubr.bf16.gmra.mrb[0].mxu0 %v1687
          %v1788 = vpop.f32.mrb[0].mxu0
          %v1789 = vadd.f32 0.0, %v1788
          %v1790 = vpop.f32.mrb[0].mxu0
          %v1791 = vpop.f32.mrb[0].mxu0
          %v1792 = vadd.f32 0.0, %v1791
          %v1793 = vpop.f32.mrb[0].mxu0
          %1794 = vmatprep.mubr.bf16.mxu0 0
          %1795 = vmatmul.mubr.bf16.gmra.mrb[0].mxu0 %v1690
          %v1796 = vpop.f32.mrb[0].mxu0
          %v1797 = vadd.f32 0.0, %v1796
          %v1798 = vpop.f32.mrb[0].mxu0
          %v1799 = vpop.f32.mrb[0].mxu0
          %v1800 = vadd.f32 0.0, %v1799
          %v1801 = vpop.f32.mrb[0].mxu0
          %1802 = vmatprep.mubr.bf16.mxu0 0
          %1803 = vmatmul.mubr.bf16.gmra.mrb[0].mxu0 %v1693
          %v1804 = vpop.f32.mrb[0].mxu0
          %v1805 = vadd.f32 0.0, %v1804
          %v1806 = vpop.f32.mrb[0].mxu0
          %v1807 = vpop.f32.mrb[0].mxu0
          %v1808 = vadd.f32 0.0, %v1807
          %v1809 = vpop.f32.mrb[0].mxu0
          %1810 = vmatprep.mubr.bf16.mxu0 0
          %1811 = vmatmul.mubr.bf16.gmra.mrb[0].mxu0 %v1696
          %v1812 = vpop.f32.mrb[0].mxu0
          %v1813 = vadd.f32 0.0, %v1812
          %v1814 = vpop.f32.mrb[0].mxu0
          %v1815 = vpop.f32.mrb[0].mxu0
          %v1816 = vadd.f32 0.0, %v1815
          %v1817 = vpop.f32.mrb[0].mxu0
          %1818 = vdwg.mxu0
          %s1819 = scalar_lea.vmem [#allocation3], 128
          %v1820 = vld [vmem:[%s1819] sm:$0xff]
          %v1821 = vld [vmem:[%s1819 + $0x8] sm:$0xff]
          %v1822 = vld [vmem:[%s1819 + $0x10] sm:$0xff]
          %v1823 = vld [vmem:[%s1819 + $0x18] sm:$0xff]
          %v1824 = vld [vmem:[%s1819 + $0x20] sm:$0xff]
          %v1825 = vld [vmem:[%s1819 + $0x28] sm:$0xff]
          %v1826 = vld [vmem:[%s1819 + $0x30] sm:$0xff]
          %v1827 = vld [vmem:[%s1819 + $0x38] sm:$0xff]
          %v1828 = vld [vmem:[%s1819 + $0x40] sm:$0xff]
          %v1829 = vld [vmem:[%s1819 + $0x48] sm:$0xff]
          %v1830 = vld [vmem:[%s1819 + $0x50] sm:$0xff]
          %v1831 = vld [vmem:[%s1819 + $0x58] sm:$0xff]
          %v1832 = vld [vmem:[%s1819 + $0x60] sm:$0xff]
          %v1833 = vld [vmem:[%s1819 + $0x68] sm:$0xff]
          %v1834 = vld [vmem:[%s1819 + $0x70] sm:$0xff]
          %v1835 = vld [vmem:[%s1819 + $0x78] sm:$0xff]
          %1836 = vmax.xlane.f32.xlu0 %v1757
          %v1837 = vpop.xlane.xlu0 %1836
          %1838 = vmax.xlane.f32.xlu0 %v1760
          %v1839 = vpop.xlane.xlu0 %1838
          %1840 = vmax.xlane.f32.xlu0 %v1765
          %v1841 = vpop.xlane.xlu0 %1840
          %1842 = vmax.xlane.f32.xlu0 %v1768
          %v1843 = vpop.xlane.xlu0 %1842
          %1844 = vmax.xlane.f32.xlu0 %v1773
          %v1845 = vpop.xlane.xlu0 %1844
          %1846 = vmax.xlane.f32.xlu0 %v1776
          %v1847 = vpop.xlane.xlu0 %1846
          %1848 = vmax.xlane.f32.xlu0 %v1781
          %v1849 = vpop.xlane.xlu0 %1848
          %1850 = vmax.xlane.f32.xlu0 %v1784
          %v1851 = vpop.xlane.xlu0 %1850
          %1852 = vmax.xlane.f32.xlu0 %v1789
          %v1853 = vpop.xlane.xlu0 %1852
          %1854 = vmax.xlane.f32.xlu0 %v1792
          %v1855 = vpop.xlane.xlu0 %1854
          %1856 = vmax.xlane.f32.xlu0 %v1797
          %v1857 = vpop.xlane.xlu0 %1856
          %1858 = vmax.xlane.f32.xlu0 %v1800
          %v1859 = vpop.xlane.xlu0 %1858
          %1860 = vmax.xlane.f32.xlu0 %v1805
          %v1861 = vpop.xlane.xlu0 %1860
          %1862 = vmax.xlane.f32.xlu0 %v1808
          %v1863 = vpop.xlane.xlu0 %1862
          %1864 = vmax.xlane.f32.xlu0 %v1813
          %v1865 = vpop.xlane.xlu0 %1864
          %1866 = vmax.xlane.f32.xlu0 %v1816
          %v1867 = vpop.xlane.xlu0 %1866
          %v1868 = vmax.f32 %v1820, %v1837
          %v1869 = vmax.f32 %v1821, %v1839
          %v1870 = vmax.f32 %v1822, %v1841
          %v1871 = vmax.f32 %v1823, %v1843
          %v1872 = vmax.f32 %v1824, %v1845
          %v1873 = vmax.f32 %v1825, %v1847
          %v1874 = vmax.f32 %v1826, %v1849
          %v1875 = vmax.f32 %v1827, %v1851
          %v1876 = vmax.f32 %v1828, %v1853
          %v1877 = vmax.f32 %v1829, %v1855
          %v1878 = vmax.f32 %v1830, %v1857
          %v1879 = vmax.f32 %v1831, %v1859
          %v1880 = vmax.f32 %v1832, %v1861
          %v1881 = vmax.f32 %v1833, %v1863
          %v1882 = vmax.f32 %v1834, %v1865
          %v1883 = vmax.f32 %v1835, %v1867
          %v1884 = vsub.f32 %v1820, %v1868
          %v1885 = vsub.f32 %v1821, %v1869
          %v1886 = vsub.f32 %v1822, %v1870
          %v1887 = vsub.f32 %v1823, %v1871
          %v1888 = vsub.f32 %v1824, %v1872
          %v1889 = vsub.f32 %v1825, %v1873
          %v1890 = vsub.f32 %v1826, %v1874
          %v1891 = vsub.f32 %v1827, %v1875
          %v1892 = vsub.f32 %v1828, %v1876
          %v1893 = vsub.f32 %v1829, %v1877
          %v1894 = vsub.f32 %v1830, %v1878
          %v1895 = vsub.f32 %v1831, %v1879
          %v1896 = vsub.f32 %v1832, %v1880
          %v1897 = vsub.f32 %v1833, %v1881
          %v1898 = vsub.f32 %v1834, %v1882
          %v1899 = vsub.f32 %v1835, %v1883
          %v1900 = vmul.f32 %v1884, 1.442695
          %v1901 = vpow.pop %v1900
          %v1902 = vmul.f32 %v1885, 1.442695
          %v1903 = vpow.pop %v1902
          %v1904 = vmul.f32 %v1886, 1.442695
          %v1905 = vpow.pop %v1904
          %v1906 = vmul.f32 %v1887, 1.442695
          %v1907 = vpow.pop %v1906
          %v1908 = vmul.f32 %v1888, 1.442695
          %v1909 = vpow.pop %v1908
          %v1910 = vmul.f32 %v1889, 1.442695
          %v1911 = vpow.pop %v1910
          %v1912 = vmul.f32 %v1890, 1.442695
          %v1913 = vpow.pop %v1912
          %v1914 = vmul.f32 %v1891, 1.442695
          %v1915 = vpow.pop %v1914
          %v1916 = vmul.f32 %v1892, 1.442695
          %v1917 = vpow.pop %v1916
          %v1918 = vmul.f32 %v1893, 1.442695
          %v1919 = vpow.pop %v1918
          %v1920 = vmul.f32 %v1894, 1.442695
          %v1921 = vpow.pop %v1920
          %v1922 = vmul.f32 %v1895, 1.442695
          %v1923 = vpow.pop %v1922
          %v1924 = vmul.f32 %v1896, 1.442695
          %v1925 = vpow.pop %v1924
          %v1926 = vmul.f32 %v1897, 1.442695
          %v1927 = vpow.pop %v1926
          %v1928 = vmul.f32 %v1898, 1.442695
          %v1929 = vpow.pop %v1928
          %v1930 = vmul.f32 %v1899, 1.442695
          %v1931 = vpow.pop %v1930
          %1933 = vset.pattern.permute.xlu0 0
          %1934 = vperm.xlu0 %1933, %v1868
          %v1935 = vpop.permute.xlu0 %1934
          %1938 = vset.pattern.permute.xlu0 0
          %1939 = vperm.xlu0 %1938, %v1869
          %v1940 = vpop.permute.xlu0 %1939
          %1943 = vset.pattern.permute.xlu0 0
          %1944 = vperm.xlu0 %1943, %v1870
          %v1945 = vpop.permute.xlu0 %1944
          %1948 = vset.pattern.permute.xlu0 0
          %1949 = vperm.xlu0 %1948, %v1871
          %v1950 = vpop.permute.xlu0 %1949
          %1953 = vset.pattern.permute.xlu0 0
          %1954 = vperm.xlu0 %1953, %v1872
          %v1955 = vpop.permute.xlu0 %1954
          %1958 = vset.pattern.permute.xlu0 0
          %1959 = vperm.xlu0 %1958, %v1873
          %v1960 = vpop.permute.xlu0 %1959
          %1963 = vset.pattern.permute.xlu0 0
          %1964 = vperm.xlu0 %1963, %v1874
          %v1965 = vpop.permute.xlu0 %1964
          %1968 = vset.pattern.permute.xlu0 0
          %1969 = vperm.xlu0 %1968, %v1875
          %v1970 = vpop.permute.xlu0 %1969
          %1973 = vset.pattern.permute.xlu0 0
          %1974 = vperm.xlu0 %1973, %v1876
          %v1975 = vpop.permute.xlu0 %1974
          %1978 = vset.pattern.permute.xlu0 0
          %1979 = vperm.xlu0 %1978, %v1877
          %v1980 = vpop.permute.xlu0 %1979
          %1983 = vset.pattern.permute.xlu0 0
          %1984 = vperm.xlu0 %1983, %v1878
          %v1985 = vpop.permute.xlu0 %1984
          %1988 = vset.pattern.permute.xlu0 0
          %1989 = vperm.xlu0 %1988, %v1879
          %v1990 = vpop.permute.xlu0 %1989
          %1993 = vset.pattern.permute.xlu0 0
          %1994 = vperm.xlu0 %1993, %v1880
          %v1995 = vpop.permute.xlu0 %1994
          %1998 = vset.pattern.permute.xlu0 0
          %1999 = vperm.xlu0 %1998, %v1881
          %v2000 = vpop.permute.xlu0 %1999
          %2003 = vset.pattern.permute.xlu0 0
          %2004 = vperm.xlu0 %2003, %v1882
          %v2005 = vpop.permute.xlu0 %2004
          %2008 = vset.pattern.permute.xlu0 0
          %2009 = vperm.xlu0 %2008, %v1883
          %v2010 = vpop.permute.xlu0 %2009
          %v2012 = vsub.f32 %v1757, %v1935
          %v2013 = vsub.f32 %v1760, %v1940
          %v2014 = vsub.f32 %v1765, %v1945
          %v2015 = vsub.f32 %v1768, %v1950
          %v2016 = vsub.f32 %v1773, %v1955
          %v2017 = vsub.f32 %v1776, %v1960
          %v2018 = vsub.f32 %v1781, %v1965
          %v2019 = vsub.f32 %v1784, %v1970
          %v2020 = vsub.f32 %v1789, %v1975
          %v2021 = vsub.f32 %v1792, %v1980
          %v2022 = vsub.f32 %v1797, %v1985
          %v2023 = vsub.f32 %v1800, %v1990
          %v2024 = vsub.f32 %v1805, %v1995
          %v2025 = vsub.f32 %v1808, %v2000
          %v2026 = vsub.f32 %v1813, %v2005
          %v2027 = vsub.f32 %v1816, %v2010
          %v2028 = vmul.f32 %v2012, 1.442695
          %v2029 = vpow.pop %v2028
          %v2030 = vmul.f32 %v2013, 1.442695
          %v2031 = vpow.pop %v2030
          %v2032 = vmul.f32 %v2014, 1.442695
          %v2033 = vpow.pop %v2032
          %v2034 = vmul.f32 %v2015, 1.442695
          %v2035 = vpow.pop %v2034
          %v2036 = vmul.f32 %v2016, 1.442695
          %v2037 = vpow.pop %v2036
          %v2038 = vmul.f32 %v2017, 1.442695
          %v2039 = vpow.pop %v2038
          %v2040 = vmul.f32 %v2018, 1.442695
          %v2041 = vpow.pop %v2040
          %v2042 = vmul.f32 %v2019, 1.442695
          %v2043 = vpow.pop %v2042
          %v2044 = vmul.f32 %v2020, 1.442695
          %v2045 = vpow.pop %v2044
          %v2046 = vmul.f32 %v2021, 1.442695
          %v2047 = vpow.pop %v2046
          %v2048 = vmul.f32 %v2022, 1.442695
          %v2049 = vpow.pop %v2048
          %v2050 = vmul.f32 %v2023, 1.442695
          %v2051 = vpow.pop %v2050
          %v2052 = vmul.f32 %v2024, 1.442695
          %v2053 = vpow.pop %v2052
          %v2054 = vmul.f32 %v2025, 1.442695
          %v2055 = vpow.pop %v2054
          %v2056 = vmul.f32 %v2026, 1.442695
          %v2057 = vpow.pop %v2056
          %v2058 = vmul.f32 %v2027, 1.442695
          %v2059 = vpow.pop %v2058
          %2076 = vrot.lane.b32.xlu0 %v1820, 127
          %v2077 = vpop.permute.xlu0 %2076
          %2078 = vrot.lane.b32.xlu0 %v1821, 127
          %v2079 = vpop.permute.xlu0 %2078
          %2080 = vrot.lane.b32.xlu0 %v1822, 127
          %v2081 = vpop.permute.xlu0 %2080
          %2082 = vrot.lane.b32.xlu0 %v1823, 127
          %v2083 = vpop.permute.xlu0 %2082
          %2084 = vrot.lane.b32.xlu0 %v1824, 127
          %v2085 = vpop.permute.xlu0 %2084
          %2086 = vrot.lane.b32.xlu0 %v1825, 127
          %v2087 = vpop.permute.xlu0 %2086
          %2088 = vrot.lane.b32.xlu0 %v1826, 127
          %v2089 = vpop.permute.xlu0 %2088
          %2090 = vrot.lane.b32.xlu0 %v1827, 127
          %v2091 = vpop.permute.xlu0 %2090
          %2092 = vrot.lane.b32.xlu0 %v1828, 127
          %v2093 = vpop.permute.xlu0 %2092
          %2094 = vrot.lane.b32.xlu0 %v1829, 127
          %v2095 = vpop.permute.xlu0 %2094
          %2096 = vrot.lane.b32.xlu0 %v1830, 127
          %v2097 = vpop.permute.xlu0 %2096
          %2098 = vrot.lane.b32.xlu0 %v1831, 127
          %v2099 = vpop.permute.xlu0 %2098
          %2100 = vrot.lane.b32.xlu0 %v1832, 127
          %v2101 = vpop.permute.xlu0 %2100
          %2102 = vrot.lane.b32.xlu0 %v1833, 127
          %v2103 = vpop.permute.xlu0 %2102
          %2104 = vrot.lane.b32.xlu0 %v1834, 127
          %v2105 = vpop.permute.xlu0 %2104
          %2106 = vrot.lane.b32.xlu0 %v1835, 127
          %v2107 = vpop.permute.xlu0 %2106
          %v2124 = vmul.f32 %v1901, %v2077
          %v2125 = vmul.f32 %v1903, %v2079
          %v2126 = vmul.f32 %v1905, %v2081
          %v2127 = vmul.f32 %v1907, %v2083
          %v2128 = vmul.f32 %v1909, %v2085
          %v2129 = vmul.f32 %v1911, %v2087
          %v2130 = vmul.f32 %v1913, %v2089
          %v2131 = vmul.f32 %v1915, %v2091
          %v2132 = vmul.f32 %v1917, %v2093
          %v2133 = vmul.f32 %v1919, %v2095
          %v2134 = vmul.f32 %v1921, %v2097
          %v2135 = vmul.f32 %v1923, %v2099
          %v2136 = vmul.f32 %v1925, %v2101
          %v2137 = vmul.f32 %v1927, %v2103
          %v2138 = vmul.f32 %v1929, %v2105
          %v2139 = vmul.f32 %v1931, %v2107
          %2140 = vadd.xlane.f32.xlu0 %v2029
          %v2141 = vpop.xlane.xlu0 %2140
          %2142 = vadd.xlane.f32.xlu0 %v2031
          %v2143 = vpop.xlane.xlu0 %2142
          %2144 = vadd.xlane.f32.xlu0 %v2033
          %v2145 = vpop.xlane.xlu0 %2144
          %2146 = vadd.xlane.f32.xlu0 %v2035
          %v2147 = vpop.xlane.xlu0 %2146
          %2148 = vadd.xlane.f32.xlu0 %v2037
          %v2149 = vpop.xlane.xlu0 %2148
          %2150 = vadd.xlane.f32.xlu0 %v2039
          %v2151 = vpop.xlane.xlu0 %2150
          %2152 = vadd.xlane.f32.xlu0 %v2041
          %v2153 = vpop.xlane.xlu0 %2152
          %2154 = vadd.xlane.f32.xlu0 %v2043
          %v2155 = vpop.xlane.xlu0 %2154
          %2156 = vadd.xlane.f32.xlu0 %v2045
          %v2157 = vpop.xlane.xlu0 %2156
          %2158 = vadd.xlane.f32.xlu0 %v2047
          %v2159 = vpop.xlane.xlu0 %2158
          %2160 = vadd.xlane.f32.xlu0 %v2049
          %v2161 = vpop.xlane.xlu0 %2160
          %2162 = vadd.xlane.f32.xlu0 %v2051
          %v2163 = vpop.xlane.xlu0 %2162
          %2164 = vadd.xlane.f32.xlu0 %v2053
          %v2165 = vpop.xlane.xlu0 %2164
          %2166 = vadd.xlane.f32.xlu0 %v2055
          %v2167 = vpop.xlane.xlu0 %2166
          %2168 = vadd.xlane.f32.xlu0 %v2057
          %v2169 = vpop.xlane.xlu0 %2168
          %2170 = vadd.xlane.f32.xlu0 %v2059
          %v2171 = vpop.xlane.xlu0 %2170
          %v2172 = vadd.f32 %v2124, %v2141
          %v2173 = vadd.f32 %v2125, %v2143
          %v2174 = vadd.f32 %v2126, %v2145
          %v2175 = vadd.f32 %v2127, %v2147
          %v2176 = vadd.f32 %v2128, %v2149
          %v2177 = vadd.f32 %v2129, %v2151
          %v2178 = vadd.f32 %v2130, %v2153
          %v2179 = vadd.f32 %v2131, %v2155
          %v2180 = vadd.f32 %v2132, %v2157
          %v2181 = vadd.f32 %v2133, %v2159
          %v2182 = vadd.f32 %v2134, %v2161
          %v2183 = vadd.f32 %v2135, %v2163
          %v2184 = vadd.f32 %v2136, %v2165
          %v2185 = vadd.f32 %v2137, %v2167
          %v2186 = vadd.f32 %v2138, %v2169
          %v2187 = vadd.f32 %v2139, %v2171
          %2204 = vrot.lane.b32.xlu0 %v2172, 1
          %v2205 = vpop.permute.xlu0 %2204
          %2206 = vrot.lane.b32.xlu0 %v2173, 1
          %v2207 = vpop.permute.xlu0 %2206
          %2208 = vrot.lane.b32.xlu0 %v2174, 1
          %v2209 = vpop.permute.xlu0 %2208
          %2210 = vrot.lane.b32.xlu0 %v2175, 1
          %v2211 = vpop.permute.xlu0 %2210
          %2212 = vrot.lane.b32.xlu0 %v2176, 1
          %v2213 = vpop.permute.xlu0 %2212
          %2214 = vrot.lane.b32.xlu0 %v2177, 1
          %v2215 = vpop.permute.xlu0 %2214
          %2216 = vrot.lane.b32.xlu0 %v2178, 1
          %v2217 = vpop.permute.xlu0 %2216
          %2218 = vrot.lane.b32.xlu0 %v2179, 1
          %v2219 = vpop.permute.xlu0 %2218
          %2220 = vrot.lane.b32.xlu0 %v2180, 1
          %v2221 = vpop.permute.xlu0 %2220
          %2222 = vrot.lane.b32.xlu0 %v2181, 1
          %v2223 = vpop.permute.xlu0 %2222
          %2224 = vrot.lane.b32.xlu0 %v2182, 1
          %v2225 = vpop.permute.xlu0 %2224
          %2226 = vrot.lane.b32.xlu0 %v2183, 1
          %v2227 = vpop.permute.xlu0 %2226
          %2228 = vrot.lane.b32.xlu0 %v2184, 1
          %v2229 = vpop.permute.xlu0 %2228
          %2230 = vrot.lane.b32.xlu0 %v2185, 1
          %v2231 = vpop.permute.xlu0 %2230
          %2232 = vrot.lane.b32.xlu0 %v2186, 1
          %v2233 = vpop.permute.xlu0 %2232
          %2234 = vrot.lane.b32.xlu0 %v2187, 1
          %v2235 = vpop.permute.xlu0 %2234
          %2252 = vst.msk [vmem:[%s1819] sm:$0xff] %vm1223, %v2205
          %2253 = vst.msk [vmem:[%s1819 + $0x8] sm:$0xff] %vm1223, %v2207
          %2254 = vst.msk [vmem:[%s1819 + $0x10] sm:$0xff] %vm1223, %v2209
          %2255 = vst.msk [vmem:[%s1819 + $0x18] sm:$0xff] %vm1223, %v2211
          %2256 = vst.msk [vmem:[%s1819 + $0x20] sm:$0xff] %vm1223, %v2213
          %2257 = vst.msk [vmem:[%s1819 + $0x28] sm:$0xff] %vm1223, %v2215
          %2258 = vst.msk [vmem:[%s1819 + $0x30] sm:$0xff] %vm1223, %v2217
          %2259 = vst.msk [vmem:[%s1819 + $0x38] sm:$0xff] %vm1223, %v2219
          %2260 = vst.msk [vmem:[%s1819 + $0x40] sm:$0xff] %vm1223, %v2221
          %2261 = vst.msk [vmem:[%s1819 + $0x48] sm:$0xff] %vm1223, %v2223
          %2262 = vst.msk [vmem:[%s1819 + $0x50] sm:$0xff] %vm1223, %v2225
          %2263 = vst.msk [vmem:[%s1819 + $0x58] sm:$0xff] %vm1223, %v2227
          %2264 = vst.msk [vmem:[%s1819 + $0x60] sm:$0xff] %vm1223, %v2229
          %2265 = vst.msk [vmem:[%s1819 + $0x68] sm:$0xff] %vm1223, %v2231
          %2266 = vst.msk [vmem:[%s1819 + $0x70] sm:$0xff] %vm1223, %v2233
          %2267 = vst.msk [vmem:[%s1819 + $0x78] sm:$0xff] %vm1223, %v2235
          %s2268 = scalar_lea.vmem [#allocation4], 128
          %v2269 = vld [vmem:[%s2268] sm:$0xff]
          %v2270 = vld [vmem:[%s2268 + $0x8] sm:$0xff]
          %v2271 = vld [vmem:[%s2268 + $0x10] sm:$0xff]
          %v2272 = vld [vmem:[%s2268 + $0x18] sm:$0xff]
          %v2273 = vld [vmem:[%s2268 + $0x20] sm:$0xff]
          %v2274 = vld [vmem:[%s2268 + $0x28] sm:$0xff]
          %v2275 = vld [vmem:[%s2268 + $0x30] sm:$0xff]
          %v2276 = vld [vmem:[%s2268 + $0x38] sm:$0xff]
          %v2277 = vld [vmem:[%s2268 + $0x40] sm:$0xff]
          %v2278 = vld [vmem:[%s2268 + $0x48] sm:$0xff]
          %v2279 = vld [vmem:[%s2268 + $0x50] sm:$0xff]
          %v2280 = vld [vmem:[%s2268 + $0x58] sm:$0xff]
          %v2281 = vld [vmem:[%s2268 + $0x60] sm:$0xff]
          %v2282 = vld [vmem:[%s2268 + $0x68] sm:$0xff]
          %v2283 = vld [vmem:[%s2268 + $0x70] sm:$0xff]
          %v2284 = vld [vmem:[%s2268 + $0x78] sm:$0xff]
          %2286 = vset.pattern.permute.xlu0 0
          %2287 = vperm.xlu0 %2286, %v1901
          %v2288 = vpop.permute.xlu0 %2287
          %2291 = vset.pattern.permute.xlu0 0
          %2292 = vperm.xlu0 %2291, %v1903
          %v2293 = vpop.permute.xlu0 %2292
          %2296 = vset.pattern.permute.xlu0 0
          %2297 = vperm.xlu0 %2296, %v1905
          %v2298 = vpop.permute.xlu0 %2297
          %2301 = vset.pattern.permute.xlu0 0
          %2302 = vperm.xlu0 %2301, %v1907
          %v2303 = vpop.permute.xlu0 %2302
          %2306 = vset.pattern.permute.xlu0 0
          %2307 = vperm.xlu0 %2306, %v1909
          %v2308 = vpop.permute.xlu0 %2307
          %2311 = vset.pattern.permute.xlu0 0
          %2312 = vperm.xlu0 %2311, %v1911
          %v2313 = vpop.permute.xlu0 %2312
          %2316 = vset.pattern.permute.xlu0 0
          %2317 = vperm.xlu0 %2316, %v1913
          %v2318 = vpop.permute.xlu0 %2317
          %2321 = vset.pattern.permute.xlu0 0
          %2322 = vperm.xlu0 %2321, %v1915
          %v2323 = vpop.permute.xlu0 %2322
          %2326 = vset.pattern.permute.xlu0 0
          %2327 = vperm.xlu0 %2326, %v1917
          %v2328 = vpop.permute.xlu0 %2327
          %2331 = vset.pattern.permute.xlu0 0
          %2332 = vperm.xlu0 %2331, %v1919
          %v2333 = vpop.permute.xlu0 %2332
          %2336 = vset.pattern.permute.xlu0 0
          %2337 = vperm.xlu0 %2336, %v1921
          %v2338 = vpop.permute.xlu0 %2337
          %2341 = vset.pattern.permute.xlu0 0
          %2342 = vperm.xlu0 %2341, %v1923
          %v2343 = vpop.permute.xlu0 %2342
          %2346 = vset.pattern.permute.xlu0 0
          %2347 = vperm.xlu0 %2346, %v1925
          %v2348 = vpop.permute.xlu0 %2347
          %2351 = vset.pattern.permute.xlu0 0
          %2352 = vperm.xlu0 %2351, %v1927
          %v2353 = vpop.permute.xlu0 %2352
          %2356 = vset.pattern.permute.xlu0 0
          %2357 = vperm.xlu0 %2356, %v1929
          %v2358 = vpop.permute.xlu0 %2357
          %2361 = vset.pattern.permute.xlu0 0
          %2362 = vperm.xlu0 %2361, %v1931
          %v2363 = vpop.permute.xlu0 %2362
          %v2365 = vmul.f32 %v2288, %v2269
          %v2366 = vmul.f32 %v2293, %v2270
          %v2367 = vmul.f32 %v2298, %v2271
          %v2368 = vmul.f32 %v2303, %v2272
          %v2369 = vmul.f32 %v2308, %v2273
          %v2370 = vmul.f32 %v2313, %v2274
          %v2371 = vmul.f32 %v2318, %v2275
          %v2372 = vmul.f32 %v2323, %v2276
          %v2373 = vmul.f32 %v2328, %v2277
          %v2374 = vmul.f32 %v2333, %v2278
          %v2375 = vmul.f32 %v2338, %v2279
          %v2376 = vmul.f32 %v2343, %v2280
          %v2377 = vmul.f32 %v2348, %v2281
          %v2378 = vmul.f32 %v2353, %v2282
          %v2379 = vmul.f32 %v2358, %v2283
          %v2380 = vmul.f32 %v2363, %v2284
          %v2381 = vpack.c.bf16 %v2031, %v2029
          %v2382 = vpack.c.bf16 %v2035, %v2033
          %v2383 = vpack.c.bf16 %v2039, %v2037
          %v2384 = vpack.c.bf16 %v2043, %v2041
          %v2385 = vpack.c.bf16 %v2047, %v2045
          %v2386 = vpack.c.bf16 %v2051, %v2049
          %v2387 = vpack.c.bf16 %v2055, %v2053
          %v2388 = vpack.c.bf16 %v2059, %v2057
          %v2405 = vunpack.c.l.b16 %v1578
          %v2406 = vunpack.c.l.b16 %v1579
          %v2407 = vunpack.c.l.b16 %v1580
          %v2408 = vunpack.c.l.b16 %v1581
          %v2409 = vunpack.c.l.b16 %v1582
          %v2410 = vunpack.c.l.b16 %v1583
          %v2411 = vunpack.c.l.b16 %v1584
          %v2412 = vunpack.c.l.b16 %v1585
          %v2413 = vunpack.c.l.b16 %v1586
          %v2414 = vunpack.c.l.b16 %v1587
          %v2415 = vunpack.c.l.b16 %v1588
          %v2416 = vunpack.c.l.b16 %v1589
          %v2417 = vunpack.c.l.b16 %v1590
          %v2418 = vunpack.c.l.b16 %v1591
          %v2419 = vunpack.c.l.b16 %v1592
          %v2420 = vunpack.c.l.b16 %v1593
          %v2421 = vpack.c.b16 %v2406, %v2405
          %v2422 = vpack.c.b16 %v2408, %v2407
          %v2423 = vpack.c.b16 %v2410, %v2409
          %v2424 = vpack.c.b16 %v2412, %v2411
          %v2425 = vpack.c.b16 %v2414, %v2413
          %v2426 = vpack.c.b16 %v2416, %v2415
          %v2427 = vpack.c.b16 %v2418, %v2417
          %v2428 = vpack.c.b16 %v2420, %v2419
          %2429 = vrot.lane.b32.xlu0 %v2421, 64
          %v2430 = vpop.permute.xlu0 %2429
          %2431 = vrot.lane.b32.xlu0 %v2422, 64
          %v2432 = vpop.permute.xlu0 %2431
          %2433 = vrot.lane.b32.xlu0 %v2423, 64
          %v2434 = vpop.permute.xlu0 %2433
          %2435 = vrot.lane.b32.xlu0 %v2424, 64
          %v2436 = vpop.permute.xlu0 %2435
          %2437 = vrot.lane.b32.xlu0 %v2425, 64
          %v2438 = vpop.permute.xlu0 %2437
          %2439 = vrot.lane.b32.xlu0 %v2426, 64
          %v2440 = vpop.permute.xlu0 %2439
          %2441 = vrot.lane.b32.xlu0 %v2427, 64
          %v2442 = vpop.permute.xlu0 %2441
          %2443 = vrot.lane.b32.xlu0 %v2428, 64
          %v2444 = vpop.permute.xlu0 %2443
          %2453 = vmatprep.subr.bf16.mxu0 0
          %2454 = vmatpush1.bf16.msra.mxu0 %v2430
          %2455 = vmatprep.subr.bf16.mxu0 0
          %2456 = vmatpush1.bf16.msra.mxu0 %v2432
          %2457 = vmatprep.subr.bf16.mxu0 0
          %2458 = vmatpush1.bf16.msra.mxu0 %v2434
          %2459 = vmatprep.subr.bf16.mxu0 0
          %2460 = vmatpush1.bf16.msra.mxu0 %v2436
          %2461 = vmatprep.subr.bf16.mxu0 0
          %2462 = vmatpush1.bf16.msra.mxu0 %v2438
          %2463 = vmatprep.subr.bf16.mxu0 0
          %2464 = vmatpush1.bf16.msra.mxu0 %v2440
          %2465 = vmatprep.subr.bf16.mxu0 0
          %2466 = vmatpush1.bf16.msra.mxu0 %v2442
          %2467 = vmatprep.subr.bf16.mxu0 0
          %2468 = vmatpush1.bf16.msra.mxu0 %v2444
          %2469 = vmatprep.subr.bf16.mxu0 0
          %2470 = vmatpush1.bf16.msra.mxu0 0
          %2471 = vmatprep.subr.bf16.mxu0 0
          %2472 = vmatpush1.bf16.msra.mxu0 0
          %2473 = vmatprep.subr.bf16.mxu0 0
          %2474 = vmatpush1.bf16.msra.mxu0 0
          %2475 = vmatprep.subr.bf16.mxu0 0
          %2476 = vmatpush1.bf16.msra.mxu0 0
          %2477 = vmatprep.subr.bf16.mxu0 0
          %2478 = vmatpush1.bf16.msra.mxu0 0
          %2479 = vmatprep.subr.bf16.mxu0 0
          %2480 = vmatpush1.bf16.msra.mxu0 0
          %2481 = vmatprep.subr.bf16.mxu0 0
          %2482 = vmatpush1.bf16.msra.mxu0 0
          %2483 = vmatprep.subr.bf16.mxu0 0
          %2484 = vmatpush1.bf16.msra.mxu0 0
          %2485 = vmatprep.mubr.bf16.mxu0 0
          %2486 = vmatmul.mubr.bf16.gmra.mrb[0].mxu0 %v2381
          %v2487 = vpop.f32.mrb[0].mxu0
          %v2488 = vadd.f32 0.0, %v2487
          %v2489 = vpop.f32.mrb[0].mxu0
          %v2490 = vpop.f32.mrb[0].mxu0
          %v2491 = vadd.f32 0.0, %v2490
          %v2492 = vpop.f32.mrb[0].mxu0
          %2493 = vmatprep.mubr.bf16.mxu0 0
          %2494 = vmatmul.mubr.bf16.gmra.mrb[0].mxu0 %v2382
          %v2495 = vpop.f32.mrb[0].mxu0
          %v2496 = vadd.f32 0.0, %v2495
          %v2497 = vpop.f32.mrb[0].mxu0
          %v2498 = vpop.f32.mrb[0].mxu0
          %v2499 = vadd.f32 0.0, %v2498
          %v2500 = vpop.f32.mrb[0].mxu0
          %2501 = vmatprep.mubr.bf16.mxu0 0
          %2502 = vmatmul.mubr.bf16.gmra.mrb[0].mxu0 %v2383
          %v2503 = vpop.f32.mrb[0].mxu0
          %v2504 = vadd.f32 0.0, %v2503
          %v2505 = vpop.f32.mrb[0].mxu0
          %v2506 = vpop.f32.mrb[0].mxu0
          %v2507 = vadd.f32 0.0, %v2506
          %v2508 = vpop.f32.mrb[0].mxu0
          %2509 = vmatprep.mubr.bf16.mxu0 0
          %2510 = vmatmul.mubr.bf16.gmra.mrb[0].mxu0 %v2384
          %v2511 = vpop.f32.mrb[0].mxu0
          %v2512 = vadd.f32 0.0, %v2511
          %v2513 = vpop.f32.mrb[0].mxu0
          %v2514 = vpop.f32.mrb[0].mxu0
          %v2515 = vadd.f32 0.0, %v2514
          %v2516 = vpop.f32.mrb[0].mxu0
          %2517 = vmatprep.mubr.bf16.mxu0 0
          %2518 = vmatmul.mubr.bf16.gmra.mrb[0].mxu0 %v2385
          %v2519 = vpop.f32.mrb[0].mxu0
          %v2520 = vadd.f32 0.0, %v2519
          %v2521 = vpop.f32.mrb[0].mxu0
          %v2522 = vpop.f32.mrb[0].mxu0
          %v2523 = vadd.f32 0.0, %v2522
          %v2524 = vpop.f32.mrb[0].mxu0
          %2525 = vmatprep.mubr.bf16.mxu0 0
          %2526 = vmatmul.mubr.bf16.gmra.mrb[0].mxu0 %v2386
          %v2527 = vpop.f32.mrb[0].mxu0
          %v2528 = vadd.f32 0.0, %v2527
          %v2529 = vpop.f32.mrb[0].mxu0
          %v2530 = vpop.f32.mrb[0].mxu0
          %v2531 = vadd.f32 0.0, %v2530
          %v2532 = vpop.f32.mrb[0].mxu0
          %2533 = vmatprep.mubr.bf16.mxu0 0
          %2534 = vmatmul.mubr.bf16.gmra.mrb[0].mxu0 %v2387
          %v2535 = vpop.f32.mrb[0].mxu0
          %v2536 = vadd.f32 0.0, %v2535
          %v2537 = vpop.f32.mrb[0].mxu0
          %v2538 = vpop.f32.mrb[0].mxu0
          %v2539 = vadd.f32 0.0, %v2538
          %v2540 = vpop.f32.mrb[0].mxu0
          %2541 = vmatprep.mubr.bf16.mxu0 0
          %2542 = vmatmul.mubr.bf16.gmra.mrb[0].mxu0 %v2388
          %v2543 = vpop.f32.mrb[0].mxu0
          %v2544 = vadd.f32 0.0, %v2543
          %v2545 = vpop.f32.mrb[0].mxu0
          %v2546 = vpop.f32.mrb[0].mxu0
          %v2547 = vadd.f32 0.0, %v2546
          %v2548 = vpop.f32.mrb[0].mxu0
          %2549 = vdwg.mxu0
          %v2550 = vadd.f32 %v2365, %v2488
          %v2551 = vadd.f32 %v2366, %v2491
          %v2552 = vadd.f32 %v2367, %v2496
          %v2553 = vadd.f32 %v2368, %v2499
          %v2554 = vadd.f32 %v2369, %v2504
          %v2555 = vadd.f32 %v2370, %v2507
          %v2556 = vadd.f32 %v2371, %v2512
          %v2557 = vadd.f32 %v2372, %v2515
          %v2558 = vadd.f32 %v2373, %v2520
          %v2559 = vadd.f32 %v2374, %v2523
          %v2560 = vadd.f32 %v2375, %v2528
          %v2561 = vadd.f32 %v2376, %v2531
          %v2562 = vadd.f32 %v2377, %v2536
          %v2563 = vadd.f32 %v2378, %v2539
          %v2564 = vadd.f32 %v2379, %v2544
          %v2565 = vadd.f32 %v2380, %v2547
          %2566 = vst.msk [vmem:[%s2268] sm:$0xff] %vm645, %v2550
          %2567 = vst.msk [vmem:[%s2268 + $0x8] sm:$0xff] %vm645, %v2551
          %2568 = vst.msk [vmem:[%s2268 + $0x10] sm:$0xff] %vm645, %v2552
          %2569 = vst.msk [vmem:[%s2268 + $0x18] sm:$0xff] %vm645, %v2553
          %2570 = vst.msk [vmem:[%s2268 + $0x20] sm:$0xff] %vm645, %v2554
          %2571 = vst.msk [vmem:[%s2268 + $0x28] sm:$0xff] %vm645, %v2555
          %2572 = vst.msk [vmem:[%s2268 + $0x30] sm:$0xff] %vm645, %v2556
          %2573 = vst.msk [vmem:[%s2268 + $0x38] sm:$0xff] %vm645, %v2557
          %2574 = vst.msk [vmem:[%s2268 + $0x40] sm:$0xff] %vm645, %v2558
          %2575 = vst.msk [vmem:[%s2268 + $0x48] sm:$0xff] %vm645, %v2559
          %2576 = vst.msk [vmem:[%s2268 + $0x50] sm:$0xff] %vm645, %v2560
          %2577 = vst.msk [vmem:[%s2268 + $0x58] sm:$0xff] %vm645, %v2561
          %2578 = vst.msk [vmem:[%s2268 + $0x60] sm:$0xff] %vm645, %v2562
          %2579 = vst.msk [vmem:[%s2268 + $0x68] sm:$0xff] %vm645, %v2563
          %2580 = vst.msk [vmem:[%s2268 + $0x70] sm:$0xff] %vm645, %v2564
          %2581 = vst.msk [vmem:[%s2268 + $0x78] sm:$0xff] %vm645, %v2565
          %2582 = vst.msk [vmem:[%s1819] sm:$0xff] %vm1537, %v1868
          %2583 = vst.msk [vmem:[%s1819 + $0x8] sm:$0xff] %vm1537, %v1869
          %2584 = vst.msk [vmem:[%s1819 + $0x10] sm:$0xff] %vm1537, %v1870
          %2585 = vst.msk [vmem:[%s1819 + $0x18] sm:$0xff] %vm1537, %v1871
          %2586 = vst.msk [vmem:[%s1819 + $0x20] sm:$0xff] %vm1537, %v1872
          %2587 = vst.msk [vmem:[%s1819 + $0x28] sm:$0xff] %vm1537, %v1873
          %2588 = vst.msk [vmem:[%s1819 + $0x30] sm:$0xff] %vm1537, %v1874
          %2589 = vst.msk [vmem:[%s1819 + $0x38] sm:$0xff] %vm1537, %v1875
          %2590 = vst.msk [vmem:[%s1819 + $0x40] sm:$0xff] %vm1537, %v1876
          %2591 = vst.msk [vmem:[%s1819 + $0x48] sm:$0xff] %vm1537, %v1877
          %2592 = vst.msk [vmem:[%s1819 + $0x50] sm:$0xff] %vm1537, %v1878
          %2593 = vst.msk [vmem:[%s1819 + $0x58] sm:$0xff] %vm1537, %v1879
          %2594 = vst.msk [vmem:[%s1819 + $0x60] sm:$0xff] %vm1537, %v1880
          %2595 = vst.msk [vmem:[%s1819 + $0x68] sm:$0xff] %vm1537, %v1881
          %2596 = vst.msk [vmem:[%s1819 + $0x70] sm:$0xff] %vm1537, %v1882
          %2597 = vst.msk [vmem:[%s1819 + $0x78] sm:$0xff] %vm1537, %v1883
        $region52: #{tpu_custom_call.1} parent=31 // pred_fallthru
          _
        %p2598 = pneg %p560
        %p2599 = pnand %p552, %p2598
        %p2600 = pneg %p2599
        // Predicated region
        $region53: #{tpu_custom_call.1} parent=31 // pred_check
          _
        $region54: #{tpu_custom_call.1} parent=31 // pred_check_branch
          %2602 = sbr.rel (%p2599) target = $region56
        $region55: #{tpu_custom_call.1} parent=31 // pred_region
          %v2603 = vlaneseq
          %v2604 = vshrl.u32 %v2603, 7
          %v2605 = vadd.s32 %v2604, 8
          %v2606 = vadd.s32 %v2604, 16
          %v2607 = vadd.s32 %v2604, 24
          %v2608 = vadd.s32 %v2604, 32
          %v2609 = vadd.s32 %v2604, 40
          %v2610 = vadd.s32 %v2604, 48
          %v2611 = vadd.s32 %v2604, 56
          %v2612 = vadd.s32 %v2604, 64
          %v2613 = vadd.s32 %v2604, 72
          %v2614 = vadd.s32 %v2604, 80
          %v2615 = vadd.s32 %v2604, 88
          %v2616 = vadd.s32 %v2604, 96
          %v2617 = vadd.s32 %v2604, 104
          %v2618 = vadd.s32 %v2604, 112
          %v2619 = vadd.s32 %v2604, 120
          %v2620 = vstv %s555
          %v2621 = vadd.s32 %v2620, %v2604
          %v2622 = vadd.s32 %v2620, %v2605
          %v2623 = vadd.s32 %v2620, %v2606
          %v2624 = vadd.s32 %v2620, %v2607
          %v2625 = vadd.s32 %v2620, %v2608
          %v2626 = vadd.s32 %v2620, %v2609
          %v2627 = vadd.s32 %v2620, %v2610
          %v2628 = vadd.s32 %v2620, %v2611
          %v2629 = vadd.s32 %v2620, %v2612
          %v2630 = vadd.s32 %v2620, %v2613
          %v2631 = vadd.s32 %v2620, %v2614
          %v2632 = vadd.s32 %v2620, %v2615
          %v2633 = vadd.s32 %v2620, %v2616
          %v2634 = vadd.s32 %v2620, %v2617
          %v2635 = vadd.s32 %v2620, %v2618
          %v2636 = vadd.s32 %v2620, %v2619
          %v2637 = vlaneseq
          %v2638 = vand.u32 %v2637, 127
          %v2639 = vstv %s553
          %v2640 = vadd.s32 %v2639, %v2638
          %vm2641 = vcmp.le.s32.totalorder %v2640, %v2621
          %vm2642 = vcmp.le.s32.totalorder %v2640, %v2622
          %vm2643 = vcmp.le.s32.totalorder %v2640, %v2623
          %vm2644 = vcmp.le.s32.totalorder %v2640, %v2624
          %vm2645 = vcmp.le.s32.totalorder %v2640, %v2625
          %vm2646 = vcmp.le.s32.totalorder %v2640, %v2626
          %vm2647 = vcmp.le.s32.totalorder %v2640, %v2627
          %vm2648 = vcmp.le.s32.totalorder %v2640, %v2628
          %vm2649 = vcmp.le.s32.totalorder %v2640, %v2629
          %vm2650 = vcmp.le.s32.totalorder %v2640, %v2630
          %vm2651 = vcmp.le.s32.totalorder %v2640, %v2631
          %vm2652 = vcmp.le.s32.totalorder %v2640, %v2632
          %vm2653 = vcmp.le.s32.totalorder %v2640, %v2633
          %vm2654 = vcmp.le.s32.totalorder %v2640, %v2634
          %vm2655 = vcmp.le.s32.totalorder %v2640, %v2635
          %vm2656 = vcmp.le.s32.totalorder %v2640, %v2636
          %v2657 = vsub.s32 %v2621, %v2640
          %v2658 = vsub.s32 %v2622, %v2640
          %v2659 = vsub.s32 %v2623, %v2640
          %v2660 = vsub.s32 %v2624, %v2640
          %v2661 = vsub.s32 %v2625, %v2640
          %v2662 = vsub.s32 %v2626, %v2640
          %v2663 = vsub.s32 %v2627, %v2640
          %v2664 = vsub.s32 %v2628, %v2640
          %v2665 = vsub.s32 %v2629, %v2640
          %v2666 = vsub.s32 %v2630, %v2640
          %v2667 = vsub.s32 %v2631, %v2640
          %v2668 = vsub.s32 %v2632, %v2640
          %v2669 = vsub.s32 %v2633, %v2640
          %v2670 = vsub.s32 %v2634, %v2640
          %v2671 = vsub.s32 %v2635, %v2640
          %v2672 = vsub.s32 %v2636, %v2640
          %vm2673 = vcmp.le.s32.totalorder %v2657, 16
          %vm2674 = vcmp.le.s32.totalorder %v2658, 16
          %vm2675 = vcmp.le.s32.totalorder %v2659, 16
          %vm2676 = vcmp.le.s32.totalorder %v2660, 16
          %vm2677 = vcmp.le.s32.totalorder %v2661, 16
          %vm2678 = vcmp.le.s32.totalorder %v2662, 16
          %vm2679 = vcmp.le.s32.totalorder %v2663, 16
          %vm2680 = vcmp.le.s32.totalorder %v2664, 16
          %vm2681 = vcmp.le.s32.totalorder %v2665, 16
          %vm2682 = vcmp.le.s32.totalorder %v2666, 16
          %vm2683 = vcmp.le.s32.totalorder %v2667, 16
          %vm2684 = vcmp.le.s32.totalorder %v2668, 16
          %vm2685 = vcmp.le.s32.totalorder %v2669, 16
          %vm2686 = vcmp.le.s32.totalorder %v2670, 16
          %vm2687 = vcmp.le.s32.totalorder %v2671, 16
          %vm2688 = vcmp.le.s32.totalorder %v2672, 16
          %vm2689 = vmand %vm2641, %vm2673
          %vm2690 = vmand %vm2642, %vm2674
          %vm2691 = vmand %vm2643, %vm2675
          %vm2692 = vmand %vm2644, %vm2676
          %vm2693 = vmand %vm2645, %vm2677
          %vm2694 = vmand %vm2646, %vm2678
          %vm2695 = vmand %vm2647, %vm2679
          %vm2696 = vmand %vm2648, %vm2680
          %vm2697 = vmand %vm2649, %vm2681
          %vm2698 = vmand %vm2650, %vm2682
          %vm2699 = vmand %vm2651, %vm2683
          %vm2700 = vmand %vm2652, %vm2684
          %vm2701 = vmand %vm2653, %vm2685
          %vm2702 = vmand %vm2654, %vm2686
          %vm2703 = vmand %vm2655, %vm2687
          %vm2704 = vmand %vm2656, %vm2688
          %v2705 = vld [vmem:[#allocation2] sm:$0xff]
          %v2706 = vld [vmem:[#allocation2 + $0x8] sm:$0xff]
          %v2707 = vld [vmem:[#allocation2 + $0x10] sm:$0xff]
          %v2708 = vld [vmem:[#allocation2 + $0x18] sm:$0xff]
          %v2709 = vld [vmem:[#allocation2 + $0x20] sm:$0xff]
          %v2710 = vld [vmem:[#allocation2 + $0x28] sm:$0xff]
          %v2711 = vld [vmem:[#allocation2 + $0x30] sm:$0xff]
          %v2712 = vld [vmem:[#allocation2 + $0x38] sm:$0xff]
          %v2713 = vld [vmem:[%s320] sm:$0xf]
          %v2714 = vld [vmem:[%s320 + $0x4] sm:$0xf]
          %v2715 = vld [vmem:[%s320 + $0x8] sm:$0xf]
          %v2716 = vld [vmem:[%s320 + $0xc] sm:$0xf]
          %v2717 = vld [vmem:[%s320 + $0x10] sm:$0xf]
          %v2718 = vld [vmem:[%s320 + $0x14] sm:$0xf]
          %v2719 = vld [vmem:[%s320 + $0x18] sm:$0xf]
          %v2720 = vld [vmem:[%s320 + $0x1c] sm:$0xf]
          %v2721 = vld [vmem:[%s320 + $0x20] sm:$0xf]
          %v2722 = vld [vmem:[%s320 + $0x24] sm:$0xf]
          %v2723 = vld [vmem:[%s320 + $0x28] sm:$0xf]
          %v2724 = vld [vmem:[%s320 + $0x2c] sm:$0xf]
          %v2725 = vld [vmem:[%s320 + $0x30] sm:$0xf]
          %v2726 = vld [vmem:[%s320 + $0x34] sm:$0xf]
          %v2727 = vld [vmem:[%s320 + $0x38] sm:$0xf]
          %v2728 = vld [vmem:[%s320 + $0x3c] sm:$0xf]
          %v2729 = vld [vmem:[%s329] sm:$0xf]
          %v2730 = vld [vmem:[%s329 + $0x4] sm:$0xf]
          %v2731 = vld [vmem:[%s329 + $0x8] sm:$0xf]
          %v2732 = vld [vmem:[%s329 + $0xc] sm:$0xf]
          %v2733 = vld [vmem:[%s329 + $0x10] sm:$0xf]
          %v2734 = vld [vmem:[%s329 + $0x14] sm:$0xf]
          %v2735 = vld [vmem:[%s329 + $0x18] sm:$0xf]
          %v2736 = vld [vmem:[%s329 + $0x1c] sm:$0xf]
          %v2737 = vld [vmem:[%s329 + $0x20] sm:$0xf]
          %v2738 = vld [vmem:[%s329 + $0x24] sm:$0xf]
          %v2739 = vld [vmem:[%s329 + $0x28] sm:$0xf]
          %v2740 = vld [vmem:[%s329 + $0x2c] sm:$0xf]
          %v2741 = vld [vmem:[%s329 + $0x30] sm:$0xf]
          %v2742 = vld [vmem:[%s329 + $0x34] sm:$0xf]
          %v2743 = vld [vmem:[%s329 + $0x38] sm:$0xf]
          %v2744 = vld [vmem:[%s329 + $0x3c] sm:$0xf]
          %v2761 = vunpack.c.l.b16 %v2713
          %v2762 = vunpack.c.l.b16 %v2714
          %v2763 = vunpack.c.l.b16 %v2715
          %v2764 = vunpack.c.l.b16 %v2716
          %v2765 = vunpack.c.l.b16 %v2717
          %v2766 = vunpack.c.l.b16 %v2718
          %v2767 = vunpack.c.l.b16 %v2719
          %v2768 = vunpack.c.l.b16 %v2720
          %v2769 = vunpack.c.l.b16 %v2721
          %v2770 = vunpack.c.l.b16 %v2722
          %v2771 = vunpack.c.l.b16 %v2723
          %v2772 = vunpack.c.l.b16 %v2724
          %v2773 = vunpack.c.l.b16 %v2725
          %v2774 = vunpack.c.l.b16 %v2726
          %v2775 = vunpack.c.l.b16 %v2727
          %v2776 = vunpack.c.l.b16 %v2728
          %v2777 = vpack.c.b16 %v2762, %v2761
          %v2778 = vpack.c.b16 %v2764, %v2763
          %v2779 = vpack.c.b16 %v2766, %v2765
          %v2780 = vpack.c.b16 %v2768, %v2767
          %v2781 = vpack.c.b16 %v2770, %v2769
          %v2782 = vpack.c.b16 %v2772, %v2771
          %v2783 = vpack.c.b16 %v2774, %v2773
          %v2784 = vpack.c.b16 %v2776, %v2775
          %vm2785 = vcmask 523264
          %v2787 = vsel %vm2785, %v2705, 0
          %v2790 = vsel %vm2785, %v2706, 0
          %v2793 = vsel %vm2785, %v2707, 0
          %v2796 = vsel %vm2785, %v2708, 0
          %v2799 = vsel %vm2785, %v2709, 0
          %v2802 = vsel %vm2785, %v2710, 0
          %v2805 = vsel %vm2785, %v2711, 0
          %v2808 = vsel %vm2785, %v2712, 0
          %v2811 = vsel %vm2785, %v2777, 0
          %v2814 = vsel %vm2785, %v2778, 0
          %v2817 = vsel %vm2785, %v2779, 0
          %v2820 = vsel %vm2785, %v2780, 0
          %v2823 = vsel %vm2785, %v2781, 0
          %v2826 = vsel %vm2785, %v2782, 0
          %v2829 = vsel %vm2785, %v2783, 0
          %v2832 = vsel %vm2785, %v2784, 0
          %2834 = vmatprep.subr.bf16.mxu0 0
          %2835 = vmatpush1.bf16.xpose.msra.mxu0 %v2811
          %2836 = vmatprep.subr.bf16.mxu0 0
          %2837 = vmatpush1.bf16.xpose.msra.mxu0 %v2814
          %2838 = vmatprep.subr.bf16.mxu0 0
          %2839 = vmatpush1.bf16.xpose.msra.mxu0 %v2817
          %2840 = vmatprep.subr.bf16.mxu0 0
          %2841 = vmatpush1.bf16.xpose.msra.mxu0 %v2820
          %2842 = vmatprep.subr.bf16.mxu0 0
          %2843 = vmatpush1.bf16.xpose.msra.mxu0 %v2823
          %2844 = vmatprep.subr.bf16.mxu0 0
          %2845 = vmatpush1.bf16.xpose.msra.mxu0 %v2826
          %2846 = vmatprep.subr.bf16.mxu0 0
          %2847 = vmatpush1.bf16.xpose.msra.mxu0 %v2829
          %2848 = vmatprep.subr.bf16.mxu0 0
          %2849 = vmatpush1.bf16.xpose.msra.mxu0 %v2832
          %2850 = vmatprep.subr.bf16.mxu0 0
          %2851 = vmatpush1.bf16.xpose.msra.mxu0 0
          %2852 = vmatprep.subr.bf16.mxu0 0
          %2853 = vmatpush1.bf16.xpose.msra.mxu0 0
          %2854 = vmatprep.subr.bf16.mxu0 0
          %2855 = vmatpush1.bf16.xpose.msra.mxu0 0
          %2856 = vmatprep.subr.bf16.mxu0 0
          %2857 = vmatpush1.bf16.xpose.msra.mxu0 0
          %2858 = vmatprep.subr.bf16.mxu0 0
          %2859 = vmatpush1.bf16.xpose.msra.mxu0 0
          %2860 = vmatprep.subr.bf16.mxu0 0
          %2861 = vmatpush1.bf16.xpose.msra.mxu0 0
          %2862 = vmatprep.subr.bf16.mxu0 0
          %2863 = vmatpush1.bf16.xpose.msra.mxu0 0
          %2864 = vmatprep.subr.bf16.mxu0 0
          %2865 = vmatpush1.bf16.xpose.msra.mxu0 0
          %2866 = vmatprep.mubr.bf16.mxu0 0
          %2867 = vmatmul.mubr.bf16.gmra.mrb[0].mxu0 %v2787
          %v2868 = vpop.f32.mrb[0].mxu0
          %v2869 = vadd.f32 0.0, %v2868
          %v2870 = vpop.f32.mrb[0].mxu0
          %v2871 = vpop.f32.mrb[0].mxu0
          %v2872 = vadd.f32 0.0, %v2871
          %v2873 = vpop.f32.mrb[0].mxu0
          %2874 = vmatprep.mubr.bf16.mxu0 0
          %2875 = vmatmul.mubr.bf16.gmra.mrb[0].mxu0 %v2790
          %v2876 = vpop.f32.mrb[0].mxu0
          %v2877 = vadd.f32 0.0, %v2876
          %v2878 = vpop.f32.mrb[0].mxu0
          %v2879 = vpop.f32.mrb[0].mxu0
          %v2880 = vadd.f32 0.0, %v2879
          %v2881 = vpop.f32.mrb[0].mxu0
          %2882 = vmatprep.mubr.bf16.mxu0 0
          %2883 = vmatmul.mubr.bf16.gmra.mrb[0].mxu0 %v2793
          %v2884 = vpop.f32.mrb[0].mxu0
          %v2885 = vadd.f32 0.0, %v2884
          %v2886 = vpop.f32.mrb[0].mxu0
          %v2887 = vpop.f32.mrb[0].mxu0
          %v2888 = vadd.f32 0.0, %v2887
          %v2889 = vpop.f32.mrb[0].mxu0
          %2890 = vmatprep.mubr.bf16.mxu0 0
          %2891 = vmatmul.mubr.bf16.gmra.mrb[0].mxu0 %v2796
          %v2892 = vpop.f32.mrb[0].mxu0
          %v2893 = vadd.f32 0.0, %v2892
          %v2894 = vpop.f32.mrb[0].mxu0
          %v2895 = vpop.f32.mrb[0].mxu0
          %v2896 = vadd.f32 0.0, %v2895
          %v2897 = vpop.f32.mrb[0].mxu0
          %2898 = vmatprep.mubr.bf16.mxu0 0
          %2899 = vmatmul.mubr.bf16.gmra.mrb[0].mxu0 %v2799
          %v2900 = vpop.f32.mrb[0].mxu0
          %v2901 = vadd.f32 0.0, %v2900
          %v2902 = vpop.f32.mrb[0].mxu0
          %v2903 = vpop.f32.mrb[0].mxu0
          %v2904 = vadd.f32 0.0, %v2903
          %v2905 = vpop.f32.mrb[0].mxu0
          %2906 = vmatprep.mubr.bf16.mxu0 0
          %2907 = vmatmul.mubr.bf16.gmra.mrb[0].mxu0 %v2802
          %v2908 = vpop.f32.mrb[0].mxu0
          %v2909 = vadd.f32 0.0, %v2908
          %v2910 = vpop.f32.mrb[0].mxu0
          %v2911 = vpop.f32.mrb[0].mxu0
          %v2912 = vadd.f32 0.0, %v2911
          %v2913 = vpop.f32.mrb[0].mxu0
          %2914 = vmatprep.mubr.bf16.mxu0 0
          %2915 = vmatmul.mubr.bf16.gmra.mrb[0].mxu0 %v2805
          %v2916 = vpop.f32.mrb[0].mxu0
          %v2917 = vadd.f32 0.0, %v2916
          %v2918 = vpop.f32.mrb[0].mxu0
          %v2919 = vpop.f32.mrb[0].mxu0
          %v2920 = vadd.f32 0.0, %v2919
          %v2921 = vpop.f32.mrb[0].mxu0
          %2922 = vmatprep.mubr.bf16.mxu0 0
          %2923 = vmatmul.mubr.bf16.gmra.mrb[0].mxu0 %v2808
          %v2924 = vpop.f32.mrb[0].mxu0
          %v2925 = vadd.f32 0.0, %v2924
          %v2926 = vpop.f32.mrb[0].mxu0
          %v2927 = vpop.f32.mrb[0].mxu0
          %v2928 = vadd.f32 0.0, %v2927
          %v2929 = vpop.f32.mrb[0].mxu0
          %2930 = vdwg.mxu0
          %v2931 = vsel %vm2689, %v2869, -1e+30
          %v2932 = vsel %vm2690, %v2872, -1e+30
          %v2933 = vsel %vm2691, %v2877, -1e+30
          %v2934 = vsel %vm2692, %v2880, -1e+30
          %v2935 = vsel %vm2693, %v2885, -1e+30
          %v2936 = vsel %vm2694, %v2888, -1e+30
          %v2937 = vsel %vm2695, %v2893, -1e+30
          %v2938 = vsel %vm2696, %v2896, -1e+30
          %v2939 = vsel %vm2697, %v2901, -1e+30
          %v2940 = vsel %vm2698, %v2904, -1e+30
          %v2941 = vsel %vm2699, %v2909, -1e+30
          %v2942 = vsel %vm2700, %v2912, -1e+30
          %v2943 = vsel %vm2701, %v2917, -1e+30
          %v2944 = vsel %vm2702, %v2920, -1e+30
          %v2945 = vsel %vm2703, %v2925, -1e+30
          %v2946 = vsel %vm2704, %v2928, -1e+30
          %v2947 = vld [vmem:[#allocation3] sm:$0xff]
          %v2948 = vld [vmem:[#allocation3 + $0x8] sm:$0xff]
          %v2949 = vld [vmem:[#allocation3 + $0x10] sm:$0xff]
          %v2950 = vld [vmem:[#allocation3 + $0x18] sm:$0xff]
          %v2951 = vld [vmem:[#allocation3 + $0x20] sm:$0xff]
          %v2952 = vld [vmem:[#allocation3 + $0x28] sm:$0xff]
          %v2953 = vld [vmem:[#allocation3 + $0x30] sm:$0xff]
          %v2954 = vld [vmem:[#allocation3 + $0x38] sm:$0xff]
          %v2955 = vld [vmem:[#allocation3 + $0x40] sm:$0xff]
          %v2956 = vld [vmem:[#allocation3 + $0x48] sm:$0xff]
          %v2957 = vld [vmem:[#allocation3 + $0x50] sm:$0xff]
          %v2958 = vld [vmem:[#allocation3 + $0x58] sm:$0xff]
          %v2959 = vld [vmem:[#allocation3 + $0x60] sm:$0xff]
          %v2960 = vld [vmem:[#allocation3 + $0x68] sm:$0xff]
          %v2961 = vld [vmem:[#allocation3 + $0x70] sm:$0xff]
          %v2962 = vld [vmem:[#allocation3 + $0x78] sm:$0xff]
          %2963 = vmax.xlane.f32.xlu0 %v2931
          %v2964 = vpop.xlane.xlu0 %2963
          %2965 = vmax.xlane.f32.xlu0 %v2932
          %v2966 = vpop.xlane.xlu0 %2965
          %2967 = vmax.xlane.f32.xlu0 %v2933
          %v2968 = vpop.xlane.xlu0 %2967
          %2969 = vmax.xlane.f32.xlu0 %v2934
          %v2970 = vpop.xlane.xlu0 %2969
          %2971 = vmax.xlane.f32.xlu0 %v2935
          %v2972 = vpop.xlane.xlu0 %2971
          %2973 = vmax.xlane.f32.xlu0 %v2936
          %v2974 = vpop.xlane.xlu0 %2973
          %2975 = vmax.xlane.f32.xlu0 %v2937
          %v2976 = vpop.xlane.xlu0 %2975
          %2977 = vmax.xlane.f32.xlu0 %v2938
          %v2978 = vpop.xlane.xlu0 %2977
          %2979 = vmax.xlane.f32.xlu0 %v2939
          %v2980 = vpop.xlane.xlu0 %2979
          %2981 = vmax.xlane.f32.xlu0 %v2940
          %v2982 = vpop.xlane.xlu0 %2981
          %2983 = vmax.xlane.f32.xlu0 %v2941
          %v2984 = vpop.xlane.xlu0 %2983
          %2985 = vmax.xlane.f32.xlu0 %v2942
          %v2986 = vpop.xlane.xlu0 %2985
          %2987 = vmax.xlane.f32.xlu0 %v2943
          %v2988 = vpop.xlane.xlu0 %2987
          %2989 = vmax.xlane.f32.xlu0 %v2944
          %v2990 = vpop.xlane.xlu0 %2989
          %2991 = vmax.xlane.f32.xlu0 %v2945
          %v2992 = vpop.xlane.xlu0 %2991
          %2993 = vmax.xlane.f32.xlu0 %v2946
          %v2994 = vpop.xlane.xlu0 %2993
          %v2995 = vmax.f32 %v2947, %v2964
          %v2996 = vmax.f32 %v2948, %v2966
          %v2997 = vmax.f32 %v2949, %v2968
          %v2998 = vmax.f32 %v2950, %v2970
          %v2999 = vmax.f32 %v2951, %v2972
          %v3000 = vmax.f32 %v2952, %v2974
          %v3001 = vmax.f32 %v2953, %v2976
          %v3002 = vmax.f32 %v2954, %v2978
          %v3003 = vmax.f32 %v2955, %v2980
          %v3004 = vmax.f32 %v2956, %v2982
          %v3005 = vmax.f32 %v2957, %v2984
          %v3006 = vmax.f32 %v2958, %v2986
          %v3007 = vmax.f32 %v2959, %v2988
          %v3008 = vmax.f32 %v2960, %v2990
          %v3009 = vmax.f32 %v2961, %v2992
          %v3010 = vmax.f32 %v2962, %v2994
          %v3011 = vsub.f32 %v2947, %v2995
          %v3012 = vsub.f32 %v2948, %v2996
          %v3013 = vsub.f32 %v2949, %v2997
          %v3014 = vsub.f32 %v2950, %v2998
          %v3015 = vsub.f32 %v2951, %v2999
          %v3016 = vsub.f32 %v2952, %v3000
          %v3017 = vsub.f32 %v2953, %v3001
          %v3018 = vsub.f32 %v2954, %v3002
          %v3019 = vsub.f32 %v2955, %v3003
          %v3020 = vsub.f32 %v2956, %v3004
          %v3021 = vsub.f32 %v2957, %v3005
          %v3022 = vsub.f32 %v2958, %v3006
          %v3023 = vsub.f32 %v2959, %v3007
          %v3024 = vsub.f32 %v2960, %v3008
          %v3025 = vsub.f32 %v2961, %v3009
          %v3026 = vsub.f32 %v2962, %v3010
          %v3027 = vmul.f32 %v3011, 1.442695
          %v3028 = vpow.pop %v3027
          %v3029 = vmul.f32 %v3012, 1.442695
          %v3030 = vpow.pop %v3029
          %v3031 = vmul.f32 %v3013, 1.442695
          %v3032 = vpow.pop %v3031
          %v3033 = vmul.f32 %v3014, 1.442695
          %v3034 = vpow.pop %v3033
          %v3035 = vmul.f32 %v3015, 1.442695
          %v3036 = vpow.pop %v3035
          %v3037 = vmul.f32 %v3016, 1.442695
          %v3038 = vpow.pop %v3037
          %v3039 = vmul.f32 %v3017, 1.442695
          %v3040 = vpow.pop %v3039
          %v3041 = vmul.f32 %v3018, 1.442695
          %v3042 = vpow.pop %v3041
          %v3043 = vmul.f32 %v3019, 1.442695
          %v3044 = vpow.pop %v3043
          %v3045 = vmul.f32 %v3020, 1.442695
          %v3046 = vpow.pop %v3045
          %v3047 = vmul.f32 %v3021, 1.442695
          %v3048 = vpow.pop %v3047
          %v3049 = vmul.f32 %v3022, 1.442695
          %v3050 = vpow.pop %v3049
          %v3051 = vmul.f32 %v3023, 1.442695
          %v3052 = vpow.pop %v3051
          %v3053 = vmul.f32 %v3024, 1.442695
          %v3054 = vpow.pop %v3053
          %v3055 = vmul.f32 %v3025, 1.442695
          %v3056 = vpow.pop %v3055
          %v3057 = vmul.f32 %v3026, 1.442695
          %v3058 = vpow.pop %v3057
          %3060 = vset.pattern.permute.xlu0 0
          %3061 = vperm.xlu0 %3060, %v2995
          %v3062 = vpop.permute.xlu0 %3061
          %3065 = vset.pattern.permute.xlu0 0
          %3066 = vperm.xlu0 %3065, %v2996
          %v3067 = vpop.permute.xlu0 %3066
          %3070 = vset.pattern.permute.xlu0 0
          %3071 = vperm.xlu0 %3070, %v2997
          %v3072 = vpop.permute.xlu0 %3071
          %3075 = vset.pattern.permute.xlu0 0
          %3076 = vperm.xlu0 %3075, %v2998
          %v3077 = vpop.permute.xlu0 %3076
          %3080 = vset.pattern.permute.xlu0 0
          %3081 = vperm.xlu0 %3080, %v2999
          %v3082 = vpop.permute.xlu0 %3081
          %3085 = vset.pattern.permute.xlu0 0
          %3086 = vperm.xlu0 %3085, %v3000
          %v3087 = vpop.permute.xlu0 %3086
          %3090 = vset.pattern.permute.xlu0 0
          %3091 = vperm.xlu0 %3090, %v3001
          %v3092 = vpop.permute.xlu0 %3091
          %3095 = vset.pattern.permute.xlu0 0
          %3096 = vperm.xlu0 %3095, %v3002
          %v3097 = vpop.permute.xlu0 %3096
          %3100 = vset.pattern.permute.xlu0 0
          %3101 = vperm.xlu0 %3100, %v3003
          %v3102 = vpop.permute.xlu0 %3101
          %3105 = vset.pattern.permute.xlu0 0
          %3106 = vperm.xlu0 %3105, %v3004
          %v3107 = vpop.permute.xlu0 %3106
          %3110 = vset.pattern.permute.xlu0 0
          %3111 = vperm.xlu0 %3110, %v3005
          %v3112 = vpop.permute.xlu0 %3111
          %3115 = vset.pattern.permute.xlu0 0
          %3116 = vperm.xlu0 %3115, %v3006
          %v3117 = vpop.permute.xlu0 %3116
          %3120 = vset.pattern.permute.xlu0 0
          %3121 = vperm.xlu0 %3120, %v3007
          %v3122 = vpop.permute.xlu0 %3121
          %3125 = vset.pattern.permute.xlu0 0
          %3126 = vperm.xlu0 %3125, %v3008
          %v3127 = vpop.permute.xlu0 %3126
          %3130 = vset.pattern.permute.xlu0 0
          %3131 = vperm.xlu0 %3130, %v3009
          %v3132 = vpop.permute.xlu0 %3131
          %3135 = vset.pattern.permute.xlu0 0
          %3136 = vperm.xlu0 %3135, %v3010
          %v3137 = vpop.permute.xlu0 %3136
          %v3139 = vsub.f32 %v2931, %v3062
          %v3140 = vsub.f32 %v2932, %v3067
          %v3141 = vsub.f32 %v2933, %v3072
          %v3142 = vsub.f32 %v2934, %v3077
          %v3143 = vsub.f32 %v2935, %v3082
          %v3144 = vsub.f32 %v2936, %v3087
          %v3145 = vsub.f32 %v2937, %v3092
          %v3146 = vsub.f32 %v2938, %v3097
          %v3147 = vsub.f32 %v2939, %v3102
          %v3148 = vsub.f32 %v2940, %v3107
          %v3149 = vsub.f32 %v2941, %v3112
          %v3150 = vsub.f32 %v2942, %v3117
          %v3151 = vsub.f32 %v2943, %v3122
          %v3152 = vsub.f32 %v2944, %v3127
          %v3153 = vsub.f32 %v2945, %v3132
          %v3154 = vsub.f32 %v2946, %v3137
          %v3155 = vmul.f32 %v3139, 1.442695
          %v3156 = vpow.pop %v3155
          %v3157 = vmul.f32 %v3140, 1.442695
          %v3158 = vpow.pop %v3157
          %v3159 = vmul.f32 %v3141, 1.442695
          %v3160 = vpow.pop %v3159
          %v3161 = vmul.f32 %v3142, 1.442695
          %v3162 = vpow.pop %v3161
          %v3163 = vmul.f32 %v3143, 1.442695
          %v3164 = vpow.pop %v3163
          %v3165 = vmul.f32 %v3144, 1.442695
          %v3166 = vpow.pop %v3165
          %v3167 = vmul.f32 %v3145, 1.442695
          %v3168 = vpow.pop %v3167
          %v3169 = vmul.f32 %v3146, 1.442695
          %v3170 = vpow.pop %v3169
          %v3171 = vmul.f32 %v3147, 1.442695
          %v3172 = vpow.pop %v3171
          %v3173 = vmul.f32 %v3148, 1.442695
          %v3174 = vpow.pop %v3173
          %v3175 = vmul.f32 %v3149, 1.442695
          %v3176 = vpow.pop %v3175
          %v3177 = vmul.f32 %v3150, 1.442695
          %v3178 = vpow.pop %v3177
          %v3179 = vmul.f32 %v3151, 1.442695
          %v3180 = vpow.pop %v3179
          %v3181 = vmul.f32 %v3152, 1.442695
          %v3182 = vpow.pop %v3181
          %v3183 = vmul.f32 %v3153, 1.442695
          %v3184 = vpow.pop %v3183
          %v3185 = vmul.f32 %v3154, 1.442695
          %v3186 = vpow.pop %v3185
          %3203 = vrot.lane.b32.xlu0 %v2947, 127
          %v3204 = vpop.permute.xlu0 %3203
          %3205 = vrot.lane.b32.xlu0 %v2948, 127
          %v3206 = vpop.permute.xlu0 %3205
          %3207 = vrot.lane.b32.xlu0 %v2949, 127
          %v3208 = vpop.permute.xlu0 %3207
          %3209 = vrot.lane.b32.xlu0 %v2950, 127
          %v3210 = vpop.permute.xlu0 %3209
          %3211 = vrot.lane.b32.xlu0 %v2951, 127
          %v3212 = vpop.permute.xlu0 %3211
          %3213 = vrot.lane.b32.xlu0 %v2952, 127
          %v3214 = vpop.permute.xlu0 %3213
          %3215 = vrot.lane.b32.xlu0 %v2953, 127
          %v3216 = vpop.permute.xlu0 %3215
          %3217 = vrot.lane.b32.xlu0 %v2954, 127
          %v3218 = vpop.permute.xlu0 %3217
          %3219 = vrot.lane.b32.xlu0 %v2955, 127
          %v3220 = vpop.permute.xlu0 %3219
          %3221 = vrot.lane.b32.xlu0 %v2956, 127
          %v3222 = vpop.permute.xlu0 %3221
          %3223 = vrot.lane.b32.xlu0 %v2957, 127
          %v3224 = vpop.permute.xlu0 %3223
          %3225 = vrot.lane.b32.xlu0 %v2958, 127
          %v3226 = vpop.permute.xlu0 %3225
          %3227 = vrot.lane.b32.xlu0 %v2959, 127
          %v3228 = vpop.permute.xlu0 %3227
          %3229 = vrot.lane.b32.xlu0 %v2960, 127
          %v3230 = vpop.permute.xlu0 %3229
          %3231 = vrot.lane.b32.xlu0 %v2961, 127
          %v3232 = vpop.permute.xlu0 %3231
          %3233 = vrot.lane.b32.xlu0 %v2962, 127
          %v3234 = vpop.permute.xlu0 %3233
          %v3251 = vmul.f32 %v3028, %v3204
          %v3252 = vmul.f32 %v3030, %v3206
          %v3253 = vmul.f32 %v3032, %v3208
          %v3254 = vmul.f32 %v3034, %v3210
          %v3255 = vmul.f32 %v3036, %v3212
          %v3256 = vmul.f32 %v3038, %v3214
          %v3257 = vmul.f32 %v3040, %v3216
          %v3258 = vmul.f32 %v3042, %v3218
          %v3259 = vmul.f32 %v3044, %v3220
          %v3260 = vmul.f32 %v3046, %v3222
          %v3261 = vmul.f32 %v3048, %v3224
          %v3262 = vmul.f32 %v3050, %v3226
          %v3263 = vmul.f32 %v3052, %v3228
          %v3264 = vmul.f32 %v3054, %v3230
          %v3265 = vmul.f32 %v3056, %v3232
          %v3266 = vmul.f32 %v3058, %v3234
          %3267 = vadd.xlane.f32.xlu0 %v3156
          %v3268 = vpop.xlane.xlu0 %3267
          %3269 = vadd.xlane.f32.xlu0 %v3158
          %v3270 = vpop.xlane.xlu0 %3269
          %3271 = vadd.xlane.f32.xlu0 %v3160
          %v3272 = vpop.xlane.xlu0 %3271
          %3273 = vadd.xlane.f32.xlu0 %v3162
          %v3274 = vpop.xlane.xlu0 %3273
          %3275 = vadd.xlane.f32.xlu0 %v3164
          %v3276 = vpop.xlane.xlu0 %3275
          %3277 = vadd.xlane.f32.xlu0 %v3166
          %v3278 = vpop.xlane.xlu0 %3277
          %3279 = vadd.xlane.f32.xlu0 %v3168
          %v3280 = vpop.xlane.xlu0 %3279
          %3281 = vadd.xlane.f32.xlu0 %v3170
          %v3282 = vpop.xlane.xlu0 %3281
          %3283 = vadd.xlane.f32.xlu0 %v3172
          %v3284 = vpop.xlane.xlu0 %3283
          %3285 = vadd.xlane.f32.xlu0 %v3174
          %v3286 = vpop.xlane.xlu0 %3285
          %3287 = vadd.xlane.f32.xlu0 %v3176
          %v3288 = vpop.xlane.xlu0 %3287
          %3289 = vadd.xlane.f32.xlu0 %v3178
          %v3290 = vpop.xlane.xlu0 %3289
          %3291 = vadd.xlane.f32.xlu0 %v3180
          %v3292 = vpop.xlane.xlu0 %3291
          %3293 = vadd.xlane.f32.xlu0 %v3182
          %v3294 = vpop.xlane.xlu0 %3293
          %3295 = vadd.xlane.f32.xlu0 %v3184
          %v3296 = vpop.xlane.xlu0 %3295
          %3297 = vadd.xlane.f32.xlu0 %v3186
          %v3298 = vpop.xlane.xlu0 %3297
          %v3299 = vadd.f32 %v3251, %v3268
          %v3300 = vadd.f32 %v3252, %v3270
          %v3301 = vadd.f32 %v3253, %v3272
          %v3302 = vadd.f32 %v3254, %v3274
          %v3303 = vadd.f32 %v3255, %v3276
          %v3304 = vadd.f32 %v3256, %v3278
          %v3305 = vadd.f32 %v3257, %v3280
          %v3306 = vadd.f32 %v3258, %v3282
          %v3307 = vadd.f32 %v3259, %v3284
          %v3308 = vadd.f32 %v3260, %v3286
          %v3309 = vadd.f32 %v3261, %v3288
          %v3310 = vadd.f32 %v3262, %v3290
          %v3311 = vadd.f32 %v3263, %v3292
          %v3312 = vadd.f32 %v3264, %v3294
          %v3313 = vadd.f32 %v3265, %v3296
          %v3314 = vadd.f32 %v3266, %v3298
          %3331 = vrot.lane.b32.xlu0 %v3299, 1
          %v3332 = vpop.permute.xlu0 %3331
          %3333 = vrot.lane.b32.xlu0 %v3300, 1
          %v3334 = vpop.permute.xlu0 %3333
          %3335 = vrot.lane.b32.xlu0 %v3301, 1
          %v3336 = vpop.permute.xlu0 %3335
          %3337 = vrot.lane.b32.xlu0 %v3302, 1
          %v3338 = vpop.permute.xlu0 %3337
          %3339 = vrot.lane.b32.xlu0 %v3303, 1
          %v3340 = vpop.permute.xlu0 %3339
          %3341 = vrot.lane.b32.xlu0 %v3304, 1
          %v3342 = vpop.permute.xlu0 %3341
          %3343 = vrot.lane.b32.xlu0 %v3305, 1
          %v3344 = vpop.permute.xlu0 %3343
          %3345 = vrot.lane.b32.xlu0 %v3306, 1
          %v3346 = vpop.permute.xlu0 %3345
          %3347 = vrot.lane.b32.xlu0 %v3307, 1
          %v3348 = vpop.permute.xlu0 %3347
          %3349 = vrot.lane.b32.xlu0 %v3308, 1
          %v3350 = vpop.permute.xlu0 %3349
          %3351 = vrot.lane.b32.xlu0 %v3309, 1
          %v3352 = vpop.permute.xlu0 %3351
          %3353 = vrot.lane.b32.xlu0 %v3310, 1
          %v3354 = vpop.permute.xlu0 %3353
          %3355 = vrot.lane.b32.xlu0 %v3311, 1
          %v3356 = vpop.permute.xlu0 %3355
          %3357 = vrot.lane.b32.xlu0 %v3312, 1
          %v3358 = vpop.permute.xlu0 %3357
          %3359 = vrot.lane.b32.xlu0 %v3313, 1
          %v3360 = vpop.permute.xlu0 %3359
          %3361 = vrot.lane.b32.xlu0 %v3314, 1
          %v3362 = vpop.permute.xlu0 %3361
          %vm3379 = vcmask 15368
          %3380 = vst.msk [vmem:[#allocation3] sm:$0xff] %vm3379, %v3332
          %3381 = vst.msk [vmem:[#allocation3 + $0x8] sm:$0xff] %vm3379, %v3334
          %3382 = vst.msk [vmem:[#allocation3 + $0x10] sm:$0xff] %vm3379, %v3336
          %3383 = vst.msk [vmem:[#allocation3 + $0x18] sm:$0xff] %vm3379, %v3338
          %3384 = vst.msk [vmem:[#allocation3 + $0x20] sm:$0xff] %vm3379, %v3340
          %3385 = vst.msk [vmem:[#allocation3 + $0x28] sm:$0xff] %vm3379, %v3342
          %3386 = vst.msk [vmem:[#allocation3 + $0x30] sm:$0xff] %vm3379, %v3344
          %3387 = vst.msk [vmem:[#allocation3 + $0x38] sm:$0xff] %vm3379, %v3346
          %3388 = vst.msk [vmem:[#allocation3 + $0x40] sm:$0xff] %vm3379, %v3348
          %3389 = vst.msk [vmem:[#allocation3 + $0x48] sm:$0xff] %vm3379, %v3350
          %3390 = vst.msk [vmem:[#allocation3 + $0x50] sm:$0xff] %vm3379, %v3352
          %3391 = vst.msk [vmem:[#allocation3 + $0x58] sm:$0xff] %vm3379, %v3354
          %3392 = vst.msk [vmem:[#allocation3 + $0x60] sm:$0xff] %vm3379, %v3356
          %3393 = vst.msk [vmem:[#allocation3 + $0x68] sm:$0xff] %vm3379, %v3358
          %3394 = vst.msk [vmem:[#allocation3 + $0x70] sm:$0xff] %vm3379, %v3360
          %3395 = vst.msk [vmem:[#allocation3 + $0x78] sm:$0xff] %vm3379, %v3362
          %v3396 = vld [vmem:[#allocation4] sm:$0xff]
          %v3397 = vld [vmem:[#allocation4 + $0x8] sm:$0xff]
          %v3398 = vld [vmem:[#allocation4 + $0x10] sm:$0xff]
          %v3399 = vld [vmem:[#allocation4 + $0x18] sm:$0xff]
          %v3400 = vld [vmem:[#allocation4 + $0x20] sm:$0xff]
          %v3401 = vld [vmem:[#allocation4 + $0x28] sm:$0xff]
          %v3402 = vld [vmem:[#allocation4 + $0x30] sm:$0xff]
          %v3403 = vld [vmem:[#allocation4 + $0x38] sm:$0xff]
          %v3404 = vld [vmem:[#allocation4 + $0x40] sm:$0xff]
          %v3405 = vld [vmem:[#allocation4 + $0x48] sm:$0xff]
          %v3406 = vld [vmem:[#allocation4 + $0x50] sm:$0xff]
          %v3407 = vld [vmem:[#allocation4 + $0x58] sm:$0xff]
          %v3408 = vld [vmem:[#allocation4 + $0x60] sm:$0xff]
          %v3409 = vld [vmem:[#allocation4 + $0x68] sm:$0xff]
          %v3410 = vld [vmem:[#allocation4 + $0x70] sm:$0xff]
          %v3411 = vld [vmem:[#allocation4 + $0x78] sm:$0xff]
          %3413 = vset.pattern.permute.xlu0 0
          %3414 = vperm.xlu0 %3413, %v3028
          %v3415 = vpop.permute.xlu0 %3414
          %3418 = vset.pattern.permute.xlu0 0
          %3419 = vperm.xlu0 %3418, %v3030
          %v3420 = vpop.permute.xlu0 %3419
          %3423 = vset.pattern.permute.xlu0 0
          %3424 = vperm.xlu0 %3423, %v3032
          %v3425 = vpop.permute.xlu0 %3424
          %3428 = vset.pattern.permute.xlu0 0
          %3429 = vperm.xlu0 %3428, %v3034
          %v3430 = vpop.permute.xlu0 %3429
          %3433 = vset.pattern.permute.xlu0 0
          %3434 = vperm.xlu0 %3433, %v3036
          %v3435 = vpop.permute.xlu0 %3434
          %3438 = vset.pattern.permute.xlu0 0
          %3439 = vperm.xlu0 %3438, %v3038
          %v3440 = vpop.permute.xlu0 %3439
          %3443 = vset.pattern.permute.xlu0 0
          %3444 = vperm.xlu0 %3443, %v3040
          %v3445 = vpop.permute.xlu0 %3444
          %3448 = vset.pattern.permute.xlu0 0
          %3449 = vperm.xlu0 %3448, %v3042
          %v3450 = vpop.permute.xlu0 %3449
          %3453 = vset.pattern.permute.xlu0 0
          %3454 = vperm.xlu0 %3453, %v3044
          %v3455 = vpop.permute.xlu0 %3454
          %3458 = vset.pattern.permute.xlu0 0
          %3459 = vperm.xlu0 %3458, %v3046
          %v3460 = vpop.permute.xlu0 %3459
          %3463 = vset.pattern.permute.xlu0 0
          %3464 = vperm.xlu0 %3463, %v3048
          %v3465 = vpop.permute.xlu0 %3464
          %3468 = vset.pattern.permute.xlu0 0
          %3469 = vperm.xlu0 %3468, %v3050
          %v3470 = vpop.permute.xlu0 %3469
          %3473 = vset.pattern.permute.xlu0 0
          %3474 = vperm.xlu0 %3473, %v3052
          %v3475 = vpop.permute.xlu0 %3474
          %3478 = vset.pattern.permute.xlu0 0
          %3479 = vperm.xlu0 %3478, %v3054
          %v3480 = vpop.permute.xlu0 %3479
          %3483 = vset.pattern.permute.xlu0 0
          %3484 = vperm.xlu0 %3483, %v3056
          %v3485 = vpop.permute.xlu0 %3484
          %3488 = vset.pattern.permute.xlu0 0
          %3489 = vperm.xlu0 %3488, %v3058
          %v3490 = vpop.permute.xlu0 %3489
          %v3492 = vmul.f32 %v3415, %v3396
          %v3493 = vmul.f32 %v3420, %v3397
          %v3494 = vmul.f32 %v3425, %v3398
          %v3495 = vmul.f32 %v3430, %v3399
          %v3496 = vmul.f32 %v3435, %v3400
          %v3497 = vmul.f32 %v3440, %v3401
          %v3498 = vmul.f32 %v3445, %v3402
          %v3499 = vmul.f32 %v3450, %v3403
          %v3500 = vmul.f32 %v3455, %v3404
          %v3501 = vmul.f32 %v3460, %v3405
          %v3502 = vmul.f32 %v3465, %v3406
          %v3503 = vmul.f32 %v3470, %v3407
          %v3504 = vmul.f32 %v3475, %v3408
          %v3505 = vmul.f32 %v3480, %v3409
          %v3506 = vmul.f32 %v3485, %v3410
          %v3507 = vmul.f32 %v3490, %v3411
          %v3508 = vpack.c.bf16 %v3158, %v3156
          %v3509 = vpack.c.bf16 %v3162, %v3160
          %v3510 = vpack.c.bf16 %v3166, %v3164
          %v3511 = vpack.c.bf16 %v3170, %v3168
          %v3512 = vpack.c.bf16 %v3174, %v3172
          %v3513 = vpack.c.bf16 %v3178, %v3176
          %v3514 = vpack.c.bf16 %v3182, %v3180
          %v3515 = vpack.c.bf16 %v3186, %v3184
          %v3532 = vunpack.c.l.b16 %v2729
          %v3533 = vunpack.c.l.b16 %v2730
          %v3534 = vunpack.c.l.b16 %v2731
          %v3535 = vunpack.c.l.b16 %v2732
          %v3536 = vunpack.c.l.b16 %v2733
          %v3537 = vunpack.c.l.b16 %v2734
          %v3538 = vunpack.c.l.b16 %v2735
          %v3539 = vunpack.c.l.b16 %v2736
          %v3540 = vunpack.c.l.b16 %v2737
          %v3541 = vunpack.c.l.b16 %v2738
          %v3542 = vunpack.c.l.b16 %v2739
          %v3543 = vunpack.c.l.b16 %v2740
          %v3544 = vunpack.c.l.b16 %v2741
          %v3545 = vunpack.c.l.b16 %v2742
          %v3546 = vunpack.c.l.b16 %v2743
          %v3547 = vunpack.c.l.b16 %v2744
          %v3548 = vpack.c.b16 %v3533, %v3532
          %v3549 = vpack.c.b16 %v3535, %v3534
          %v3550 = vpack.c.b16 %v3537, %v3536
          %v3551 = vpack.c.b16 %v3539, %v3538
          %v3552 = vpack.c.b16 %v3541, %v3540
          %v3553 = vpack.c.b16 %v3543, %v3542
          %v3554 = vpack.c.b16 %v3545, %v3544
          %v3555 = vpack.c.b16 %v3547, %v3546
          %3564 = vmatprep.subr.bf16.mxu0 0
          %3565 = vmatpush1.bf16.msra.mxu0 %v3548
          %3566 = vmatprep.subr.bf16.mxu0 0
          %3567 = vmatpush1.bf16.msra.mxu0 %v3549
          %3568 = vmatprep.subr.bf16.mxu0 0
          %3569 = vmatpush1.bf16.msra.mxu0 %v3550
          %3570 = vmatprep.subr.bf16.mxu0 0
          %3571 = vmatpush1.bf16.msra.mxu0 %v3551
          %3572 = vmatprep.subr.bf16.mxu0 0
          %3573 = vmatpush1.bf16.msra.mxu0 %v3552
          %3574 = vmatprep.subr.bf16.mxu0 0
          %3575 = vmatpush1.bf16.msra.mxu0 %v3553
          %3576 = vmatprep.subr.bf16.mxu0 0
          %3577 = vmatpush1.bf16.msra.mxu0 %v3554
          %3578 = vmatprep.subr.bf16.mxu0 0
          %3579 = vmatpush1.bf16.msra.mxu0 %v3555
          %3580 = vmatprep.subr.bf16.mxu0 0
          %3581 = vmatpush1.bf16.msra.mxu0 0
          %3582 = vmatprep.subr.bf16.mxu0 0
          %3583 = vmatpush1.bf16.msra.mxu0 0
          %3584 = vmatprep.subr.bf16.mxu0 0
          %3585 = vmatpush1.bf16.msra.mxu0 0
          %3586 = vmatprep.subr.bf16.mxu0 0
          %3587 = vmatpush1.bf16.msra.mxu0 0
          %3588 = vmatprep.subr.bf16.mxu0 0
          %3589 = vmatpush1.bf16.msra.mxu0 0
          %3590 = vmatprep.subr.bf16.mxu0 0
          %3591 = vmatpush1.bf16.msra.mxu0 0
          %3592 = vmatprep.subr.bf16.mxu0 0
          %3593 = vmatpush1.bf16.msra.mxu0 0
          %3594 = vmatprep.subr.bf16.mxu0 0
          %3595 = vmatpush1.bf16.msra.mxu0 0
          %3596 = vmatprep.mubr.bf16.mxu0 0
          %3597 = vmatmul.mubr.bf16.gmra.mrb[0].mxu0 %v3508
          %v3598 = vpop.f32.mrb[0].mxu0
          %v3599 = vadd.f32 0.0, %v3598
          %v3600 = vpop.f32.mrb[0].mxu0
          %v3601 = vpop.f32.mrb[0].mxu0
          %v3602 = vadd.f32 0.0, %v3601
          %v3603 = vpop.f32.mrb[0].mxu0
          %3604 = vmatprep.mubr.bf16.mxu0 0
          %3605 = vmatmul.mubr.bf16.gmra.mrb[0].mxu0 %v3509
          %v3606 = vpop.f32.mrb[0].mxu0
          %v3607 = vadd.f32 0.0, %v3606
          %v3608 = vpop.f32.mrb[0].mxu0
          %v3609 = vpop.f32.mrb[0].mxu0
          %v3610 = vadd.f32 0.0, %v3609
          %v3611 = vpop.f32.mrb[0].mxu0
          %3612 = vmatprep.mubr.bf16.mxu0 0
          %3613 = vmatmul.mubr.bf16.gmra.mrb[0].mxu0 %v3510
          %v3614 = vpop.f32.mrb[0].mxu0
          %v3615 = vadd.f32 0.0, %v3614
          %v3616 = vpop.f32.mrb[0].mxu0
          %v3617 = vpop.f32.mrb[0].mxu0
          %v3618 = vadd.f32 0.0, %v3617
          %v3619 = vpop.f32.mrb[0].mxu0
          %3620 = vmatprep.mubr.bf16.mxu0 0
          %3621 = vmatmul.mubr.bf16.gmra.mrb[0].mxu0 %v3511
          %v3622 = vpop.f32.mrb[0].mxu0
          %v3623 = vadd.f32 0.0, %v3622
          %v3624 = vpop.f32.mrb[0].mxu0
          %v3625 = vpop.f32.mrb[0].mxu0
          %v3626 = vadd.f32 0.0, %v3625
          %v3627 = vpop.f32.mrb[0].mxu0
          %3628 = vmatprep.mubr.bf16.mxu0 0
          %3629 = vmatmul.mubr.bf16.gmra.mrb[0].mxu0 %v3512
          %v3630 = vpop.f32.mrb[0].mxu0
          %v3631 = vadd.f32 0.0, %v3630
          %v3632 = vpop.f32.mrb[0].mxu0
          %v3633 = vpop.f32.mrb[0].mxu0
          %v3634 = vadd.f32 0.0, %v3633
          %v3635 = vpop.f32.mrb[0].mxu0
          %3636 = vmatprep.mubr.bf16.mxu0 0
          %3637 = vmatmul.mubr.bf16.gmra.mrb[0].mxu0 %v3513
          %v3638 = vpop.f32.mrb[0].mxu0
          %v3639 = vadd.f32 0.0, %v3638
          %v3640 = vpop.f32.mrb[0].mxu0
          %v3641 = vpop.f32.mrb[0].mxu0
          %v3642 = vadd.f32 0.0, %v3641
          %v3643 = vpop.f32.mrb[0].mxu0
          %3644 = vmatprep.mubr.bf16.mxu0 0
          %3645 = vmatmul.mubr.bf16.gmra.mrb[0].mxu0 %v3514
          %v3646 = vpop.f32.mrb[0].mxu0
          %v3647 = vadd.f32 0.0, %v3646
          %v3648 = vpop.f32.mrb[0].mxu0
          %v3649 = vpop.f32.mrb[0].mxu0
          %v3650 = vadd.f32 0.0, %v3649
          %v3651 = vpop.f32.mrb[0].mxu0
          %3652 = vmatprep.mubr.bf16.mxu0 0
          %3653 = vmatmul.mubr.bf16.gmra.mrb[0].mxu0 %v3515
          %v3654 = vpop.f32.mrb[0].mxu0
          %v3655 = vadd.f32 0.0, %v3654
          %v3656 = vpop.f32.mrb[0].mxu0
          %v3657 = vpop.f32.mrb[0].mxu0
          %v3658 = vadd.f32 0.0, %v3657
          %v3659 = vpop.f32.mrb[0].mxu0
          %3660 = vdwg.mxu0
          %v3661 = vadd.f32 %v3492, %v3599
          %v3662 = vadd.f32 %v3493, %v3602
          %v3663 = vadd.f32 %v3494, %v3607
          %v3664 = vadd.f32 %v3495, %v3610
          %v3665 = vadd.f32 %v3496, %v3615
          %v3666 = vadd.f32 %v3497, %v3618
          %v3667 = vadd.f32 %v3498, %v3623
          %v3668 = vadd.f32 %v3499, %v3626
          %v3669 = vadd.f32 %v3500, %v3631
          %v3670 = vadd.f32 %v3501, %v3634
          %v3671 = vadd.f32 %v3502, %v3639
          %v3672 = vadd.f32 %v3503, %v3642
          %v3673 = vadd.f32 %v3504, %v3647
          %v3674 = vadd.f32 %v3505, %v3650
          %v3675 = vadd.f32 %v3506, %v3655
          %v3676 = vadd.f32 %v3507, %v3658
          %3677 = vst.msk [vmem:[#allocation4] sm:$0xff] %vm2785, %v3661
          %3678 = vst.msk [vmem:[#allocation4 + $0x8] sm:$0xff] %vm2785, %v3662
          %3679 = vst.msk [vmem:[#allocation4 + $0x10] sm:$0xff] %vm2785, %v3663
          %3680 = vst.msk [vmem:[#allocation4 + $0x18] sm:$0xff] %vm2785, %v3664
          %3681 = vst.msk [vmem:[#allocation4 + $0x20] sm:$0xff] %vm2785, %v3665
          %3682 = vst.msk [vmem:[#allocation4 + $0x28] sm:$0xff] %vm2785, %v3666
          %3683 = vst.msk [vmem:[#allocation4 + $0x30] sm:$0xff] %vm2785, %v3667
          %3684 = vst.msk [vmem:[#allocation4 + $0x38] sm:$0xff] %vm2785, %v3668
          %3685 = vst.msk [vmem:[#allocation4 + $0x40] sm:$0xff] %vm2785, %v3669
          %3686 = vst.msk [vmem:[#allocation4 + $0x48] sm:$0xff] %vm2785, %v3670
          %3687 = vst.msk [vmem:[#allocation4 + $0x50] sm:$0xff] %vm2785, %v3671
          %3688 = vst.msk [vmem:[#allocation4 + $0x58] sm:$0xff] %vm2785, %v3672
          %3689 = vst.msk [vmem:[#allocation4 + $0x60] sm:$0xff] %vm2785, %v3673
          %3690 = vst.msk [vmem:[#allocation4 + $0x68] sm:$0xff] %vm2785, %v3674
          %3691 = vst.msk [vmem:[#allocation4 + $0x70] sm:$0xff] %vm2785, %v3675
          %3692 = vst.msk [vmem:[#allocation4 + $0x78] sm:$0xff] %vm2785, %v3676
          %vm3693 = vcmask 7168
          %3694 = vst.msk [vmem:[#allocation3] sm:$0xff] %vm3693, %v2995
          %3695 = vst.msk [vmem:[#allocation3 + $0x8] sm:$0xff] %vm3693, %v2996
          %3696 = vst.msk [vmem:[#allocation3 + $0x10] sm:$0xff] %vm3693, %v2997
          %3697 = vst.msk [vmem:[#allocation3 + $0x18] sm:$0xff] %vm3693, %v2998
          %3698 = vst.msk [vmem:[#allocation3 + $0x20] sm:$0xff] %vm3693, %v2999
          %3699 = vst.msk [vmem:[#allocation3 + $0x28] sm:$0xff] %vm3693, %v3000
          %3700 = vst.msk [vmem:[#allocation3 + $0x30] sm:$0xff] %vm3693, %v3001
          %3701 = vst.msk [vmem:[#allocation3 + $0x38] sm:$0xff] %vm3693, %v3002
          %3702 = vst.msk [vmem:[#allocation3 + $0x40] sm:$0xff] %vm3693, %v3003
          %3703 = vst.msk [vmem:[#allocation3 + $0x48] sm:$0xff] %vm3693, %v3004
          %3704 = vst.msk [vmem:[#allocation3 + $0x50] sm:$0xff] %vm3693, %v3005
          %3705 = vst.msk [vmem:[#allocation3 + $0x58] sm:$0xff] %vm3693, %v3006
          %3706 = vst.msk [vmem:[#allocation3 + $0x60] sm:$0xff] %vm3693, %v3007
          %3707 = vst.msk [vmem:[#allocation3 + $0x68] sm:$0xff] %vm3693, %v3008
          %3708 = vst.msk [vmem:[#allocation3 + $0x70] sm:$0xff] %vm3693, %v3009
          %3709 = vst.msk [vmem:[#allocation3 + $0x78] sm:$0xff] %vm3693, %v3010
          %v3710 = vld [vmem:[#allocation2] sm:$0xff]
          %v3711 = vld [vmem:[#allocation2 + $0x8] sm:$0xff]
          %v3712 = vld [vmem:[#allocation2 + $0x10] sm:$0xff]
          %v3713 = vld [vmem:[#allocation2 + $0x18] sm:$0xff]
          %v3714 = vld [vmem:[#allocation2 + $0x20] sm:$0xff]
          %v3715 = vld [vmem:[#allocation2 + $0x28] sm:$0xff]
          %v3716 = vld [vmem:[#allocation2 + $0x30] sm:$0xff]
          %v3717 = vld [vmem:[#allocation2 + $0x38] sm:$0xff]
          %v3718 = vld [vmem:[%s320] sm:$0xf]
          %v3719 = vld [vmem:[%s320 + $0x4] sm:$0xf]
          %v3720 = vld [vmem:[%s320 + $0x8] sm:$0xf]
          %v3721 = vld [vmem:[%s320 + $0xc] sm:$0xf]
          %v3722 = vld [vmem:[%s320 + $0x10] sm:$0xf]
          %v3723 = vld [vmem:[%s320 + $0x14] sm:$0xf]
          %v3724 = vld [vmem:[%s320 + $0x18] sm:$0xf]
          %v3725 = vld [vmem:[%s320 + $0x1c] sm:$0xf]
          %v3726 = vld [vmem:[%s320 + $0x20] sm:$0xf]
          %v3727 = vld [vmem:[%s320 + $0x24] sm:$0xf]
          %v3728 = vld [vmem:[%s320 + $0x28] sm:$0xf]
          %v3729 = vld [vmem:[%s320 + $0x2c] sm:$0xf]
          %v3730 = vld [vmem:[%s320 + $0x30] sm:$0xf]
          %v3731 = vld [vmem:[%s320 + $0x34] sm:$0xf]
          %v3732 = vld [vmem:[%s320 + $0x38] sm:$0xf]
          %v3733 = vld [vmem:[%s320 + $0x3c] sm:$0xf]
          %v3734 = vld [vmem:[%s329] sm:$0xf]
          %v3735 = vld [vmem:[%s329 + $0x4] sm:$0xf]
          %v3736 = vld [vmem:[%s329 + $0x8] sm:$0xf]
          %v3737 = vld [vmem:[%s329 + $0xc] sm:$0xf]
          %v3738 = vld [vmem:[%s329 + $0x10] sm:$0xf]
          %v3739 = vld [vmem:[%s329 + $0x14] sm:$0xf]
          %v3740 = vld [vmem:[%s329 + $0x18] sm:$0xf]
          %v3741 = vld [vmem:[%s329 + $0x1c] sm:$0xf]
          %v3742 = vld [vmem:[%s329 + $0x20] sm:$0xf]
          %v3743 = vld [vmem:[%s329 + $0x24] sm:$0xf]
          %v3744 = vld [vmem:[%s329 + $0x28] sm:$0xf]
          %v3745 = vld [vmem:[%s329 + $0x2c] sm:$0xf]
          %v3746 = vld [vmem:[%s329 + $0x30] sm:$0xf]
          %v3747 = vld [vmem:[%s329 + $0x34] sm:$0xf]
          %v3748 = vld [vmem:[%s329 + $0x38] sm:$0xf]
          %v3749 = vld [vmem:[%s329 + $0x3c] sm:$0xf]
          %3758 = vrot.lane.b32.xlu0 %v3710, 64
          %v3759 = vpop.permute.xlu0 %3758
          %3760 = vrot.lane.b32.xlu0 %v3711, 64
          %v3761 = vpop.permute.xlu0 %3760
          %3762 = vrot.lane.b32.xlu0 %v3712, 64
          %v3763 = vpop.permute.xlu0 %3762
          %3764 = vrot.lane.b32.xlu0 %v3713, 64
          %v3765 = vpop.permute.xlu0 %3764
          %3766 = vrot.lane.b32.xlu0 %v3714, 64
          %v3767 = vpop.permute.xlu0 %3766
          %3768 = vrot.lane.b32.xlu0 %v3715, 64
          %v3769 = vpop.permute.xlu0 %3768
          %3770 = vrot.lane.b32.xlu0 %v3716, 64
          %v3771 = vpop.permute.xlu0 %3770
          %3772 = vrot.lane.b32.xlu0 %v3717, 64
          %v3773 = vpop.permute.xlu0 %3772
          %v3790 = vunpack.c.l.b16 %v3718
          %v3791 = vunpack.c.l.b16 %v3719
          %v3792 = vunpack.c.l.b16 %v3720
          %v3793 = vunpack.c.l.b16 %v3721
          %v3794 = vunpack.c.l.b16 %v3722
          %v3795 = vunpack.c.l.b16 %v3723
          %v3796 = vunpack.c.l.b16 %v3724
          %v3797 = vunpack.c.l.b16 %v3725
          %v3798 = vunpack.c.l.b16 %v3726
          %v3799 = vunpack.c.l.b16 %v3727
          %v3800 = vunpack.c.l.b16 %v3728
          %v3801 = vunpack.c.l.b16 %v3729
          %v3802 = vunpack.c.l.b16 %v3730
          %v3803 = vunpack.c.l.b16 %v3731
          %v3804 = vunpack.c.l.b16 %v3732
          %v3805 = vunpack.c.l.b16 %v3733
          %v3806 = vpack.c.b16 %v3791, %v3790
          %v3807 = vpack.c.b16 %v3793, %v3792
          %v3808 = vpack.c.b16 %v3795, %v3794
          %v3809 = vpack.c.b16 %v3797, %v3796
          %v3810 = vpack.c.b16 %v3799, %v3798
          %v3811 = vpack.c.b16 %v3801, %v3800
          %v3812 = vpack.c.b16 %v3803, %v3802
          %v3813 = vpack.c.b16 %v3805, %v3804
          %3814 = vrot.lane.b32.xlu0 %v3806, 64
          %v3815 = vpop.permute.xlu0 %3814
          %3816 = vrot.lane.b32.xlu0 %v3807, 64
          %v3817 = vpop.permute.xlu0 %3816
          %3818 = vrot.lane.b32.xlu0 %v3808, 64
          %v3819 = vpop.permute.xlu0 %3818
          %3820 = vrot.lane.b32.xlu0 %v3809, 64
          %v3821 = vpop.permute.xlu0 %3820
          %3822 = vrot.lane.b32.xlu0 %v3810, 64
          %v3823 = vpop.permute.xlu0 %3822
          %3824 = vrot.lane.b32.xlu0 %v3811, 64
          %v3825 = vpop.permute.xlu0 %3824
          %3826 = vrot.lane.b32.xlu0 %v3812, 64
          %v3827 = vpop.permute.xlu0 %3826
          %3828 = vrot.lane.b32.xlu0 %v3813, 64
          %v3829 = vpop.permute.xlu0 %3828
          %v3831 = vsel %vm2785, %v3759, 0
          %v3834 = vsel %vm2785, %v3761, 0
          %v3837 = vsel %vm2785, %v3763, 0
          %v3840 = vsel %vm2785, %v3765, 0
          %v3843 = vsel %vm2785, %v3767, 0
          %v3846 = vsel %vm2785, %v3769, 0
          %v3849 = vsel %vm2785, %v3771, 0
          %v3852 = vsel %vm2785, %v3773, 0
          %v3855 = vsel %vm2785, %v3815, 0
          %v3858 = vsel %vm2785, %v3817, 0
          %v3861 = vsel %vm2785, %v3819, 0
          %v3864 = vsel %vm2785, %v3821, 0
          %v3867 = vsel %vm2785, %v3823, 0
          %v3870 = vsel %vm2785, %v3825, 0
          %v3873 = vsel %vm2785, %v3827, 0
          %v3876 = vsel %vm2785, %v3829, 0
          %3878 = vmatprep.subr.bf16.mxu0 0
          %3879 = vmatpush1.bf16.xpose.msra.mxu0 %v3855
          %3880 = vmatprep.subr.bf16.mxu0 0
          %3881 = vmatpush1.bf16.xpose.msra.mxu0 %v3858
          %3882 = vmatprep.subr.bf16.mxu0 0
          %3883 = vmatpush1.bf16.xpose.msra.mxu0 %v3861
          %3884 = vmatprep.subr.bf16.mxu0 0
          %3885 = vmatpush1.bf16.xpose.msra.mxu0 %v3864
          %3886 = vmatprep.subr.bf16.mxu0 0
          %3887 = vmatpush1.bf16.xpose.msra.mxu0 %v3867
          %3888 = vmatprep.subr.bf16.mxu0 0
          %3889 = vmatpush1.bf16.xpose.msra.mxu0 %v3870
          %3890 = vmatprep.subr.bf16.mxu0 0
          %3891 = vmatpush1.bf16.xpose.msra.mxu0 %v3873
          %3892 = vmatprep.subr.bf16.mxu0 0
          %3893 = vmatpush1.bf16.xpose.msra.mxu0 %v3876
          %3894 = vmatprep.subr.bf16.mxu0 0
          %3895 = vmatpush1.bf16.xpose.msra.mxu0 0
          %3896 = vmatprep.subr.bf16.mxu0 0
          %3897 = vmatpush1.bf16.xpose.msra.mxu0 0
          %3898 = vmatprep.subr.bf16.mxu0 0
          %3899 = vmatpush1.bf16.xpose.msra.mxu0 0
          %3900 = vmatprep.subr.bf16.mxu0 0
          %3901 = vmatpush1.bf16.xpose.msra.mxu0 0
          %3902 = vmatprep.subr.bf16.mxu0 0
          %3903 = vmatpush1.bf16.xpose.msra.mxu0 0
          %3904 = vmatprep.subr.bf16.mxu0 0
          %3905 = vmatpush1.bf16.xpose.msra.mxu0 0
          %3906 = vmatprep.subr.bf16.mxu0 0
          %3907 = vmatpush1.bf16.xpose.msra.mxu0 0
          %3908 = vmatprep.subr.bf16.mxu0 0
          %3909 = vmatpush1.bf16.xpose.msra.mxu0 0
          %3910 = vmatprep.mubr.bf16.mxu0 0
          %3911 = vmatmul.mubr.bf16.gmra.mrb[0].mxu0 %v3831
          %v3912 = vpop.f32.mrb[0].mxu0
          %v3913 = vadd.f32 0.0, %v3912
          %v3914 = vpop.f32.mrb[0].mxu0
          %v3915 = vpop.f32.mrb[0].mxu0
          %v3916 = vadd.f32 0.0, %v3915
          %v3917 = vpop.f32.mrb[0].mxu0
          %3918 = vmatprep.mubr.bf16.mxu0 0
          %3919 = vmatmul.mubr.bf16.gmra.mrb[0].mxu0 %v3834
          %v3920 = vpop.f32.mrb[0].mxu0
          %v3921 = vadd.f32 0.0, %v3920
          %v3922 = vpop.f32.mrb[0].mxu0
          %v3923 = vpop.f32.mrb[0].mxu0
          %v3924 = vadd.f32 0.0, %v3923
          %v3925 = vpop.f32.mrb[0].mxu0
          %3926 = vmatprep.mubr.bf16.mxu0 0
          %3927 = vmatmul.mubr.bf16.gmra.mrb[0].mxu0 %v3837
          %v3928 = vpop.f32.mrb[0].mxu0
          %v3929 = vadd.f32 0.0, %v3928
          %v3930 = vpop.f32.mrb[0].mxu0
          %v3931 = vpop.f32.mrb[0].mxu0
          %v3932 = vadd.f32 0.0, %v3931
          %v3933 = vpop.f32.mrb[0].mxu0
          %3934 = vmatprep.mubr.bf16.mxu0 0
          %3935 = vmatmul.mubr.bf16.gmra.mrb[0].mxu0 %v3840
          %v3936 = vpop.f32.mrb[0].mxu0
          %v3937 = vadd.f32 0.0, %v3936
          %v3938 = vpop.f32.mrb[0].mxu0
          %v3939 = vpop.f32.mrb[0].mxu0
          %v3940 = vadd.f32 0.0, %v3939
          %v3941 = vpop.f32.mrb[0].mxu0
          %3942 = vmatprep.mubr.bf16.mxu0 0
          %3943 = vmatmul.mubr.bf16.gmra.mrb[0].mxu0 %v3843
          %v3944 = vpop.f32.mrb[0].mxu0
          %v3945 = vadd.f32 0.0, %v3944
          %v3946 = vpop.f32.mrb[0].mxu0
          %v3947 = vpop.f32.mrb[0].mxu0
          %v3948 = vadd.f32 0.0, %v3947
          %v3949 = vpop.f32.mrb[0].mxu0
          %3950 = vmatprep.mubr.bf16.mxu0 0
          %3951 = vmatmul.mubr.bf16.gmra.mrb[0].mxu0 %v3846
          %v3952 = vpop.f32.mrb[0].mxu0
          %v3953 = vadd.f32 0.0, %v3952
          %v3954 = vpop.f32.mrb[0].mxu0
          %v3955 = vpop.f32.mrb[0].mxu0
          %v3956 = vadd.f32 0.0, %v3955
          %v3957 = vpop.f32.mrb[0].mxu0
          %3958 = vmatprep.mubr.bf16.mxu0 0
          %3959 = vmatmul.mubr.bf16.gmra.mrb[0].mxu0 %v3849
          %v3960 = vpop.f32.mrb[0].mxu0
          %v3961 = vadd.f32 0.0, %v3960
          %v3962 = vpop.f32.mrb[0].mxu0
          %v3963 = vpop.f32.mrb[0].mxu0
          %v3964 = vadd.f32 0.0, %v3963
          %v3965 = vpop.f32.mrb[0].mxu0
          %3966 = vmatprep.mubr.bf16.mxu0 0
          %3967 = vmatmul.mubr.bf16.gmra.mrb[0].mxu0 %v3852
          %v3968 = vpop.f32.mrb[0].mxu0
          %v3969 = vadd.f32 0.0, %v3968
          %v3970 = vpop.f32.mrb[0].mxu0
          %v3971 = vpop.f32.mrb[0].mxu0
          %v3972 = vadd.f32 0.0, %v3971
          %v3973 = vpop.f32.mrb[0].mxu0
          %3974 = vdwg.mxu0
          %v3975 = vsel %vm2689, %v3913, -1e+30
          %v3976 = vsel %vm2690, %v3916, -1e+30
          %v3977 = vsel %vm2691, %v3921, -1e+30
          %v3978 = vsel %vm2692, %v3924, -1e+30
          %v3979 = vsel %vm2693, %v3929, -1e+30
          %v3980 = vsel %vm2694, %v3932, -1e+30
          %v3981 = vsel %vm2695, %v3937, -1e+30
          %v3982 = vsel %vm2696, %v3940, -1e+30
          %v3983 = vsel %vm2697, %v3945, -1e+30
          %v3984 = vsel %vm2698, %v3948, -1e+30
          %v3985 = vsel %vm2699, %v3953, -1e+30
          %v3986 = vsel %vm2700, %v3956, -1e+30
          %v3987 = vsel %vm2701, %v3961, -1e+30
          %v3988 = vsel %vm2702, %v3964, -1e+30
          %v3989 = vsel %vm2703, %v3969, -1e+30
          %v3990 = vsel %vm2704, %v3972, -1e+30
          %s3991 = scalar_lea.vmem [#allocation3], 128
          %v3992 = vld [vmem:[%s3991] sm:$0xff]
          %v3993 = vld [vmem:[%s3991 + $0x8] sm:$0xff]
          %v3994 = vld [vmem:[%s3991 + $0x10] sm:$0xff]
          %v3995 = vld [vmem:[%s3991 + $0x18] sm:$0xff]
          %v3996 = vld [vmem:[%s3991 + $0x20] sm:$0xff]
          %v3997 = vld [vmem:[%s3991 + $0x28] sm:$0xff]
          %v3998 = vld [vmem:[%s3991 + $0x30] sm:$0xff]
          %v3999 = vld [vmem:[%s3991 + $0x38] sm:$0xff]
          %v4000 = vld [vmem:[%s3991 + $0x40] sm:$0xff]
          %v4001 = vld [vmem:[%s3991 + $0x48] sm:$0xff]
          %v4002 = vld [vmem:[%s3991 + $0x50] sm:$0xff]
          %v4003 = vld [vmem:[%s3991 + $0x58] sm:$0xff]
          %v4004 = vld [vmem:[%s3991 + $0x60] sm:$0xff]
          %v4005 = vld [vmem:[%s3991 + $0x68] sm:$0xff]
          %v4006 = vld [vmem:[%s3991 + $0x70] sm:$0xff]
          %v4007 = vld [vmem:[%s3991 + $0x78] sm:$0xff]
          %4008 = vmax.xlane.f32.xlu0 %v3975
          %v4009 = vpop.xlane.xlu0 %4008
          %4010 = vmax.xlane.f32.xlu0 %v3976
          %v4011 = vpop.xlane.xlu0 %4010
          %4012 = vmax.xlane.f32.xlu0 %v3977
          %v4013 = vpop.xlane.xlu0 %4012
          %4014 = vmax.xlane.f32.xlu0 %v3978
          %v4015 = vpop.xlane.xlu0 %4014
          %4016 = vmax.xlane.f32.xlu0 %v3979
          %v4017 = vpop.xlane.xlu0 %4016
          %4018 = vmax.xlane.f32.xlu0 %v3980
          %v4019 = vpop.xlane.xlu0 %4018
          %4020 = vmax.xlane.f32.xlu0 %v3981
          %v4021 = vpop.xlane.xlu0 %4020
          %4022 = vmax.xlane.f32.xlu0 %v3982
          %v4023 = vpop.xlane.xlu0 %4022
          %4024 = vmax.xlane.f32.xlu0 %v3983
          %v4025 = vpop.xlane.xlu0 %4024
          %4026 = vmax.xlane.f32.xlu0 %v3984
          %v4027 = vpop.xlane.xlu0 %4026
          %4028 = vmax.xlane.f32.xlu0 %v3985
          %v4029 = vpop.xlane.xlu0 %4028
          %4030 = vmax.xlane.f32.xlu0 %v3986
          %v4031 = vpop.xlane.xlu0 %4030
          %4032 = vmax.xlane.f32.xlu0 %v3987
          %v4033 = vpop.xlane.xlu0 %4032
          %4034 = vmax.xlane.f32.xlu0 %v3988
          %v4035 = vpop.xlane.xlu0 %4034
          %4036 = vmax.xlane.f32.xlu0 %v3989
          %v4037 = vpop.xlane.xlu0 %4036
          %4038 = vmax.xlane.f32.xlu0 %v3990
          %v4039 = vpop.xlane.xlu0 %4038
          %v4040 = vmax.f32 %v3992, %v4009
          %v4041 = vmax.f32 %v3993, %v4011
          %v4042 = vmax.f32 %v3994, %v4013
          %v4043 = vmax.f32 %v3995, %v4015
          %v4044 = vmax.f32 %v3996, %v4017
          %v4045 = vmax.f32 %v3997, %v4019
          %v4046 = vmax.f32 %v3998, %v4021
          %v4047 = vmax.f32 %v3999, %v4023
          %v4048 = vmax.f32 %v4000, %v4025
          %v4049 = vmax.f32 %v4001, %v4027
          %v4050 = vmax.f32 %v4002, %v4029
          %v4051 = vmax.f32 %v4003, %v4031
          %v4052 = vmax.f32 %v4004, %v4033
          %v4053 = vmax.f32 %v4005, %v4035
          %v4054 = vmax.f32 %v4006, %v4037
          %v4055 = vmax.f32 %v4007, %v4039
          %v4056 = vsub.f32 %v3992, %v4040
          %v4057 = vsub.f32 %v3993, %v4041
          %v4058 = vsub.f32 %v3994, %v4042
          %v4059 = vsub.f32 %v3995, %v4043
          %v4060 = vsub.f32 %v3996, %v4044
          %v4061 = vsub.f32 %v3997, %v4045
          %v4062 = vsub.f32 %v3998, %v4046
          %v4063 = vsub.f32 %v3999, %v4047
          %v4064 = vsub.f32 %v4000, %v4048
          %v4065 = vsub.f32 %v4001, %v4049
          %v4066 = vsub.f32 %v4002, %v4050
          %v4067 = vsub.f32 %v4003, %v4051
          %v4068 = vsub.f32 %v4004, %v4052
          %v4069 = vsub.f32 %v4005, %v4053
          %v4070 = vsub.f32 %v4006, %v4054
          %v4071 = vsub.f32 %v4007, %v4055
          %v4072 = vmul.f32 %v4056, 1.442695
          %v4073 = vpow.pop %v4072
          %v4074 = vmul.f32 %v4057, 1.442695
          %v4075 = vpow.pop %v4074
          %v4076 = vmul.f32 %v4058, 1.442695
          %v4077 = vpow.pop %v4076
          %v4078 = vmul.f32 %v4059, 1.442695
          %v4079 = vpow.pop %v4078
          %v4080 = vmul.f32 %v4060, 1.442695
          %v4081 = vpow.pop %v4080
          %v4082 = vmul.f32 %v4061, 1.442695
          %v4083 = vpow.pop %v4082
          %v4084 = vmul.f32 %v4062, 1.442695
          %v4085 = vpow.pop %v4084
          %v4086 = vmul.f32 %v4063, 1.442695
          %v4087 = vpow.pop %v4086
          %v4088 = vmul.f32 %v4064, 1.442695
          %v4089 = vpow.pop %v4088
          %v4090 = vmul.f32 %v4065, 1.442695
          %v4091 = vpow.pop %v4090
          %v4092 = vmul.f32 %v4066, 1.442695
          %v4093 = vpow.pop %v4092
          %v4094 = vmul.f32 %v4067, 1.442695
          %v4095 = vpow.pop %v4094
          %v4096 = vmul.f32 %v4068, 1.442695
          %v4097 = vpow.pop %v4096
          %v4098 = vmul.f32 %v4069, 1.442695
          %v4099 = vpow.pop %v4098
          %v4100 = vmul.f32 %v4070, 1.442695
          %v4101 = vpow.pop %v4100
          %v4102 = vmul.f32 %v4071, 1.442695
          %v4103 = vpow.pop %v4102
          %4105 = vset.pattern.permute.xlu0 0
          %4106 = vperm.xlu0 %4105, %v4040
          %v4107 = vpop.permute.xlu0 %4106
          %4110 = vset.pattern.permute.xlu0 0
          %4111 = vperm.xlu0 %4110, %v4041
          %v4112 = vpop.permute.xlu0 %4111
          %4115 = vset.pattern.permute.xlu0 0
          %4116 = vperm.xlu0 %4115, %v4042
          %v4117 = vpop.permute.xlu0 %4116
          %4120 = vset.pattern.permute.xlu0 0
          %4121 = vperm.xlu0 %4120, %v4043
          %v4122 = vpop.permute.xlu0 %4121
          %4125 = vset.pattern.permute.xlu0 0
          %4126 = vperm.xlu0 %4125, %v4044
          %v4127 = vpop.permute.xlu0 %4126
          %4130 = vset.pattern.permute.xlu0 0
          %4131 = vperm.xlu0 %4130, %v4045
          %v4132 = vpop.permute.xlu0 %4131
          %4135 = vset.pattern.permute.xlu0 0
          %4136 = vperm.xlu0 %4135, %v4046
          %v4137 = vpop.permute.xlu0 %4136
          %4140 = vset.pattern.permute.xlu0 0
          %4141 = vperm.xlu0 %4140, %v4047
          %v4142 = vpop.permute.xlu0 %4141
          %4145 = vset.pattern.permute.xlu0 0
          %4146 = vperm.xlu0 %4145, %v4048
          %v4147 = vpop.permute.xlu0 %4146
          %4150 = vset.pattern.permute.xlu0 0
          %4151 = vperm.xlu0 %4150, %v4049
          %v4152 = vpop.permute.xlu0 %4151
          %4155 = vset.pattern.permute.xlu0 0
          %4156 = vperm.xlu0 %4155, %v4050
          %v4157 = vpop.permute.xlu0 %4156
          %4160 = vset.pattern.permute.xlu0 0
          %4161 = vperm.xlu0 %4160, %v4051
          %v4162 = vpop.permute.xlu0 %4161
          %4165 = vset.pattern.permute.xlu0 0
          %4166 = vperm.xlu0 %4165, %v4052
          %v4167 = vpop.permute.xlu0 %4166
          %4170 = vset.pattern.permute.xlu0 0
          %4171 = vperm.xlu0 %4170, %v4053
          %v4172 = vpop.permute.xlu0 %4171
          %4175 = vset.pattern.permute.xlu0 0
          %4176 = vperm.xlu0 %4175, %v4054
          %v4177 = vpop.permute.xlu0 %4176
          %4180 = vset.pattern.permute.xlu0 0
          %4181 = vperm.xlu0 %4180, %v4055
          %v4182 = vpop.permute.xlu0 %4181
          %v4184 = vsub.f32 %v3975, %v4107
          %v4185 = vsub.f32 %v3976, %v4112
          %v4186 = vsub.f32 %v3977, %v4117
          %v4187 = vsub.f32 %v3978, %v4122
          %v4188 = vsub.f32 %v3979, %v4127
          %v4189 = vsub.f32 %v3980, %v4132
          %v4190 = vsub.f32 %v3981, %v4137
          %v4191 = vsub.f32 %v3982, %v4142
          %v4192 = vsub.f32 %v3983, %v4147
          %v4193 = vsub.f32 %v3984, %v4152
          %v4194 = vsub.f32 %v3985, %v4157
          %v4195 = vsub.f32 %v3986, %v4162
          %v4196 = vsub.f32 %v3987, %v4167
          %v4197 = vsub.f32 %v3988, %v4172
          %v4198 = vsub.f32 %v3989, %v4177
          %v4199 = vsub.f32 %v3990, %v4182
          %v4200 = vmul.f32 %v4184, 1.442695
          %v4201 = vpow.pop %v4200
          %v4202 = vmul.f32 %v4185, 1.442695
          %v4203 = vpow.pop %v4202
          %v4204 = vmul.f32 %v4186, 1.442695
          %v4205 = vpow.pop %v4204
          %v4206 = vmul.f32 %v4187, 1.442695
          %v4207 = vpow.pop %v4206
          %v4208 = vmul.f32 %v4188, 1.442695
          %v4209 = vpow.pop %v4208
          %v4210 = vmul.f32 %v4189, 1.442695
          %v4211 = vpow.pop %v4210
          %v4212 = vmul.f32 %v4190, 1.442695
          %v4213 = vpow.pop %v4212
          %v4214 = vmul.f32 %v4191, 1.442695
          %v4215 = vpow.pop %v4214
          %v4216 = vmul.f32 %v4192, 1.442695
          %v4217 = vpow.pop %v4216
          %v4218 = vmul.f32 %v4193, 1.442695
          %v4219 = vpow.pop %v4218
          %v4220 = vmul.f32 %v4194, 1.442695
          %v4221 = vpow.pop %v4220
          %v4222 = vmul.f32 %v4195, 1.442695
          %v4223 = vpow.pop %v4222
          %v4224 = vmul.f32 %v4196, 1.442695
          %v4225 = vpow.pop %v4224
          %v4226 = vmul.f32 %v4197, 1.442695
          %v4227 = vpow.pop %v4226
          %v4228 = vmul.f32 %v4198, 1.442695
          %v4229 = vpow.pop %v4228
          %v4230 = vmul.f32 %v4199, 1.442695
          %v4231 = vpow.pop %v4230
          %4248 = vrot.lane.b32.xlu0 %v3992, 127
          %v4249 = vpop.permute.xlu0 %4248
          %4250 = vrot.lane.b32.xlu0 %v3993, 127
          %v4251 = vpop.permute.xlu0 %4250
          %4252 = vrot.lane.b32.xlu0 %v3994, 127
          %v4253 = vpop.permute.xlu0 %4252
          %4254 = vrot.lane.b32.xlu0 %v3995, 127
          %v4255 = vpop.permute.xlu0 %4254
          %4256 = vrot.lane.b32.xlu0 %v3996, 127
          %v4257 = vpop.permute.xlu0 %4256
          %4258 = vrot.lane.b32.xlu0 %v3997, 127
          %v4259 = vpop.permute.xlu0 %4258
          %4260 = vrot.lane.b32.xlu0 %v3998, 127
          %v4261 = vpop.permute.xlu0 %4260
          %4262 = vrot.lane.b32.xlu0 %v3999, 127
          %v4263 = vpop.permute.xlu0 %4262
          %4264 = vrot.lane.b32.xlu0 %v4000, 127
          %v4265 = vpop.permute.xlu0 %4264
          %4266 = vrot.lane.b32.xlu0 %v4001, 127
          %v4267 = vpop.permute.xlu0 %4266
          %4268 = vrot.lane.b32.xlu0 %v4002, 127
          %v4269 = vpop.permute.xlu0 %4268
          %4270 = vrot.lane.b32.xlu0 %v4003, 127
          %v4271 = vpop.permute.xlu0 %4270
          %4272 = vrot.lane.b32.xlu0 %v4004, 127
          %v4273 = vpop.permute.xlu0 %4272
          %4274 = vrot.lane.b32.xlu0 %v4005, 127
          %v4275 = vpop.permute.xlu0 %4274
          %4276 = vrot.lane.b32.xlu0 %v4006, 127
          %v4277 = vpop.permute.xlu0 %4276
          %4278 = vrot.lane.b32.xlu0 %v4007, 127
          %v4279 = vpop.permute.xlu0 %4278
          %v4296 = vmul.f32 %v4073, %v4249
          %v4297 = vmul.f32 %v4075, %v4251
          %v4298 = vmul.f32 %v4077, %v4253
          %v4299 = vmul.f32 %v4079, %v4255
          %v4300 = vmul.f32 %v4081, %v4257
          %v4301 = vmul.f32 %v4083, %v4259
          %v4302 = vmul.f32 %v4085, %v4261
          %v4303 = vmul.f32 %v4087, %v4263
          %v4304 = vmul.f32 %v4089, %v4265
          %v4305 = vmul.f32 %v4091, %v4267
          %v4306 = vmul.f32 %v4093, %v4269
          %v4307 = vmul.f32 %v4095, %v4271
          %v4308 = vmul.f32 %v4097, %v4273
          %v4309 = vmul.f32 %v4099, %v4275
          %v4310 = vmul.f32 %v4101, %v4277
          %v4311 = vmul.f32 %v4103, %v4279
          %4312 = vadd.xlane.f32.xlu0 %v4201
          %v4313 = vpop.xlane.xlu0 %4312
          %4314 = vadd.xlane.f32.xlu0 %v4203
          %v4315 = vpop.xlane.xlu0 %4314
          %4316 = vadd.xlane.f32.xlu0 %v4205
          %v4317 = vpop.xlane.xlu0 %4316
          %4318 = vadd.xlane.f32.xlu0 %v4207
          %v4319 = vpop.xlane.xlu0 %4318
          %4320 = vadd.xlane.f32.xlu0 %v4209
          %v4321 = vpop.xlane.xlu0 %4320
          %4322 = vadd.xlane.f32.xlu0 %v4211
          %v4323 = vpop.xlane.xlu0 %4322
          %4324 = vadd.xlane.f32.xlu0 %v4213
          %v4325 = vpop.xlane.xlu0 %4324
          %4326 = vadd.xlane.f32.xlu0 %v4215
          %v4327 = vpop.xlane.xlu0 %4326
          %4328 = vadd.xlane.f32.xlu0 %v4217
          %v4329 = vpop.xlane.xlu0 %4328
          %4330 = vadd.xlane.f32.xlu0 %v4219
          %v4331 = vpop.xlane.xlu0 %4330
          %4332 = vadd.xlane.f32.xlu0 %v4221
          %v4333 = vpop.xlane.xlu0 %4332
          %4334 = vadd.xlane.f32.xlu0 %v4223
          %v4335 = vpop.xlane.xlu0 %4334
          %4336 = vadd.xlane.f32.xlu0 %v4225
          %v4337 = vpop.xlane.xlu0 %4336
          %4338 = vadd.xlane.f32.xlu0 %v4227
          %v4339 = vpop.xlane.xlu0 %4338
          %4340 = vadd.xlane.f32.xlu0 %v4229
          %v4341 = vpop.xlane.xlu0 %4340
          %4342 = vadd.xlane.f32.xlu0 %v4231
          %v4343 = vpop.xlane.xlu0 %4342
          %v4344 = vadd.f32 %v4296, %v4313
          %v4345 = vadd.f32 %v4297, %v4315
          %v4346 = vadd.f32 %v4298, %v4317
          %v4347 = vadd.f32 %v4299, %v4319
          %v4348 = vadd.f32 %v4300, %v4321
          %v4349 = vadd.f32 %v4301, %v4323
          %v4350 = vadd.f32 %v4302, %v4325
          %v4351 = vadd.f32 %v4303, %v4327
          %v4352 = vadd.f32 %v4304, %v4329
          %v4353 = vadd.f32 %v4305, %v4331
          %v4354 = vadd.f32 %v4306, %v4333
          %v4355 = vadd.f32 %v4307, %v4335
          %v4356 = vadd.f32 %v4308, %v4337
          %v4357 = vadd.f32 %v4309, %v4339
          %v4358 = vadd.f32 %v4310, %v4341
          %v4359 = vadd.f32 %v4311, %v4343
          %4376 = vrot.lane.b32.xlu0 %v4344, 1
          %v4377 = vpop.permute.xlu0 %4376
          %4378 = vrot.lane.b32.xlu0 %v4345, 1
          %v4379 = vpop.permute.xlu0 %4378
          %4380 = vrot.lane.b32.xlu0 %v4346, 1
          %v4381 = vpop.permute.xlu0 %4380
          %4382 = vrot.lane.b32.xlu0 %v4347, 1
          %v4383 = vpop.permute.xlu0 %4382
          %4384 = vrot.lane.b32.xlu0 %v4348, 1
          %v4385 = vpop.permute.xlu0 %4384
          %4386 = vrot.lane.b32.xlu0 %v4349, 1
          %v4387 = vpop.permute.xlu0 %4386
          %4388 = vrot.lane.b32.xlu0 %v4350, 1
          %v4389 = vpop.permute.xlu0 %4388
          %4390 = vrot.lane.b32.xlu0 %v4351, 1
          %v4391 = vpop.permute.xlu0 %4390
          %4392 = vrot.lane.b32.xlu0 %v4352, 1
          %v4393 = vpop.permute.xlu0 %4392
          %4394 = vrot.lane.b32.xlu0 %v4353, 1
          %v4395 = vpop.permute.xlu0 %4394
          %4396 = vrot.lane.b32.xlu0 %v4354, 1
          %v4397 = vpop.permute.xlu0 %4396
          %4398 = vrot.lane.b32.xlu0 %v4355, 1
          %v4399 = vpop.permute.xlu0 %4398
          %4400 = vrot.lane.b32.xlu0 %v4356, 1
          %v4401 = vpop.permute.xlu0 %4400
          %4402 = vrot.lane.b32.xlu0 %v4357, 1
          %v4403 = vpop.permute.xlu0 %4402
          %4404 = vrot.lane.b32.xlu0 %v4358, 1
          %v4405 = vpop.permute.xlu0 %4404
          %4406 = vrot.lane.b32.xlu0 %v4359, 1
          %v4407 = vpop.permute.xlu0 %4406
          %4424 = vst.msk [vmem:[%s3991] sm:$0xff] %vm3379, %v4377
          %4425 = vst.msk [vmem:[%s3991 + $0x8] sm:$0xff] %vm3379, %v4379
          %4426 = vst.msk [vmem:[%s3991 + $0x10] sm:$0xff] %vm3379, %v4381
          %4427 = vst.msk [vmem:[%s3991 + $0x18] sm:$0xff] %vm3379, %v4383
          %4428 = vst.msk [vmem:[%s3991 + $0x20] sm:$0xff] %vm3379, %v4385
          %4429 = vst.msk [vmem:[%s3991 + $0x28] sm:$0xff] %vm3379, %v4387
          %4430 = vst.msk [vmem:[%s3991 + $0x30] sm:$0xff] %vm3379, %v4389
          %4431 = vst.msk [vmem:[%s3991 + $0x38] sm:$0xff] %vm3379, %v4391
          %4432 = vst.msk [vmem:[%s3991 + $0x40] sm:$0xff] %vm3379, %v4393
          %4433 = vst.msk [vmem:[%s3991 + $0x48] sm:$0xff] %vm3379, %v4395
          %4434 = vst.msk [vmem:[%s3991 + $0x50] sm:$0xff] %vm3379, %v4397
          %4435 = vst.msk [vmem:[%s3991 + $0x58] sm:$0xff] %vm3379, %v4399
          %4436 = vst.msk [vmem:[%s3991 + $0x60] sm:$0xff] %vm3379, %v4401
          %4437 = vst.msk [vmem:[%s3991 + $0x68] sm:$0xff] %vm3379, %v4403
          %4438 = vst.msk [vmem:[%s3991 + $0x70] sm:$0xff] %vm3379, %v4405
          %4439 = vst.msk [vmem:[%s3991 + $0x78] sm:$0xff] %vm3379, %v4407
          %s4440 = scalar_lea.vmem [#allocation4], 128
          %v4441 = vld [vmem:[%s4440] sm:$0xff]
          %v4442 = vld [vmem:[%s4440 + $0x8] sm:$0xff]
          %v4443 = vld [vmem:[%s4440 + $0x10] sm:$0xff]
          %v4444 = vld [vmem:[%s4440 + $0x18] sm:$0xff]
          %v4445 = vld [vmem:[%s4440 + $0x20] sm:$0xff]
          %v4446 = vld [vmem:[%s4440 + $0x28] sm:$0xff]
          %v4447 = vld [vmem:[%s4440 + $0x30] sm:$0xff]
          %v4448 = vld [vmem:[%s4440 + $0x38] sm:$0xff]
          %v4449 = vld [vmem:[%s4440 + $0x40] sm:$0xff]
          %v4450 = vld [vmem:[%s4440 + $0x48] sm:$0xff]
          %v4451 = vld [vmem:[%s4440 + $0x50] sm:$0xff]
          %v4452 = vld [vmem:[%s4440 + $0x58] sm:$0xff]
          %v4453 = vld [vmem:[%s4440 + $0x60] sm:$0xff]
          %v4454 = vld [vmem:[%s4440 + $0x68] sm:$0xff]
          %v4455 = vld [vmem:[%s4440 + $0x70] sm:$0xff]
          %v4456 = vld [vmem:[%s4440 + $0x78] sm:$0xff]
          %4458 = vset.pattern.permute.xlu0 0
          %4459 = vperm.xlu0 %4458, %v4073
          %v4460 = vpop.permute.xlu0 %4459
          %4463 = vset.pattern.permute.xlu0 0
          %4464 = vperm.xlu0 %4463, %v4075
          %v4465 = vpop.permute.xlu0 %4464
          %4468 = vset.pattern.permute.xlu0 0
          %4469 = vperm.xlu0 %4468, %v4077
          %v4470 = vpop.permute.xlu0 %4469
          %4473 = vset.pattern.permute.xlu0 0
          %4474 = vperm.xlu0 %4473, %v4079
          %v4475 = vpop.permute.xlu0 %4474
          %4478 = vset.pattern.permute.xlu0 0
          %4479 = vperm.xlu0 %4478, %v4081
          %v4480 = vpop.permute.xlu0 %4479
          %4483 = vset.pattern.permute.xlu0 0
          %4484 = vperm.xlu0 %4483, %v4083
          %v4485 = vpop.permute.xlu0 %4484
          %4488 = vset.pattern.permute.xlu0 0
          %4489 = vperm.xlu0 %4488, %v4085
          %v4490 = vpop.permute.xlu0 %4489
          %4493 = vset.pattern.permute.xlu0 0
          %4494 = vperm.xlu0 %4493, %v4087
          %v4495 = vpop.permute.xlu0 %4494
          %4498 = vset.pattern.permute.xlu0 0
          %4499 = vperm.xlu0 %4498, %v4089
          %v4500 = vpop.permute.xlu0 %4499
          %4503 = vset.pattern.permute.xlu0 0
          %4504 = vperm.xlu0 %4503, %v4091
          %v4505 = vpop.permute.xlu0 %4504
          %4508 = vset.pattern.permute.xlu0 0
          %4509 = vperm.xlu0 %4508, %v4093
          %v4510 = vpop.permute.xlu0 %4509
          %4513 = vset.pattern.permute.xlu0 0
          %4514 = vperm.xlu0 %4513, %v4095
          %v4515 = vpop.permute.xlu0 %4514
          %4518 = vset.pattern.permute.xlu0 0
          %4519 = vperm.xlu0 %4518, %v4097
          %v4520 = vpop.permute.xlu0 %4519
          %4523 = vset.pattern.permute.xlu0 0
          %4524 = vperm.xlu0 %4523, %v4099
          %v4525 = vpop.permute.xlu0 %4524
          %4528 = vset.pattern.permute.xlu0 0
          %4529 = vperm.xlu0 %4528, %v4101
          %v4530 = vpop.permute.xlu0 %4529
          %4533 = vset.pattern.permute.xlu0 0
          %4534 = vperm.xlu0 %4533, %v4103
          %v4535 = vpop.permute.xlu0 %4534
          %v4537 = vmul.f32 %v4460, %v4441
          %v4538 = vmul.f32 %v4465, %v4442
          %v4539 = vmul.f32 %v4470, %v4443
          %v4540 = vmul.f32 %v4475, %v4444
          %v4541 = vmul.f32 %v4480, %v4445
          %v4542 = vmul.f32 %v4485, %v4446
          %v4543 = vmul.f32 %v4490, %v4447
          %v4544 = vmul.f32 %v4495, %v4448
          %v4545 = vmul.f32 %v4500, %v4449
          %v4546 = vmul.f32 %v4505, %v4450
          %v4547 = vmul.f32 %v4510, %v4451
          %v4548 = vmul.f32 %v4515, %v4452
          %v4549 = vmul.f32 %v4520, %v4453
          %v4550 = vmul.f32 %v4525, %v4454
          %v4551 = vmul.f32 %v4530, %v4455
          %v4552 = vmul.f32 %v4535, %v4456
          %v4553 = vpack.c.bf16 %v4203, %v4201
          %v4554 = vpack.c.bf16 %v4207, %v4205
          %v4555 = vpack.c.bf16 %v4211, %v4209
          %v4556 = vpack.c.bf16 %v4215, %v4213
          %v4557 = vpack.c.bf16 %v4219, %v4217
          %v4558 = vpack.c.bf16 %v4223, %v4221
          %v4559 = vpack.c.bf16 %v4227, %v4225
          %v4560 = vpack.c.bf16 %v4231, %v4229
          %v4577 = vunpack.c.l.b16 %v3734
          %v4578 = vunpack.c.l.b16 %v3735
          %v4579 = vunpack.c.l.b16 %v3736
          %v4580 = vunpack.c.l.b16 %v3737
          %v4581 = vunpack.c.l.b16 %v3738
          %v4582 = vunpack.c.l.b16 %v3739
          %v4583 = vunpack.c.l.b16 %v3740
          %v4584 = vunpack.c.l.b16 %v3741
          %v4585 = vunpack.c.l.b16 %v3742
          %v4586 = vunpack.c.l.b16 %v3743
          %v4587 = vunpack.c.l.b16 %v3744
          %v4588 = vunpack.c.l.b16 %v3745
          %v4589 = vunpack.c.l.b16 %v3746
          %v4590 = vunpack.c.l.b16 %v3747
          %v4591 = vunpack.c.l.b16 %v3748
          %v4592 = vunpack.c.l.b16 %v3749
          %v4593 = vpack.c.b16 %v4578, %v4577
          %v4594 = vpack.c.b16 %v4580, %v4579
          %v4595 = vpack.c.b16 %v4582, %v4581
          %v4596 = vpack.c.b16 %v4584, %v4583
          %v4597 = vpack.c.b16 %v4586, %v4585
          %v4598 = vpack.c.b16 %v4588, %v4587
          %v4599 = vpack.c.b16 %v4590, %v4589
          %v4600 = vpack.c.b16 %v4592, %v4591
          %4601 = vrot.lane.b32.xlu0 %v4593, 64
          %v4602 = vpop.permute.xlu0 %4601
          %4603 = vrot.lane.b32.xlu0 %v4594, 64
          %v4604 = vpop.permute.xlu0 %4603
          %4605 = vrot.lane.b32.xlu0 %v4595, 64
          %v4606 = vpop.permute.xlu0 %4605
          %4607 = vrot.lane.b32.xlu0 %v4596, 64
          %v4608 = vpop.permute.xlu0 %4607
          %4609 = vrot.lane.b32.xlu0 %v4597, 64
          %v4610 = vpop.permute.xlu0 %4609
          %4611 = vrot.lane.b32.xlu0 %v4598, 64
          %v4612 = vpop.permute.xlu0 %4611
          %4613 = vrot.lane.b32.xlu0 %v4599, 64
          %v4614 = vpop.permute.xlu0 %4613
          %4615 = vrot.lane.b32.xlu0 %v4600, 64
          %v4616 = vpop.permute.xlu0 %4615
          %4625 = vmatprep.subr.bf16.mxu0 0
          %4626 = vmatpush1.bf16.msra.mxu0 %v4602
          %4627 = vmatprep.subr.bf16.mxu0 0
          %4628 = vmatpush1.bf16.msra.mxu0 %v4604
          %4629 = vmatprep.subr.bf16.mxu0 0
          %4630 = vmatpush1.bf16.msra.mxu0 %v4606
          %4631 = vmatprep.subr.bf16.mxu0 0
          %4632 = vmatpush1.bf16.msra.mxu0 %v4608
          %4633 = vmatprep.subr.bf16.mxu0 0
          %4634 = vmatpush1.bf16.msra.mxu0 %v4610
          %4635 = vmatprep.subr.bf16.mxu0 0
          %4636 = vmatpush1.bf16.msra.mxu0 %v4612
          %4637 = vmatprep.subr.bf16.mxu0 0
          %4638 = vmatpush1.bf16.msra.mxu0 %v4614
          %4639 = vmatprep.subr.bf16.mxu0 0
          %4640 = vmatpush1.bf16.msra.mxu0 %v4616
          %4641 = vmatprep.subr.bf16.mxu0 0
          %4642 = vmatpush1.bf16.msra.mxu0 0
          %4643 = vmatprep.subr.bf16.mxu0 0
          %4644 = vmatpush1.bf16.msra.mxu0 0
          %4645 = vmatprep.subr.bf16.mxu0 0
          %4646 = vmatpush1.bf16.msra.mxu0 0
          %4647 = vmatprep.subr.bf16.mxu0 0
          %4648 = vmatpush1.bf16.msra.mxu0 0
          %4649 = vmatprep.subr.bf16.mxu0 0
          %4650 = vmatpush1.bf16.msra.mxu0 0
          %4651 = vmatprep.subr.bf16.mxu0 0
          %4652 = vmatpush1.bf16.msra.mxu0 0
          %4653 = vmatprep.subr.bf16.mxu0 0
          %4654 = vmatpush1.bf16.msra.mxu0 0
          %4655 = vmatprep.subr.bf16.mxu0 0
          %4656 = vmatpush1.bf16.msra.mxu0 0
          %4657 = vmatprep.mubr.bf16.mxu0 0
          %4658 = vmatmul.mubr.bf16.gmra.mrb[0].mxu0 %v4553
          %v4659 = vpop.f32.mrb[0].mxu0
          %v4660 = vadd.f32 0.0, %v4659
          %v4661 = vpop.f32.mrb[0].mxu0
          %v4662 = vpop.f32.mrb[0].mxu0
          %v4663 = vadd.f32 0.0, %v4662
          %v4664 = vpop.f32.mrb[0].mxu0
          %4665 = vmatprep.mubr.bf16.mxu0 0
          %4666 = vmatmul.mubr.bf16.gmra.mrb[0].mxu0 %v4554
          %v4667 = vpop.f32.mrb[0].mxu0
          %v4668 = vadd.f32 0.0, %v4667
          %v4669 = vpop.f32.mrb[0].mxu0
          %v4670 = vpop.f32.mrb[0].mxu0
          %v4671 = vadd.f32 0.0, %v4670
          %v4672 = vpop.f32.mrb[0].mxu0
          %4673 = vmatprep.mubr.bf16.mxu0 0
          %4674 = vmatmul.mubr.bf16.gmra.mrb[0].mxu0 %v4555
          %v4675 = vpop.f32.mrb[0].mxu0
          %v4676 = vadd.f32 0.0, %v4675
          %v4677 = vpop.f32.mrb[0].mxu0
          %v4678 = vpop.f32.mrb[0].mxu0
          %v4679 = vadd.f32 0.0, %v4678
          %v4680 = vpop.f32.mrb[0].mxu0
          %4681 = vmatprep.mubr.bf16.mxu0 0
          %4682 = vmatmul.mubr.bf16.gmra.mrb[0].mxu0 %v4556
          %v4683 = vpop.f32.mrb[0].mxu0
          %v4684 = vadd.f32 0.0, %v4683
          %v4685 = vpop.f32.mrb[0].mxu0
          %v4686 = vpop.f32.mrb[0].mxu0
          %v4687 = vadd.f32 0.0, %v4686
          %v4688 = vpop.f32.mrb[0].mxu0
          %4689 = vmatprep.mubr.bf16.mxu0 0
          %4690 = vmatmul.mubr.bf16.gmra.mrb[0].mxu0 %v4557
          %v4691 = vpop.f32.mrb[0].mxu0
          %v4692 = vadd.f32 0.0, %v4691
          %v4693 = vpop.f32.mrb[0].mxu0
          %v4694 = vpop.f32.mrb[0].mxu0
          %v4695 = vadd.f32 0.0, %v4694
          %v4696 = vpop.f32.mrb[0].mxu0
          %4697 = vmatprep.mubr.bf16.mxu0 0
          %4698 = vmatmul.mubr.bf16.gmra.mrb[0].mxu0 %v4558
          %v4699 = vpop.f32.mrb[0].mxu0
          %v4700 = vadd.f32 0.0, %v4699
          %v4701 = vpop.f32.mrb[0].mxu0
          %v4702 = vpop.f32.mrb[0].mxu0
          %v4703 = vadd.f32 0.0, %v4702
          %v4704 = vpop.f32.mrb[0].mxu0
          %4705 = vmatprep.mubr.bf16.mxu0 0
          %4706 = vmatmul.mubr.bf16.gmra.mrb[0].mxu0 %v4559
          %v4707 = vpop.f32.mrb[0].mxu0
          %v4708 = vadd.f32 0.0, %v4707
          %v4709 = vpop.f32.mrb[0].mxu0
          %v4710 = vpop.f32.mrb[0].mxu0
          %v4711 = vadd.f32 0.0, %v4710
          %v4712 = vpop.f32.mrb[0].mxu0
          %4713 = vmatprep.mubr.bf16.mxu0 0
          %4714 = vmatmul.mubr.bf16.gmra.mrb[0].mxu0 %v4560
          %v4715 = vpop.f32.mrb[0].mxu0
          %v4716 = vadd.f32 0.0, %v4715
          %v4717 = vpop.f32.mrb[0].mxu0
          %v4718 = vpop.f32.mrb[0].mxu0
          %v4719 = vadd.f32 0.0, %v4718
          %v4720 = vpop.f32.mrb[0].mxu0
          %4721 = vdwg.mxu0
          %v4722 = vadd.f32 %v4537, %v4660
          %v4723 = vadd.f32 %v4538, %v4663
          %v4724 = vadd.f32 %v4539, %v4668
          %v4725 = vadd.f32 %v4540, %v4671
          %v4726 = vadd.f32 %v4541, %v4676
          %v4727 = vadd.f32 %v4542, %v4679
          %v4728 = vadd.f32 %v4543, %v4684
          %v4729 = vadd.f32 %v4544, %v4687
          %v4730 = vadd.f32 %v4545, %v4692
          %v4731 = vadd.f32 %v4546, %v4695
          %v4732 = vadd.f32 %v4547, %v4700
          %v4733 = vadd.f32 %v4548, %v4703
          %v4734 = vadd.f32 %v4549, %v4708
          %v4735 = vadd.f32 %v4550, %v4711
          %v4736 = vadd.f32 %v4551, %v4716
          %v4737 = vadd.f32 %v4552, %v4719
          %4738 = vst.msk [vmem:[%s4440] sm:$0xff] %vm2785, %v4722
          %4739 = vst.msk [vmem:[%s4440 + $0x8] sm:$0xff] %vm2785, %v4723
          %4740 = vst.msk [vmem:[%s4440 + $0x10] sm:$0xff] %vm2785, %v4724
          %4741 = vst.msk [vmem:[%s4440 + $0x18] sm:$0xff] %vm2785, %v4725
          %4742 = vst.msk [vmem:[%s4440 + $0x20] sm:$0xff] %vm2785, %v4726
          %4743 = vst.msk [vmem:[%s4440 + $0x28] sm:$0xff] %vm2785, %v4727
          %4744 = vst.msk [vmem:[%s4440 + $0x30] sm:$0xff] %vm2785, %v4728
          %4745 = vst.msk [vmem:[%s4440 + $0x38] sm:$0xff] %vm2785, %v4729
          %4746 = vst.msk [vmem:[%s4440 + $0x40] sm:$0xff] %vm2785, %v4730
          %4747 = vst.msk [vmem:[%s4440 + $0x48] sm:$0xff] %vm2785, %v4731
          %4748 = vst.msk [vmem:[%s4440 + $0x50] sm:$0xff] %vm2785, %v4732
          %4749 = vst.msk [vmem:[%s4440 + $0x58] sm:$0xff] %vm2785, %v4733
          %4750 = vst.msk [vmem:[%s4440 + $0x60] sm:$0xff] %vm2785, %v4734
          %4751 = vst.msk [vmem:[%s4440 + $0x68] sm:$0xff] %vm2785, %v4735
          %4752 = vst.msk [vmem:[%s4440 + $0x70] sm:$0xff] %vm2785, %v4736
          %4753 = vst.msk [vmem:[%s4440 + $0x78] sm:$0xff] %vm2785, %v4737
          %4754 = vst.msk [vmem:[%s3991] sm:$0xff] %vm3693, %v4040
          %4755 = vst.msk [vmem:[%s3991 + $0x8] sm:$0xff] %vm3693, %v4041
          %4756 = vst.msk [vmem:[%s3991 + $0x10] sm:$0xff] %vm3693, %v4042
          %4757 = vst.msk [vmem:[%s3991 + $0x18] sm:$0xff] %vm3693, %v4043
          %4758 = vst.msk [vmem:[%s3991 + $0x20] sm:$0xff] %vm3693, %v4044
          %4759 = vst.msk [vmem:[%s3991 + $0x28] sm:$0xff] %vm3693, %v4045
          %4760 = vst.msk [vmem:[%s3991 + $0x30] sm:$0xff] %vm3693, %v4046
          %4761 = vst.msk [vmem:[%s3991 + $0x38] sm:$0xff] %vm3693, %v4047
          %4762 = vst.msk [vmem:[%s3991 + $0x40] sm:$0xff] %vm3693, %v4048
          %4763 = vst.msk [vmem:[%s3991 + $0x48] sm:$0xff] %vm3693, %v4049
          %4764 = vst.msk [vmem:[%s3991 + $0x50] sm:$0xff] %vm3693, %v4050
          %4765 = vst.msk [vmem:[%s3991 + $0x58] sm:$0xff] %vm3693, %v4051
          %4766 = vst.msk [vmem:[%s3991 + $0x60] sm:$0xff] %vm3693, %v4052
          %4767 = vst.msk [vmem:[%s3991 + $0x68] sm:$0xff] %vm3693, %v4053
          %4768 = vst.msk [vmem:[%s3991 + $0x70] sm:$0xff] %vm3693, %v4054
          %4769 = vst.msk [vmem:[%s3991 + $0x78] sm:$0xff] %vm3693, %v4055
        $region56: #{tpu_custom_call.1} parent=31 // pred_fallthru
          _
        %p4770 = scmp.eq.s32.totalorder %s32, 1
        // Predicated region
        $region57: #{tpu_custom_call.1} parent=31 // pred_check
          %p4771 = pneg %p4770
        $region58: #{tpu_custom_call.1} parent=31 // pred_check_branch
          %4773 = sbr.rel (%p4771) target = $region60
        $region59: #{tpu_custom_call.1} parent=31 // pred_region
          %v4774 = vld [vmem:[#allocation3] sm:$0xff]
          %v4775 = vld [vmem:[#allocation3 + $0x8] sm:$0xff]
          %v4776 = vld [vmem:[#allocation3 + $0x10] sm:$0xff]
          %v4777 = vld [vmem:[#allocation3 + $0x18] sm:$0xff]
          %v4778 = vld [vmem:[#allocation3 + $0x20] sm:$0xff]
          %v4779 = vld [vmem:[#allocation3 + $0x28] sm:$0xff]
          %v4780 = vld [vmem:[#allocation3 + $0x30] sm:$0xff]
          %v4781 = vld [vmem:[#allocation3 + $0x38] sm:$0xff]
          %v4782 = vld [vmem:[#allocation3 + $0x40] sm:$0xff]
          %v4783 = vld [vmem:[#allocation3 + $0x48] sm:$0xff]
          %v4784 = vld [vmem:[#allocation3 + $0x50] sm:$0xff]
          %v4785 = vld [vmem:[#allocation3 + $0x58] sm:$0xff]
          %v4786 = vld [vmem:[#allocation3 + $0x60] sm:$0xff]
          %v4787 = vld [vmem:[#allocation3 + $0x68] sm:$0xff]
          %v4788 = vld [vmem:[#allocation3 + $0x70] sm:$0xff]
          %v4789 = vld [vmem:[#allocation3 + $0x78] sm:$0xff]
          %v4790 = vrcp.pop %v4774
          %v4791 = vrcp.pop %v4775
          %v4792 = vrcp.pop %v4776
          %v4793 = vrcp.pop %v4777
          %v4794 = vrcp.pop %v4778
          %v4795 = vrcp.pop %v4779
          %v4796 = vrcp.pop %v4780
          %v4797 = vrcp.pop %v4781
          %v4798 = vrcp.pop %v4782
          %v4799 = vrcp.pop %v4783
          %v4800 = vrcp.pop %v4784
          %v4801 = vrcp.pop %v4785
          %v4802 = vrcp.pop %v4786
          %v4803 = vrcp.pop %v4787
          %v4804 = vrcp.pop %v4788
          %v4805 = vrcp.pop %v4789
          %v4806 = vld [vmem:[#allocation4] sm:$0xff]
          %v4807 = vld [vmem:[#allocation4 + $0x8] sm:$0xff]
          %v4808 = vld [vmem:[#allocation4 + $0x10] sm:$0xff]
          %v4809 = vld [vmem:[#allocation4 + $0x18] sm:$0xff]
          %v4810 = vld [vmem:[#allocation4 + $0x20] sm:$0xff]
          %v4811 = vld [vmem:[#allocation4 + $0x28] sm:$0xff]
          %v4812 = vld [vmem:[#allocation4 + $0x30] sm:$0xff]
          %v4813 = vld [vmem:[#allocation4 + $0x38] sm:$0xff]
          %v4814 = vld [vmem:[#allocation4 + $0x40] sm:$0xff]
          %v4815 = vld [vmem:[#allocation4 + $0x48] sm:$0xff]
          %v4816 = vld [vmem:[#allocation4 + $0x50] sm:$0xff]
          %v4817 = vld [vmem:[#allocation4 + $0x58] sm:$0xff]
          %v4818 = vld [vmem:[#allocation4 + $0x60] sm:$0xff]
          %v4819 = vld [vmem:[#allocation4 + $0x68] sm:$0xff]
          %v4820 = vld [vmem:[#allocation4 + $0x70] sm:$0xff]
          %v4821 = vld [vmem:[#allocation4 + $0x78] sm:$0xff]
          %4823 = vset.pattern.permute.xlu0 1
          %4824 = vperm.xlu0 %4823, %v4790
          %v4825 = vpop.permute.xlu0 %4824
          %4828 = vset.pattern.permute.xlu0 1
          %4829 = vperm.xlu0 %4828, %v4791
          %v4830 = vpop.permute.xlu0 %4829
          %4833 = vset.pattern.permute.xlu0 1
          %4834 = vperm.xlu0 %4833, %v4792
          %v4835 = vpop.permute.xlu0 %4834
          %4838 = vset.pattern.permute.xlu0 1
          %4839 = vperm.xlu0 %4838, %v4793
          %v4840 = vpop.permute.xlu0 %4839
          %4843 = vset.pattern.permute.xlu0 1
          %4844 = vperm.xlu0 %4843, %v4794
          %v4845 = vpop.permute.xlu0 %4844
          %4848 = vset.pattern.permute.xlu0 1
          %4849 = vperm.xlu0 %4848, %v4795
          %v4850 = vpop.permute.xlu0 %4849
          %4853 = vset.pattern.permute.xlu0 1
          %4854 = vperm.xlu0 %4853, %v4796
          %v4855 = vpop.permute.xlu0 %4854
          %4858 = vset.pattern.permute.xlu0 1
          %4859 = vperm.xlu0 %4858, %v4797
          %v4860 = vpop.permute.xlu0 %4859
          %4863 = vset.pattern.permute.xlu0 1
          %4864 = vperm.xlu0 %4863, %v4798
          %v4865 = vpop.permute.xlu0 %4864
          %4868 = vset.pattern.permute.xlu0 1
          %4869 = vperm.xlu0 %4868, %v4799
          %v4870 = vpop.permute.xlu0 %4869
          %4873 = vset.pattern.permute.xlu0 1
          %4874 = vperm.xlu0 %4873, %v4800
          %v4875 = vpop.permute.xlu0 %4874
          %4878 = vset.pattern.permute.xlu0 1
          %4879 = vperm.xlu0 %4878, %v4801
          %v4880 = vpop.permute.xlu0 %4879
          %4883 = vset.pattern.permute.xlu0 1
          %4884 = vperm.xlu0 %4883, %v4802
          %v4885 = vpop.permute.xlu0 %4884
          %4888 = vset.pattern.permute.xlu0 1
          %4889 = vperm.xlu0 %4888, %v4803
          %v4890 = vpop.permute.xlu0 %4889
          %4893 = vset.pattern.permute.xlu0 1
          %4894 = vperm.xlu0 %4893, %v4804
          %v4895 = vpop.permute.xlu0 %4894
          %4898 = vset.pattern.permute.xlu0 1
          %4899 = vperm.xlu0 %4898, %v4805
          %v4900 = vpop.permute.xlu0 %4899
          %v4902 = vmul.f32 %v4806, %v4825
          %v4903 = vmul.f32 %v4807, %v4830
          %v4904 = vmul.f32 %v4808, %v4835
          %v4905 = vmul.f32 %v4809, %v4840
          %v4906 = vmul.f32 %v4810, %v4845
          %v4907 = vmul.f32 %v4811, %v4850
          %v4908 = vmul.f32 %v4812, %v4855
          %v4909 = vmul.f32 %v4813, %v4860
          %v4910 = vmul.f32 %v4814, %v4865
          %v4911 = vmul.f32 %v4815, %v4870
          %v4912 = vmul.f32 %v4816, %v4875
          %v4913 = vmul.f32 %v4817, %v4880
          %v4914 = vmul.f32 %v4818, %v4885
          %v4915 = vmul.f32 %v4819, %v4890
          %v4916 = vmul.f32 %v4820, %v4895
          %v4917 = vmul.f32 %v4821, %v4900
          %v4918 = vpack.c.bf16 %v4903, %v4902
          %v4919 = vpack.c.bf16 %v4905, %v4904
          %v4920 = vpack.c.bf16 %v4907, %v4906
          %v4921 = vpack.c.bf16 %v4909, %v4908
          %v4922 = vpack.c.bf16 %v4911, %v4910
          %v4923 = vpack.c.bf16 %v4913, %v4912
          %v4924 = vpack.c.bf16 %v4915, %v4914
          %v4925 = vpack.c.bf16 %v4917, %v4916
          %s4926 = scalar_lea.vmem [#allocation3], 128
          %v4927 = vld [vmem:[%s4926] sm:$0xff]
          %v4928 = vld [vmem:[%s4926 + $0x8] sm:$0xff]
          %v4929 = vld [vmem:[%s4926 + $0x10] sm:$0xff]
          %v4930 = vld [vmem:[%s4926 + $0x18] sm:$0xff]
          %v4931 = vld [vmem:[%s4926 + $0x20] sm:$0xff]
          %v4932 = vld [vmem:[%s4926 + $0x28] sm:$0xff]
          %v4933 = vld [vmem:[%s4926 + $0x30] sm:$0xff]
          %v4934 = vld [vmem:[%s4926 + $0x38] sm:$0xff]
          %v4935 = vld [vmem:[%s4926 + $0x40] sm:$0xff]
          %v4936 = vld [vmem:[%s4926 + $0x48] sm:$0xff]
          %v4937 = vld [vmem:[%s4926 + $0x50] sm:$0xff]
          %v4938 = vld [vmem:[%s4926 + $0x58] sm:$0xff]
          %v4939 = vld [vmem:[%s4926 + $0x60] sm:$0xff]
          %v4940 = vld [vmem:[%s4926 + $0x68] sm:$0xff]
          %v4941 = vld [vmem:[%s4926 + $0x70] sm:$0xff]
          %v4942 = vld [vmem:[%s4926 + $0x78] sm:$0xff]
          %v4943 = vrcp.pop %v4927
          %v4944 = vrcp.pop %v4928
          %v4945 = vrcp.pop %v4929
          %v4946 = vrcp.pop %v4930
          %v4947 = vrcp.pop %v4931
          %v4948 = vrcp.pop %v4932
          %v4949 = vrcp.pop %v4933
          %v4950 = vrcp.pop %v4934
          %v4951 = vrcp.pop %v4935
          %v4952 = vrcp.pop %v4936
          %v4953 = vrcp.pop %v4937
          %v4954 = vrcp.pop %v4938
          %v4955 = vrcp.pop %v4939
          %v4956 = vrcp.pop %v4940
          %v4957 = vrcp.pop %v4941
          %v4958 = vrcp.pop %v4942
          %s4959 = scalar_lea.vmem [#allocation4], 128
          %v4960 = vld [vmem:[%s4959] sm:$0xff]
          %v4961 = vld [vmem:[%s4959 + $0x8] sm:$0xff]
          %v4962 = vld [vmem:[%s4959 + $0x10] sm:$0xff]
          %v4963 = vld [vmem:[%s4959 + $0x18] sm:$0xff]
          %v4964 = vld [vmem:[%s4959 + $0x20] sm:$0xff]
          %v4965 = vld [vmem:[%s4959 + $0x28] sm:$0xff]
          %v4966 = vld [vmem:[%s4959 + $0x30] sm:$0xff]
          %v4967 = vld [vmem:[%s4959 + $0x38] sm:$0xff]
          %v4968 = vld [vmem:[%s4959 + $0x40] sm:$0xff]
          %v4969 = vld [vmem:[%s4959 + $0x48] sm:$0xff]
          %v4970 = vld [vmem:[%s4959 + $0x50] sm:$0xff]
          %v4971 = vld [vmem:[%s4959 + $0x58] sm:$0xff]
          %v4972 = vld [vmem:[%s4959 + $0x60] sm:$0xff]
          %v4973 = vld [vmem:[%s4959 + $0x68] sm:$0xff]
          %v4974 = vld [vmem:[%s4959 + $0x70] sm:$0xff]
          %v4975 = vld [vmem:[%s4959 + $0x78] sm:$0xff]
          %4977 = vset.pattern.permute.xlu0 1
          %4978 = vperm.xlu0 %4977, %v4943
          %v4979 = vpop.permute.xlu0 %4978
          %4982 = vset.pattern.permute.xlu0 1
          %4983 = vperm.xlu0 %4982, %v4944
          %v4984 = vpop.permute.xlu0 %4983
          %4987 = vset.pattern.permute.xlu0 1
          %4988 = vperm.xlu0 %4987, %v4945
          %v4989 = vpop.permute.xlu0 %4988
          %4992 = vset.pattern.permute.xlu0 1
          %4993 = vperm.xlu0 %4992, %v4946
          %v4994 = vpop.permute.xlu0 %4993
          %4997 = vset.pattern.permute.xlu0 1
          %4998 = vperm.xlu0 %4997, %v4947
          %v4999 = vpop.permute.xlu0 %4998
          %5002 = vset.pattern.permute.xlu0 1
          %5003 = vperm.xlu0 %5002, %v4948
          %v5004 = vpop.permute.xlu0 %5003
          %5007 = vset.pattern.permute.xlu0 1
          %5008 = vperm.xlu0 %5007, %v4949
          %v5009 = vpop.permute.xlu0 %5008
          %5012 = vset.pattern.permute.xlu0 1
          %5013 = vperm.xlu0 %5012, %v4950
          %v5014 = vpop.permute.xlu0 %5013
          %5017 = vset.pattern.permute.xlu0 1
          %5018 = vperm.xlu0 %5017, %v4951
          %v5019 = vpop.permute.xlu0 %5018
          %5022 = vset.pattern.permute.xlu0 1
          %5023 = vperm.xlu0 %5022, %v4952
          %v5024 = vpop.permute.xlu0 %5023
          %5027 = vset.pattern.permute.xlu0 1
          %5028 = vperm.xlu0 %5027, %v4953
          %v5029 = vpop.permute.xlu0 %5028
          %5032 = vset.pattern.permute.xlu0 1
          %5033 = vperm.xlu0 %5032, %v4954
          %v5034 = vpop.permute.xlu0 %5033
          %5037 = vset.pattern.permute.xlu0 1
          %5038 = vperm.xlu0 %5037, %v4955
          %v5039 = vpop.permute.xlu0 %5038
          %5042 = vset.pattern.permute.xlu0 1
          %5043 = vperm.xlu0 %5042, %v4956
          %v5044 = vpop.permute.xlu0 %5043
          %5047 = vset.pattern.permute.xlu0 1
          %5048 = vperm.xlu0 %5047, %v4957
          %v5049 = vpop.permute.xlu0 %5048
          %5052 = vset.pattern.permute.xlu0 1
          %5053 = vperm.xlu0 %5052, %v4958
          %v5054 = vpop.permute.xlu0 %5053
          %v5056 = vmul.f32 %v4960, %v4979
          %v5057 = vmul.f32 %v4961, %v4984
          %v5058 = vmul.f32 %v4962, %v4989
          %v5059 = vmul.f32 %v4963, %v4994
          %v5060 = vmul.f32 %v4964, %v4999
          %v5061 = vmul.f32 %v4965, %v5004
          %v5062 = vmul.f32 %v4966, %v5009
          %v5063 = vmul.f32 %v4967, %v5014
          %v5064 = vmul.f32 %v4968, %v5019
          %v5065 = vmul.f32 %v4969, %v5024
          %v5066 = vmul.f32 %v4970, %v5029
          %v5067 = vmul.f32 %v4971, %v5034
          %v5068 = vmul.f32 %v4972, %v5039
          %v5069 = vmul.f32 %v4973, %v5044
          %v5070 = vmul.f32 %v4974, %v5049
          %v5071 = vmul.f32 %v4975, %v5054
          %v5072 = vpack.c.bf16 %v5057, %v5056
          %v5073 = vpack.c.bf16 %v5059, %v5058
          %v5074 = vpack.c.bf16 %v5061, %v5060
          %v5075 = vpack.c.bf16 %v5063, %v5062
          %v5076 = vpack.c.bf16 %v5065, %v5064
          %v5077 = vpack.c.bf16 %v5067, %v5066
          %v5078 = vpack.c.bf16 %v5069, %v5068
          %v5079 = vpack.c.bf16 %v5071, %v5070
          %5088 = vrot.lane.b32.xlu0 %v5072, 64
          %v5089 = vpop.permute.xlu0 %5088
          %5090 = vrot.lane.b32.xlu0 %v5073, 64
          %v5091 = vpop.permute.xlu0 %5090
          %5092 = vrot.lane.b32.xlu0 %v5074, 64
          %v5093 = vpop.permute.xlu0 %5092
          %5094 = vrot.lane.b32.xlu0 %v5075, 64
          %v5095 = vpop.permute.xlu0 %5094
          %5096 = vrot.lane.b32.xlu0 %v5076, 64
          %v5097 = vpop.permute.xlu0 %5096
          %5098 = vrot.lane.b32.xlu0 %v5077, 64
          %v5099 = vpop.permute.xlu0 %5098
          %5100 = vrot.lane.b32.xlu0 %v5078, 64
          %v5101 = vpop.permute.xlu0 %5100
          %5102 = vrot.lane.b32.xlu0 %v5079, 64
          %v5103 = vpop.permute.xlu0 %5102
          %vm5104 = vcmask 523264
          %v5107 = vsel %vm5104, %v4918, %v5089
          %v5110 = vsel %vm5104, %v4919, %v5091
          %v5113 = vsel %vm5104, %v4920, %v5093
          %v5116 = vsel %vm5104, %v4921, %v5095
          %v5119 = vsel %vm5104, %v4922, %v5097
          %v5122 = vsel %vm5104, %v4923, %v5099
          %v5125 = vsel %vm5104, %v4924, %v5101
          %v5128 = vsel %vm5104, %v4925, %v5103
          %v5137 = vunpack.c.l.b16 %v5107
          %v5138 = vunpack.c.h.b16 %v5107
          %v5139 = vunpack.c.l.b16 %v5110
          %v5140 = vunpack.c.h.b16 %v5110
          %v5141 = vunpack.c.l.b16 %v5113
          %v5142 = vunpack.c.h.b16 %v5113
          %v5143 = vunpack.c.l.b16 %v5116
          %v5144 = vunpack.c.h.b16 %v5116
          %v5145 = vunpack.c.l.b16 %v5119
          %v5146 = vunpack.c.h.b16 %v5119
          %v5147 = vunpack.c.l.b16 %v5122
          %v5148 = vunpack.c.h.b16 %v5122
          %v5149 = vunpack.c.l.b16 %v5125
          %v5150 = vunpack.c.h.b16 %v5125
          %v5151 = vunpack.c.l.b16 %v5128
          %v5152 = vunpack.c.h.b16 %v5128
          %v5153 = vpack.c.b16 %v5137, %v5137
          %v5154 = vpack.c.b16 %v5138, %v5138
          %v5155 = vpack.c.b16 %v5139, %v5139
          %v5156 = vpack.c.b16 %v5140, %v5140
          %v5157 = vpack.c.b16 %v5141, %v5141
          %v5158 = vpack.c.b16 %v5142, %v5142
          %v5159 = vpack.c.b16 %v5143, %v5143
          %v5160 = vpack.c.b16 %v5144, %v5144
          %v5161 = vpack.c.b16 %v5145, %v5145
          %v5162 = vpack.c.b16 %v5146, %v5146
          %v5163 = vpack.c.b16 %v5147, %v5147
          %v5164 = vpack.c.b16 %v5148, %v5148
          %v5165 = vpack.c.b16 %v5149, %v5149
          %v5166 = vpack.c.b16 %v5150, %v5150
          %v5167 = vpack.c.b16 %v5151, %v5151
          %v5168 = vpack.c.b16 %v5152, %v5152
          %5185 = vst [vmem:[%s361] sm:$0xf] %v5153
          %5186 = vst [vmem:[%s361 + $0x4] sm:$0xf] %v5154
          %5187 = vst [vmem:[%s361 + $0x8] sm:$0xf] %v5155
          %5188 = vst [vmem:[%s361 + $0xc] sm:$0xf] %v5156
          %5189 = vst [vmem:[%s361 + $0x10] sm:$0xf] %v5157
          %5190 = vst [vmem:[%s361 + $0x14] sm:$0xf] %v5158
          %5191 = vst [vmem:[%s361 + $0x18] sm:$0xf] %v5159
          %5192 = vst [vmem:[%s361 + $0x1c] sm:$0xf] %v5160
          %5193 = vst [vmem:[%s361 + $0x20] sm:$0xf] %v5161
          %5194 = vst [vmem:[%s361 + $0x24] sm:$0xf] %v5162
          %5195 = vst [vmem:[%s361 + $0x28] sm:$0xf] %v5163
          %5196 = vst [vmem:[%s361 + $0x2c] sm:$0xf] %v5164
          %5197 = vst [vmem:[%s361 + $0x30] sm:$0xf] %v5165
          %5198 = vst [vmem:[%s361 + $0x34] sm:$0xf] %v5166
          %5199 = vst [vmem:[%s361 + $0x38] sm:$0xf] %v5167
          %5200 = vst [vmem:[%s361 + $0x3c] sm:$0xf] %v5168
        $region60: #{tpu_custom_call.1} parent=31 // pred_fallthru
          _
        %s5201 = sand.u32 %s179, 1
        %s5202 = scalar_lea.sflag [#allocation7], %s5201
        %s5203 = sand.u32 %s179, 1
        %s5204 = smul.addr %s5203, 64
        %s5205 = scalar_lea.vmem [#allocation11], %s5204
        // Predicated region
        $region61: #{tpu_custom_call.1} parent=31 // pred_check
          %p5206 = pneg %p189
        $region62: #{tpu_custom_call.1} parent=31 // pred_check_branch
          %5208 = sbr.rel (%p5206) target = $region64
        $region63: #{tpu_custom_call.1} parent=31 // pred_region
          %s5209 = smul.u32 16, %s31
          %s5211 = ssub.s32 1024, 1024
          %5212 = vsyncadd %s5202, %s5211
          %s5213 = sadd.s32 %s30, %s5209
          %s5214 = smul.addr %s29, 32
          %s5215 = sadd.s32 %s5213, %s5214
          %s5216 = smul.addr %s5215, 64
          %s5217 = scalar_lea.hbm %s3, %s5216
          %s5218 = sshll.u32 %s5205, 4
          %s5219 = int_to_ptr.vmem [resolvable:$true] %s5218
          %5224 = dma.vmem_to_hbm [thread:$0]  %s5219, 1024, %s5217, %s5202, 64, 64, 4
        $region64: #{tpu_custom_call.1} parent=31 // pred_fallthru
          _
      $region32: #{tpu_custom_call.1} parent=5 // pred_fallthru
        _
      %p5225 = scmp.le.s32.totalorder 2, %s18
      // Predicated region
      $region65: #{tpu_custom_call.1} parent=5 // pred_check
        %p5226 = pneg %p5225
      $region66: #{tpu_custom_call.1} parent=5 // pred_check_branch
        %5228 = sbr.rel (%p5226) target = $region68
      $region67: #{tpu_custom_call.1} parent=5 // pred_region
        %s5229 = ssub.s32 %s18, 2
        // Predicated region
        $region69: #{tpu_custom_call.1} parent=67 // pred_check
          %p5230 = pneg %p195
        $region70: #{tpu_custom_call.1} parent=67 // pred_check_branch
          %5232 = sbr.rel (%p5230) target = $region72
        $region71: #{tpu_custom_call.1} parent=67 // pred_region
          %s5233 = sand.u32 %s180, 1
          %s5234 = scalar_lea.sflag [#allocation7], %s5233
          %s5235 = sand.u32 %s180, 1
          %s5236 = smul.addr %s5235, 64
          %s5237 = scalar_lea.vmem [#allocation11], %s5236
          %5238 = dma.done %s5234, 1024
        $region72: #{tpu_custom_call.1} parent=67 // pred_fallthru
          _
      $region68: #{tpu_custom_call.1} parent=5 // pred_fallthru
        _
    $region6: #{tpu_custom_call.1} parent=1 // loop_footer
      %s22 = sadd.s32 1, %s18
    $region7: #{tpu_custom_call.1} parent=1 // loop_footer_branch
      %17 = sbr.rel target = $region3
    $region8: #{tpu_custom_call.1} parent=1 // loop_exit
      _
    %5239 = vsyncpa [#allocation6], 1
    %s5240 = scalar_lea.sflag [#allocation6], 1
    %5241 = vsyncpa %s5240, 1
    %5242 = vsyncpa [#allocation9], 1
    %s5243 = scalar_lea.sflag [#allocation9], 1
    %5244 = vsyncpa %s5243, 1
    %5245 = vsyncpa [#allocation7], 1
    %s5246 = scalar_lea.sflag [#allocation7], 1
    %5247 = vsyncpa %s5246, 1

</llo_original>
